<compile_context>
chip_gen: v6e
topology: v6e:2x2x1
jax: 0.10.0
libtpu: 0.0.40
codegen_flags: <defaults>
</compile_context>

<pallas_src>
import functools

import jax
import jax.numpy as jnp
from jax.experimental import pallas as pl
from jax.experimental.pallas import tpu as pltpu

EPS = 1e-5
LANE = 128
VMEM_LIMIT = 32 * 1024 * 1024  # safe on v5e (128M phys), v6e (128M), v7x (64M)


def _round_up(v, m):
    return (v + m - 1) // m * m


# ----------------------------------------------------------------------------
# Kernel 1: per-channel sum / sum-of-squares for BatchNorm batch statistics.
# ----------------------------------------------------------------------------
def _stats_kernel(x_ref, o_ref, acc_ref, *, tm):
    i = pl.program_id(1)

    @pl.when(i == 0)
    def _():
        acc_ref[...] = jnp.zeros_like(acc_ref)

    c = x_ref.shape[-1]
    x = x_ref[...]                      # (tm, C)
    xr = x.reshape(tm // 8, 8, c)       # pure retiling (tm % 8 == 0)
    # Keep partials vreg-shaped (8, C): plain VPU adds in the hot loop; the
    # 8 -> 1 sublane (XLU) reduction happens once at the final grid step.
    acc_ref[0:8, :] += jnp.sum(xr, axis=0)
    acc_ref[8:16, :] += jnp.sum(xr * xr, axis=0)

    @pl.when(i == pl.num_programs(1) - 1)
    def _():
        s1 = jnp.sum(acc_ref[0:8, :], axis=0, keepdims=True)
        s2 = jnp.sum(acc_ref[8:16, :], axis=0, keepdims=True)
        o_ref[...] = jnp.concatenate([s1, s2], axis=0).reshape(1, 2, c)


def _pick_rows(m):
    for t in (2048, 1024, 512, 256, 128, 64, 32, 16, 8):
        if m % t == 0:
            return t
    return m


def channel_stats(x2d):
    """x2d: (M, C) f32 -> (2, C) with [sum; sum of squares] over rows."""
    m, c = x2d.shape
    assert m % 8 == 0, m
    # Leading 2-way 'parallel' split of M so both v7x TensorCores get work.
    p = 2 if (m // 8) % 2 == 0 else 1
    mh = m // p
    tm = _pick_rows(mh)
    assert tm % 8 == 0
    tiles = mh // tm

    out = pl.pallas_call(
        functools.partial(_stats_kernel, tm=tm),
        out_shape=jax.ShapeDtypeStruct((p, 2, c), jnp.float32),
        grid=(p, tiles),
        in_specs=[pl.BlockSpec((tm, c), lambda pi, i: (pi * tiles + i, 0))],
        out_specs=pl.BlockSpec((1, 2, c), lambda pi, i: (pi, 0, 0)),
        scratch_shapes=[pltpu.VMEM((16, c), jnp.float32)],
        compiler_params=pltpu.CompilerParams(
            dimension_semantics=("parallel", "arbitrary"),
            vmem_limit_bytes=VMEM_LIMIT),
    )(x2d)
    return jnp.sum(out, axis=0)  # combine the per-core partials -> (2, C)


def _fold_bn(stats, gamma, beta, m):
    """Fold training-mode BN into per-channel scale a and shift b."""
    mean = stats[0] / m
    # TODO(synk): shifted / two-pass variance for inputs with |mean| >> std
    # (single-pass E[x^2]-E[x]^2 can cancel catastrophically).
    var = stats[1] / m - mean * mean
    a = gamma / jnp.sqrt(var + EPS)
    b = beta - mean * a
    return a, b


# ----------------------------------------------------------------------------
# Kernel 2: fused  BN+ReLU -> 3x3 conv (+ optional 1x1 shortcut) -> bias.
# The 3x3 conv is 9 accumulated (rows*W, C) @ (C, Co) matmuls; no im2col buffer.
# ----------------------------------------------------------------------------
def _make_fused_conv_kernel(*, th, width, ht, c_in, c_out, c_sc,
                            with_shortcut, compute_dtype):
    wp = width + 2

    def kernel(*refs):
        if with_shortcut:
            (src_hbm, a_ref, b_ref, w_ref, bias_ref, xs_ref, ws_ref,
             o_ref, buf_ref, sem) = refs
        else:
            (src_hbm, a_ref, b_ref, w_ref, bias_ref,
             o_ref, buf_ref, sem) = refs

        n = pl.program_id(0)
        t = pl.program_id(1)

        # Overlapping row windows can't be expressed with a Blocked BlockSpec,
        # so DMA the (th+2, W+2, C) halo'd slab from HBM manually.
        # TODO(synk): double-buffer this DMA across grid steps to overlap it
        # with the 9 matmuls of the previous tile.
        dma = pltpu.make_async_copy(
            src_hbm.at[n, pl.ds(t * th, th + 2)], buf_ref, sem)
        dma.start()
        dma.wait()

        v = buf_ref[...]                                   # (th+2, W+2, C) f32
        # Fused BatchNorm (pre-folded scale/shift) + ReLU on the input tile.
        h = jnp.maximum(v * a_ref[...] + b_ref[...], 0.0)

        # Re-zero the conv zero-padding ring: BN+ReLU of a padded zero is
        # relu(b) != 0, but the conv must see zeros there.
        rows = jax.lax.broadcasted_iota(jnp.int32, (th + 2, wp, c_in), 0)
        cols = jax.lax.broadcasted_iota(jnp.int32, (th + 2, wp, c_in), 1)
        keep = (cols >= 1) & (cols <= width)
        keep &= jnp.logical_or(rows >= 1, t != 0)           # top image border
        keep &= jnp.logical_or(rows <= th, t != ht - 1)     # bottom image border
        h = jnp.where(keep, h, 0.0).astype(compute_dtype)

        acc = jnp.zeros((th * width, c_out), jnp.float32)
        for dc in range(3):
            hc = h[:, dc:dc + width, :]                     # one column shift / tap
            for dr in range(3):
                patch = hc[dr:dr + th].reshape(th * width, c_in)
                acc += jnp.dot(patch, w_ref[dr * 3 + dc],
                               preferred_element_type=jnp.float32)

        if with_shortcut:
            # 1x1 shortcut conv on the raw (pre-BN) block input, folded in as
            # an extra K segment of the same accumulation.
            xs = xs_ref[0].reshape(th * width, c_sc).astype(compute_dtype)
            acc += jnp.dot(xs, ws_ref[...], preferred_element_type=jnp.float32)

        acc += bias_ref[...]
        o_ref[...] = acc.reshape(1, th, width, c_out).astype(o_ref.dtype)

    return kernel


def fused_conv3x3(src_padded, a, b, w9, bias, *, block_rows,
                  compute_dtype=jnp.float32, shortcut=None,
                  out_dtype=jnp.float32):
    """src_padded: (N, H+2, W+2, Cin) spatially zero-padded, channel-padded.

    a, b:      (Cin,) folded BN scale/shift applied inside the kernel.
    w9:        (9, Cin, Cout) per-tap weights.
    bias:      (Cout,) added in the epilogue.
    shortcut:  optional (x_raw (N,H,W,Csc), ws (Csc,Cout)) 1x1-conv fold-in.
    """
    n_b, hp2, wp2, c_in = src_padded.shape
    h_sp, w_sp = hp2 - 2, wp2 - 2
    c_out = w9.shape[-1]
    th = block_rows
    assert h_sp % th == 0, (h_sp, th)
    assert w_sp % 8 == 0, w_sp  # keeps in-kernel reshapes pure retilings
    ht = h_sp // th

    inputs = [src_padded,
              a.reshape(1, c_in).astype(jnp.float32),
              b.reshape(1, c_in).astype(jnp.float32),
              w9.astype(compute_dtype),
              bias.reshape(1, c_out).astype(jnp.float32)]
    in_specs = [
        pl.BlockSpec(memory_space=pl.ANY),                       # stays in HBM
        pl.BlockSpec((1, c_in), lambda ni, ti: (0, 0)),
        pl.BlockSpec((1, c_in), lambda ni, ti: (0, 0)),
        pl.BlockSpec((9, c_in, c_out), lambda ni, ti: (0, 0, 0)),
        pl.BlockSpec((1, c_out), lambda ni, ti: (0, 0)),
    ]

    c_sc = 0
    if shortcut is not None:
        xs, ws = shortcut
        c_sc = xs.shape[-1]
        inputs += [xs, ws.astype(compute_dtype)]
        in_specs += [
            pl.BlockSpec((1, th, w_sp, c_sc), lambda ni, ti: (ni, ti, 0, 0)),
            pl.BlockSpec((c_sc, c_out), lambda ni, ti: (0, 0)),
        ]

    kernel = _make_fused_conv_kernel(
        th=th, width=w_sp, ht=ht, c_in=c_in, c_out=c_out, c_sc=c_sc,
        with_shortcut=shortcut is not None, compute_dtype=compute_dtype)

    return pl.pallas_call(
        kernel,
        out_shape=jax.ShapeDtypeStruct((n_b, h_sp, w_sp, c_out), out_dtype),
        grid=(n_b, ht),
        in_specs=in_specs,
        out_specs=pl.BlockSpec((1, th, w_sp, c_out),
                               lambda ni, ti: (ni, ti, 0, 0)),
        scratch_shapes=[pltpu.VMEM((th + 2, w_sp + 2, c_in), src_padded.dtype),
                        pltpu.SemaphoreType.DMA],
        compiler_params=pltpu.CompilerParams(
            dimension_semantics=("parallel", "parallel"),
            vmem_limit_bytes=VMEM_LIMIT),
    )(*inputs)


# ----------------------------------------------------------------------------
# JAX glue: bilinear x2 upsample (align_corners=True), padding, layout.
# ----------------------------------------------------------------------------
def _interp_matrix(n_in, n_out):
    pos = jnp.arange(n_out, dtype=jnp.float32) * (n_in - 1) / max(n_out - 1, 1)
    lo = jnp.clip(jnp.floor(pos).astype(jnp.int32), 0, n_in - 1)
    hi = jnp.clip(lo + 1, 0, n_in - 1)
    frac = pos - lo.astype(jnp.float32)
    m = jnp.zeros((n_out, n_in), jnp.float32)
    m = m.at[jnp.arange(n_out), lo].add(1.0 - frac)
    m = m.at[jnp.arange(n_out), hi].add(frac)
    return m


def bilinear_up2(x):  # (N, H, W, C) -> (N, 2H, 2W, C), align_corners=True
    n, h, w, c = x.shape
    mh = _interp_matrix(h, 2 * h)
    mw = _interp_matrix(w, 2 * w)
    y = jnp.einsum("oh,nhwc->nowc", mh, x)
    y = jnp.einsum("pw,nowc->nopc", mw, y)
    return y


def _auto_block_rows(h, w, c, budget=2 * 1024 * 1024):
    cands = [th for th in range(1, h + 1) if h % th == 0]
    fit = [th for th in cands if (th + 2) * (w + 2) * c * 4 <= budget]
    return max(fit) if fit else min(cands)


# ----------------------------------------------------------------------------
# Decoder_block forward
# ----------------------------------------------------------------------------
def decoder_block_pallas(inputs_nchw, skip_nchw, params, *, block_rows=None,
                         compute_dtype=jnp.float32):
    # NCHW -> NHWC
    x_in = jnp.transpose(inputs_nchw, (0, 2, 3, 1)).astype(jnp.float32)
    skip = jnp.transpose(skip_nchw, (0, 2, 3, 1)).astype(jnp.float32)

    up = bilinear_up2(x_in)
    x = jnp.concatenate([up, skip], axis=-1)        # (N, H, W, cin)
    n, h, w, cin = x.shape
    co = params["conv1_w"].shape[0]
    m = n * h * w

    # Lane-dense channel padding (full vst instead of masked vst.msk); padded
    # channels stay exactly zero through the whole block and are sliced off.
    cin_p = _round_up(cin, LANE)
    co_p = _round_up(co, LANE)
    x_p = jnp.pad(x, ((0, 0), (0, 0), (0, 0), (0, cin_p - cin)))

    if block_rows is None:
        block_rows = _auto_block_rows(h, w, max(cin_p, co_p))

    def padc(v, c):
        return jnp.pad(v, (0, c - v.shape[0]))

    # ---- BN1 batch statistics + fold --------------------------------------
    a1, b1 = _fold_bn(channel_stats(x_p.reshape(m, cin_p)),
                      padc(params["bn1_gamma"], cin_p),
                      padc(params["bn1_beta"], cin_p), m)

    # ---- conv1: fused BN1+ReLU -> 3x3 conv + bias --------------------------
    w1 = jnp.pad(
        jnp.transpose(params["conv1_w"], (2, 3, 1, 0)).reshape(9, cin, co),
        ((0, 0), (0, cin_p - cin), (0, co_p - co)))
    xp1 = jnp.pad(x_p, ((0, 0), (1, 1), (1, 1), (0, 0)))
    y1 = fused_conv3x3(xp1, a1, b1, w1, padc(params["conv1_b"], co_p),
                       block_rows=block_rows, compute_dtype=compute_dtype)

    # ---- BN2 batch statistics + fold ---------------------------------------
    a2, b2 = _fold_bn(channel_stats(y1.reshape(m, co_p)),
                      padc(params["bn2_gamma"], co_p),
                      padc(params["bn2_beta"], co_p), m)

    # ---- conv2: fused BN2+ReLU -> 3x3 conv, with the 1x1 shortcut conv on x
    #      folded in as an extra K segment and both biases merged. ------------
    w2 = jnp.pad(
        jnp.transpose(params["conv2_w"], (2, 3, 1, 0)).reshape(9, co, co),
        ((0, 0), (0, co_p - co), (0, co_p - co)))
    ws = jnp.pad(params["convs_w"].reshape(co, cin).T,
                 ((0, cin_p - cin), (0, co_p - co)))
    bias2 = padc(params["conv2_b"] + params["convs_b"], co_p)
    yp1 = jnp.pad(y1, ((0, 0), (1, 1), (1, 1), (0, 0)))
    out = fused_conv3x3(yp1, a2, b2, w2, bias2,
                        block_rows=block_rows, compute_dtype=compute_dtype,
                        shortcut=(x_p, ws))

    out = out[:, :, :, :co]
    return jnp.transpose(out, (0, 3, 1, 2))  # back to NCHW


# ----------------------------------------------------------------------------
# Pure-JAX reference (for the correctness check)
# ----------------------------------------------------------------------------
def decoder_block_ref(inputs_nchw, skip_nchw, params):
    x_in = jnp.transpose(inputs_nchw, (0, 2, 3, 1))
    skip = jnp.transpose(skip_nchw, (0, 2, 3, 1))
    up = bilinear_up2(x_in)
    x = jnp.concatenate([up, skip], axis=-1)

    def bn_relu(v, gamma, beta):
        mean = jnp.mean(v, axis=(0, 1, 2))
        var = jnp.mean((v - mean) ** 2, axis=(0, 1, 2))
        return jnp.maximum((v - mean) / jnp.sqrt(var + EPS) * gamma + beta, 0.0)

    def conv(v, wt, b, pad):
        wh = jnp.transpose(wt, (2, 3, 1, 0))  # (K,C,kh,kw) -> HWIO
        o = jax.lax.conv_general_dilated(
            v, wh, (1, 1), [(pad, pad), (pad, pad)],
            dimension_numbers=("NHWC", "HWIO", "NHWC"))
        return o + b

    hh = bn_relu(x, params["bn1_gamma"], params["bn1_beta"])
    y1 = conv(hh, params["conv1_w"], params["conv1_b"], 1)
    h2 = bn_relu(y1, params["bn2_gamma"], params["bn2_beta"])
    y2 = conv(h2, params["conv2_w"], params["conv2_b"], 1)
    s = conv(x, params["convs_w"], params["convs_b"], 0)
    return jnp.transpose(y2 + s, (0, 3, 1, 2))


# ----------------------------------------------------------------------------
# Deterministic parameter init (shapes from Decoder_block.__init__)
# ----------------------------------------------------------------------------
def init_params(key, in_channel, out_channel):
    cin = in_channel + out_channel
    k = jax.random.split(key, 6)

    def wini(kk, shape, fan_in):
        return jax.random.normal(kk, shape, jnp.float32) / jnp.sqrt(float(fan_in))

    return dict(
        bn1_gamma=jnp.ones((cin,), jnp.float32),
        bn1_beta=jnp.zeros((cin,), jnp.float32),
        conv1_w=wini(k[0], (out_channel, cin, 3, 3), cin * 9),
        conv1_b=0.1 * jax.random.normal(k[1], (out_channel,), jnp.float32),
        bn2_gamma=jnp.ones((out_channel,), jnp.float32),
        bn2_beta=jnp.zeros((out_channel,), jnp.float32),
        conv2_w=wini(k[2], (out_channel, out_channel, 3, 3), out_channel * 9),
        conv2_b=0.1 * jax.random.normal(k[3], (out_channel,), jnp.float32),
        convs_w=wini(k[4], (out_channel, cin, 1, 1), cin),
        convs_b=0.1 * jax.random.normal(k[5], (out_channel,), jnp.float32),
    )


if __name__ == "__main__":
    key = jax.random.PRNGKey(0)
    kin, kskip, kp = jax.random.split(key, 3)

    in_channel, out_channel = 4, 4
    n, hh, ww = 2, 8, 8
    inputs = jax.random.normal(kin, (n, in_channel, hh, ww), jnp.float32)
    skip = jax.random.normal(kskip, (n, out_channel, 2 * hh, 2 * ww), jnp.float32)
    params = init_params(kp, in_channel, out_channel)

    # block_rows=8 -> 2 row tiles of 16 output rows each: exercises the
    # halo / border-mask logic as well as the interior case.
    fwd = jax.jit(functools.partial(decoder_block_pallas, block_rows=8))
    out = jax.block_until_ready(fwd(inputs, skip, params))
    assert out.shape == (n, out_channel, 2 * hh, 2 * ww), out.shape

    ref = decoder_block_ref(inputs, skip, params)
    err = jnp.max(jnp.abs(out - ref))
    if not jnp.allclose(out, ref, atol=2e-4, rtol=2e-4):
        raise AssertionError(f"mismatch vs reference, max abs err = {err}")

    print("KERNEL_OK")
</pallas_src>

<mosaic_0001>
module attributes {stable_mosaic.version = 11 : i64} {
  func.func private @main(%arg0: i32) attributes {dimension_semantics = [#tpu.dimension_semantics<core_parallel>], iteration_bounds = array<i64: 2>, tpu.core_type = #tpu.core_type<sc_scalar_subcore>, window_params = []} {
    return
  }
}

module attributes {stable_mosaic.version = 11 : i64} {
  func.func private @main(%arg0: i32) attributes {dimension_semantics = [#tpu.dimension_semantics<core_parallel>], iteration_bounds = array<i64: 2>, tpu.core_type = #tpu.core_type<sc_scalar_subcore>, window_params = []} {
    return
  }
}

module attributes {stable_mosaic.version = 11 : i64} {
  func.func @_stats_kernel(%arg0: i32, %arg1: i32, %arg2: memref<256x128xf32, #tpu.memory_space<vmem>>, %arg3: memref<1x2x128xf32, #tpu.memory_space<vmem>>, %arg4: memref<16x128xf32, #tpu.memory_space<vmem>>) attributes {dimension_semantics = [#tpu.dimension_semantics<parallel>, #tpu.dimension_semantics<arbitrary>], iteration_bounds = array<i64: 2, 1>, scalar_prefetch = 0 : i64, scratch_operands = 1 : i64, tpu.core_type = #tpu.core_type<tc>, window_params = [{transform_indices = @transform_0, window_bounds = array<i64: 256, 128>}, {transform_indices = @transform_1, window_bounds = array<i64: 1, 2, 128>}]} {
    %c0_i32 = arith.constant 0 : i32
    %0 = arith.cmpi eq, %arg1, %c0_i32 : i32
    %1 = arith.extui %0 : i1 to i32
    %c0_i32_0 = arith.constant 0 : i32
    %2 = arith.cmpi ne, %1, %c0_i32_0 : i32
    scf.if %2 {
      %cst_12 = arith.constant 0.000000e+00 : f32
      %17 = vector.broadcast %cst_12 : f32 to vector<16x128xf32>
      %c0_13 = arith.constant 0 : index
      %c0_14 = arith.constant 0 : index
      %18 = vector.load %arg4[%c0_13, %c0_14] : memref<16x128xf32, #tpu.memory_space<vmem>>, vector<16x128xf32>
      tpu.vector_store %arg4[%c0_13, %c0_14], %17 {strides = array<i32>} : memref<16x128xf32, #tpu.memory_space<vmem>>, vector<16x128xf32>,
    } else {
    }
    %c0 = arith.constant 0 : index
    %c0_1 = arith.constant 0 : index
    %3 = vector.load %arg2[%c0, %c0_1] : memref<256x128xf32, #tpu.memory_space<vmem>>, vector<256x128xf32>
    %4 = vector.shape_cast %3 : vector<256x128xf32> to vector<32x8x128xf32>
    %c0_2 = arith.constant 0 : index
    %c0_3 = arith.constant 0 : index
    %5 = vector.load %arg4[%c0_2, %c0_3] : memref<16x128xf32, #tpu.memory_space<vmem>>, vector<8x128xf32>
    %cst = arith.constant dense<0.000000e+00> : vector<8x128xf32>
    %6 = vector.multi_reduction <add>, %4, %cst [0] : vector<32x8x128xf32> to vector<8x128xf32>
    %7 = arith.addf %5, %6 : vector<8x128xf32>
    %c0_4 = arith.constant 0 : index
    %c0_5 = arith.constant 0 : index
    %8 = vector.load %arg4[%c0_4, %c0_5] : memref<16x128xf32, #tpu.memory_space<vmem>>, vector<8x128xf32>
    tpu.vector_store %arg4[%c0_4, %c0_5], %7 {strides = array<i32>} : memref<16x128xf32, #tpu.memory_space<vmem>>, vector<8x128xf32>,
    %c8 = arith.constant 8 : index
    %c0_6 = arith.constant 0 : index
    %9 = vector.load %arg4[%c8, %c0_6] : memref<16x128xf32, #tpu.memory_space<vmem>>, vector<8x128xf32>
    %10 = arith.mulf %4, %4 : vector<32x8x128xf32>
    %cst_7 = arith.constant dense<0.000000e+00> : vector<8x128xf32>
    %11 = vector.multi_reduction <add>, %10, %cst_7 [0] : vector<32x8x128xf32> to vector<8x128xf32>
    %12 = arith.addf %9, %11 : vector<8x128xf32>
    %c8_8 = arith.constant 8 : index
    %c0_9 = arith.constant 0 : index
    %13 = vector.load %arg4[%c8_8, %c0_9] : memref<16x128xf32, #tpu.memory_space<vmem>>, vector<8x128xf32>
    tpu.vector_store %arg4[%c8_8, %c0_9], %12 {strides = array<i32>} : memref<16x128xf32, #tpu.memory_space<vmem>>, vector<8x128xf32>,
    %c0_i32_10 = arith.constant 0 : i32
    %14 = arith.cmpi eq, %arg1, %c0_i32_10 : i32
    %15 = arith.extui %14 : i1 to i32
    %c0_i32_11 = arith.constant 0 : i32
    %16 = arith.cmpi ne, %15, %c0_i32_11 : i32
    scf.if %16 {
      %c0_12 = arith.constant 0 : index
      %c0_13 = arith.constant 0 : index
      %17 = vector.load %arg4[%c0_12, %c0_13] : memref<16x128xf32, #tpu.memory_space<vmem>>, vector<8x128xf32>
      %cst_14 = arith.constant dense<0.000000e+00> : vector<128xf32>
      %18 = vector.multi_reduction <add>, %17, %cst_14 [0] : vector<8x128xf32> to vector<128xf32>
      %19 = vector.shape_cast %18 : vector<128xf32> to vector<1x128xf32>
      %c8_15 = arith.constant 8 : index
      %c0_16 = arith.constant 0 : index
      %20 = vector.load %arg4[%c8_15, %c0_16] : memref<16x128xf32, #tpu.memory_space<vmem>>, vector<8x128xf32>
      %cst_17 = arith.constant dense<0.000000e+00> : vector<128xf32>
      %21 = vector.multi_reduction <add>, %20, %cst_17 [0] : vector<8x128xf32> to vector<128xf32>
      %22 = vector.shape_cast %21 : vector<128xf32> to vector<1x128xf32>
      %23 = tpu.concatenate %19, %22 in 0 : vector<1x128xf32>, vector<1x128xf32> -> vector<2x128xf32>
      %24 = vector.shape_cast %23 : vector<2x128xf32> to vector<1x2x128xf32>
      %c0_18 = arith.constant 0 : index
      %c0_19 = arith.constant 0 : index
      %c0_20 = arith.constant 0 : index
      %25 = vector.load %arg3[%c0_18, %c0_19, %c0_20] : memref<1x2x128xf32, #tpu.memory_space<vmem>>, vector<1x2x128xf32>
      tpu.vector_store %arg3[%c0_18, %c0_19, %c0_20], %24 {strides = array<i32>} : memref<1x2x128xf32, #tpu.memory_space<vmem>>, vector<1x2x128xf32>,
    } else {
    }
    return
  }
  func.func @transform_0(%arg0: i32, %arg1: i32) -> (i32, i32) {
    %c1_i32 = arith.constant 1 : i32
    %0 = arith.muli %arg0, %c1_i32 : i32
    %1 = arith.addi %0, %arg1 : i32
    %c0_i32 = arith.constant 0 : i32
    %c0_i32_0 = arith.constant 0 : i32
    return %1, %c0_i32 : i32, i32
  }
  func.func @transform_1(%arg0: i32, %arg1: i32) -> (i32, i32, i32) {
    %c0_i32 = arith.constant 0 : i32
    %c0_i32_0 = arith.constant 0 : i32
    %c0_i32_1 = arith.constant 0 : i32
    return %arg0, %c0_i32, %c0_i32_0 : i32, i32, i32
  }
}

module attributes {stable_mosaic.version = 11 : i64} {
  func.func @kernel(%arg0: i32, %arg1: i32, %arg2: memref<2x18x18x128xf32, #tpu.memory_space<any>>, %arg3: memref<1x128xf32, #tpu.memory_space<vmem>>, %arg4: memref<1x128xf32, #tpu.memory_space<vmem>>, %arg5: memref<9x128x128xf32, #tpu.memory_space<vmem>>, %arg6: memref<1x128xf32, #tpu.memory_space<vmem>>, %arg7: memref<1x8x16x128xf32, #tpu.memory_space<vmem>>, %arg8: memref<128x128xf32, #tpu.memory_space<vmem>>, %arg9: memref<1x8x16x128xf32, #tpu.memory_space<vmem>>, %arg10: memref<10x18x128xf32, #tpu.memory_space<vmem>>, %arg11: memref<!tpu.dma_semaphore, #tpu.memory_space<semaphore_mem>>) attributes {dimension_semantics = [#tpu.dimension_semantics<parallel>, #tpu.dimension_semantics<parallel>], iteration_bounds = array<i64: 2, 2>, scalar_prefetch = 0 : i64, scratch_operands = 2 : i64, tpu.core_type = #tpu.core_type<tc>, window_params = [{}, {pipeline_mode = #tpu.pipeline_mode<synchronous>, transform_indices = @transform_1, window_bounds = array<i64: 1, 128>}, {pipeline_mode = #tpu.pipeline_mode<synchronous>, transform_indices = @transform_2, window_bounds = array<i64: 1, 128>}, {pipeline_mode = #tpu.pipeline_mode<synchronous>, transform_indices = @transform_3, window_bounds = array<i64: 9, 128, 128>}, {pipeline_mode = #tpu.pipeline_mode<synchronous>, transform_indices = @transform_4, window_bounds = array<i64: 1, 128>}, {transform_indices = @transform_5, window_bounds = array<i64: 1, 8, 16, 128>}, {pipeline_mode = #tpu.pipeline_mode<synchronous>, transform_indices = @transform_6, window_bounds = array<i64: 128, 128>}, {transform_indices = @transform_7, window_bounds = array<i64: 1, 8, 16, 128>}]} {
    %c8_i32 = arith.constant 8 : i32
    %0 = arith.muli %arg1, %c8_i32 : i32
    %c0_i32 = arith.constant 0 : i32
    %c0_i32_0 = arith.constant 0 : i32
    %1 = tpu.memref_slice %arg2[%arg0, %0, %c0_i32, %c0_i32_0] : memref<2x18x18x128xf32, #tpu.memory_space<any>> -> memref<1x10x18x128xf32, #tpu.memory_space<any>>
    %2 = tpu.memref_squeeze %1 : memref<1x10x18x128xf32, #tpu.memory_space<any>> -> memref<10x18x128xf32, #tpu.memory_space<any>>
    tpu.enqueue_dma source(%2 : memref<10x18x128xf32, #tpu.memory_space<any>>) target(%arg10 : memref<10x18x128xf32, #tpu.memory_space<vmem>>) target_semaphore(%arg11 : memref<!tpu.dma_semaphore, #tpu.memory_space<semaphore_mem>>)
    %c0_i32_1 = arith.constant 0 : i32
    %c0_i32_2 = arith.constant 0 : i32
    %3 = tpu.memref_slice %arg2[%arg0, %0, %c0_i32_1, %c0_i32_2] : memref<2x18x18x128xf32, #tpu.memory_space<any>> -> memref<1x10x18x128xf32, #tpu.memory_space<any>>
    %4 = tpu.memref_squeeze %3 : memref<1x10x18x128xf32, #tpu.memory_space<any>> -> memref<10x18x128xf32, #tpu.memory_space<any>>
    tpu.wait_dma2 semaphore(%arg11 : memref<!tpu.dma_semaphore, #tpu.memory_space<semaphore_mem>>) src(%4 : memref<10x18x128xf32, #tpu.memory_space<any>>) dst(%arg10 : memref<10x18x128xf32, #tpu.memory_space<vmem>>)
    %c0 = arith.constant 0 : index
    %c0_3 = arith.constant 0 : index
    %c0_4 = arith.constant 0 : index
    %5 = vector.load %arg10[%c0, %c0_3, %c0_4] : memref<10x18x128xf32, #tpu.memory_space<vmem>>, vector<10x18x128xf32>
    %c0_5 = arith.constant 0 : index
    %c0_6 = arith.constant 0 : index
    %6 = vector.load %arg3[%c0_5, %c0_6] : memref<1x128xf32, #tpu.memory_space<vmem>>, vector<1x128xf32>
    %7 = vector.shape_cast %6 : vector<1x128xf32> to vector<1x1x128xf32>
    %8 = vector.broadcast %7 : vector<1x1x128xf32> to vector<10x18x128xf32>
    %9 = arith.mulf %5, %8 : vector<10x18x128xf32>
    %c0_7 = arith.constant 0 : index
    %c0_8 = arith.constant 0 : index
    %10 = vector.load %arg4[%c0_7, %c0_8] : memref<1x128xf32, #tpu.memory_space<vmem>>, vector<1x128xf32>
    %11 = vector.shape_cast %10 : vector<1x128xf32> to vector<1x1x128xf32>
    %12 = vector.broadcast %11 : vector<1x1x128xf32> to vector<10x18x128xf32>
    %13 = arith.addf %9, %12 : vector<10x18x128xf32>
    %cst = arith.constant 0.000000e+00 : f32
    %14 = vector.broadcast %cst : f32 to vector<10x18x128xf32>
    %15 = arith.maximumf %13, %14 : vector<10x18x128xf32>
    %16 = tpu.iota {dimensions = array<i32: 0>} : vector<10x18x128xi32>
    %17 = tpu.iota {dimensions = array<i32: 1>} : vector<10x18x128xi32>
    %c1_i32 = arith.constant 1 : i32
    %18 = vector.broadcast %c1_i32 : i32 to vector<10x18x128xi32>
    %19 = arith.cmpi sge, %17, %18 : vector<10x18x128xi32>
    %c16_i32 = arith.constant 16 : i32
    %20 = vector.broadcast %c16_i32 : i32 to vector<10x18x128xi32>
    %21 = arith.cmpi sle, %17, %20 : vector<10x18x128xi32>
    %22 = arith.andi %19, %21 : vector<10x18x128xi1>
    %c1_i32_9 = arith.constant 1 : i32
    %23 = vector.broadcast %c1_i32_9 : i32 to vector<10x18x128xi32>
    %24 = arith.cmpi sge, %16, %23 : vector<10x18x128xi32>
    %c0_i32_10 = arith.constant 0 : i32
    %25 = arith.cmpi ne, %arg1, %c0_i32_10 : i32
    %26 = vector.broadcast %25 : i1 to vector<10x18x128xi1>
    %27 = arith.ori %24, %26 : vector<10x18x128xi1>
    %28 = arith.andi %22, %27 : vector<10x18x128xi1>
    %c8_i32_11 = arith.constant 8 : i32
    %29 = vector.broadcast %c8_i32_11 : i32 to vector<10x18x128xi32>
    %30 = arith.cmpi sle, %16, %29 : vector<10x18x128xi32>
    %c1_i32_12 = arith.constant 1 : i32
    %31 = arith.cmpi ne, %arg1, %c1_i32_12 : i32
    %32 = vector.broadcast %31 : i1 to vector<10x18x128xi1>
    %33 = arith.ori %30, %32 : vector<10x18x128xi1>
    %34 = arith.andi %28, %33 : vector<10x18x128xi1>
    %cst_13 = arith.constant 0.000000e+00 : f32
    %35 = vector.broadcast %cst_13 : f32 to vector<10x18x128xf32>
    %36 = arith.select %34, %15, %35 : vector<10x18x128xi1>, vector<10x18x128xf32>
    %cst_14 = arith.constant 0.000000e+00 : f32
    %37 = vector.broadcast %cst_14 : f32 to vector<128x128xf32>
    %38 = vector.extract_strided_slice %36 {offsets = [0, 0, 0], sizes = [10, 16, 128], strides = [1, 1, 1]} : vector<10x18x128xf32> to vector<10x16x128xf32>
    %39 = vector.extract_strided_slice %38 {offsets = [0, 0, 0], sizes = [8, 16, 128], strides = [1, 1, 1]} : vector<10x16x128xf32> to vector<8x16x128xf32>
    %40 = vector.shape_cast %39 : vector<8x16x128xf32> to vector<128x128xf32>
    %c0_15 = arith.constant 0 : index
    %c0_16 = arith.constant 0 : index
    %c0_17 = arith.constant 0 : index
    %41 = vector.load %arg5[%c0_15, %c0_16, %c0_17] : memref<9x128x128xf32, #tpu.memory_space<vmem>>, vector<1x128x128xf32>
    %42 = vector.shape_cast %41 : vector<1x128x128xf32> to vector<128x128xf32>
    %cst_18 = arith.constant dense<0.000000e+00> : vector<128x128xf32>
    %43 = tpu.matmul %40, %42, %cst_18 {dimension_numbers = #tpu.dot_dimension_numbers<[1], [0], [0], [1], [0, 0, 1, 1], [], []>} : vector<128x128xf32>, vector<128x128xf32>, vector<128x128xf32> -> vector<128x128xf32>
    %44 = arith.addf %37, %43 : vector<128x128xf32>
    %45 = vector.extract_strided_slice %38 {offsets = [1, 0, 0], sizes = [8, 16, 128], strides = [1, 1, 1]} : vector<10x16x128xf32> to vector<8x16x128xf32>
    %46 = vector.shape_cast %45 : vector<8x16x128xf32> to vector<128x128xf32>
    %c3 = arith.constant 3 : index
    %c0_19 = arith.constant 0 : index
    %c0_20 = arith.constant 0 : index
    %47 = vector.load %arg5[%c3, %c0_19, %c0_20] : memref<9x128x128xf32, #tpu.memory_space<vmem>>, vector<1x128x128xf32>
    %48 = vector.shape_cast %47 : vector<1x128x128xf32> to vector<128x128xf32>
    %cst_21 = arith.constant dense<0.000000e+00> : vector<128x128xf32>
    %49 = tpu.matmul %46, %48, %cst_21 {dimension_numbers = #tpu.dot_dimension_numbers<[1], [0], [0], [1], [0, 0, 1, 1], [], []>} : vector<128x128xf32>, vector<128x128xf32>, vector<128x128xf32> -> vector<128x128xf32>
    %50 = arith.addf %44, %49 : vector<128x128xf32>
    %51 = vector.extract_strided_slice %38 {offsets = [2, 0, 0], sizes = [8, 16, 128], strides = [1, 1, 1]} : vector<10x16x128xf32> to vector<8x16x128xf32>
    %52 = vector.shape_cast %51 : vector<8x16x128xf32> to vector<128x128xf32>
    %c6 = arith.constant 6 : index
    %c0_22 = arith.constant 0 : index
    %c0_23 = arith.constant 0 : index
    %53 = vector.load %arg5[%c6, %c0_22, %c0_23] : memref<9x128x128xf32, #tpu.memory_space<vmem>>, vector<1x128x128xf32>
    %54 = vector.shape_cast %53 : vector<1x128x128xf32> to vector<128x128xf32>
    %cst_24 = arith.constant dense<0.000000e+00> : vector<128x128xf32>
    %55 = tpu.matmul %52, %54, %cst_24 {dimension_numbers = #tpu.dot_dimension_numbers<[1], [0], [0], [1], [0, 0, 1, 1], [], []>} : vector<128x128xf32>, vector<128x128xf32>, vector<128x128xf32> -> vector<128x128xf32>
    %56 = arith.addf %50, %55 : vector<128x128xf32>
    %57 = vector.extract_strided_slice %36 {offsets = [0, 1, 0], sizes = [10, 16, 128], strides = [1, 1, 1]} : vector<10x18x128xf32> to vector<10x16x128xf32>
    %58 = vector.extract_strided_slice %57 {offsets = [0, 0, 0], sizes = [8, 16, 128], strides = [1, 1, 1]} : vector<10x16x128xf32> to vector<8x16x128xf32>
    %59 = vector.shape_cast %58 : vector<8x16x128xf32> to vector<128x128xf32>
    %c1 = arith.constant 1 : index
    %c0_25 = arith.constant 0 : index
    %c0_26 = arith.constant 0 : index
    %60 = vector.load %arg5[%c1, %c0_25, %c0_26] : memref<9x128x128xf32, #tpu.memory_space<vmem>>, vector<1x128x128xf32>
    %61 = vector.shape_cast %60 : vector<1x128x128xf32> to vector<128x128xf32>
    %cst_27 = arith.constant dense<0.000000e+00> : vector<128x128xf32>
    %62 = tpu.matmul %59, %61, %cst_27 {dimension_numbers = #tpu.dot_dimension_numbers<[1], [0], [0], [1], [0, 0, 1, 1], [], []>} : vector<128x128xf32>, vector<128x128xf32>, vector<128x128xf32> -> vector<128x128xf32>
    %63 = arith.addf %56, %62 : vector<128x128xf32>
    %64 = vector.extract_strided_slice %57 {offsets = [1, 0, 0], sizes = [8, 16, 128], strides = [1, 1, 1]} : vector<10x16x128xf32> to vector<8x16x128xf32>
    %65 = vector.shape_cast %64 : vector<8x16x128xf32> to vector<128x128xf32>
    %c4 = arith.constant 4 : index
    %c0_28 = arith.constant 0 : index
    %c0_29 = arith.constant 0 : index
    %66 = vector.load %arg5[%c4, %c0_28, %c0_29] : memref<9x128x128xf32, #tpu.memory_space<vmem>>, vector<1x128x128xf32>
    %67 = vector.shape_cast %66 : vector<1x128x128xf32> to vector<128x128xf32>
    %cst_30 = arith.constant dense<0.000000e+00> : vector<128x128xf32>
    %68 = tpu.matmul %65, %67, %cst_30 {dimension_numbers = #tpu.dot_dimension_numbers<[1], [0], [0], [1], [0, 0, 1, 1], [], []>} : vector<128x128xf32>, vector<128x128xf32>, vector<128x128xf32> -> vector<128x128xf32>
    %69 = arith.addf %63, %68 : vector<128x128xf32>
    %70 = vector.extract_strided_slice %57 {offsets = [2, 0, 0], sizes = [8, 16, 128], strides = [1, 1, 1]} : vector<10x16x128xf32> to vector<8x16x128xf32>
    %71 = vector.shape_cast %70 : vector<8x16x128xf32> to vector<128x128xf32>
    %c7 = arith.constant 7 : index
    %c0_31 = arith.constant 0 : index
    %c0_32 = arith.constant 0 : index
    %72 = vector.load %arg5[%c7, %c0_31, %c0_32] : memref<9x128x128xf32, #tpu.memory_space<vmem>>, vector<1x128x128xf32>
    %73 = vector.shape_cast %72 : vector<1x128x128xf32> to vector<128x128xf32>
    %cst_33 = arith.constant dense<0.000000e+00> : vector<128x128xf32>
    %74 = tpu.matmul %71, %73, %cst_33 {dimension_numbers = #tpu.dot_dimension_numbers<[1], [0], [0], [1], [0, 0, 1, 1], [], []>} : vector<128x128xf32>, vector<128x128xf32>, vector<128x128xf32> -> vector<128x128xf32>
    %75 = arith.addf %69, %74 : vector<128x128xf32>
    %76 = vector.extract_strided_slice %36 {offsets = [0, 2, 0], sizes = [10, 16, 128], strides = [1, 1, 1]} : vector<10x18x128xf32> to vector<10x16x128xf32>
    %77 = vector.extract_strided_slice %76 {offsets = [0, 0, 0], sizes = [8, 16, 128], strides = [1, 1, 1]} : vector<10x16x128xf32> to vector<8x16x128xf32>
    %78 = vector.shape_cast %77 : vector<8x16x128xf32> to vector<128x128xf32>
    %c2 = arith.constant 2 : index
    %c0_34 = arith.constant 0 : index
    %c0_35 = arith.constant 0 : index
    %79 = vector.load %arg5[%c2, %c0_34, %c0_35] : memref<9x128x128xf32, #tpu.memory_space<vmem>>, vector<1x128x128xf32>
    %80 = vector.shape_cast %79 : vector<1x128x128xf32> to vector<128x128xf32>
    %cst_36 = arith.constant dense<0.000000e+00> : vector<128x128xf32>
    %81 = tpu.matmul %78, %80, %cst_36 {dimension_numbers = #tpu.dot_dimension_numbers<[1], [0], [0], [1], [0, 0, 1, 1], [], []>} : vector<128x128xf32>, vector<128x128xf32>, vector<128x128xf32> -> vector<128x128xf32>
    %82 = arith.addf %75, %81 : vector<128x128xf32>
    %83 = vector.extract_strided_slice %76 {offsets = [1, 0, 0], sizes = [8, 16, 128], strides = [1, 1, 1]} : vector<10x16x128xf32> to vector<8x16x128xf32>
    %84 = vector.shape_cast %83 : vector<8x16x128xf32> to vector<128x128xf32>
    %c5 = arith.constant 5 : index
    %c0_37 = arith.constant 0 : index
    %c0_38 = arith.constant 0 : index
    %85 = vector.load %arg5[%c5, %c0_37, %c0_38] : memref<9x128x128xf32, #tpu.memory_space<vmem>>, vector<1x128x128xf32>
    %86 = vector.shape_cast %85 : vector<1x128x128xf32> to vector<128x128xf32>
    %cst_39 = arith.constant dense<0.000000e+00> : vector<128x128xf32>
    %87 = tpu.matmul %84, %86, %cst_39 {dimension_numbers = #tpu.dot_dimension_numbers<[1], [0], [0], [1], [0, 0, 1, 1], [], []>} : vector<128x128xf32>, vector<128x128xf32>, vector<128x128xf32> -> vector<128x128xf32>
    %88 = arith.addf %82, %87 : vector<128x128xf32>
    %89 = vector.extract_strided_slice %76 {offsets = [2, 0, 0], sizes = [8, 16, 128], strides = [1, 1, 1]} : vector<10x16x128xf32> to vector<8x16x128xf32>
    %90 = vector.shape_cast %89 : vector<8x16x128xf32> to vector<128x128xf32>
    %c8 = arith.constant 8 : index
    %c0_40 = arith.constant 0 : index
    %c0_41 = arith.constant 0 : index
    %91 = vector.load %arg5[%c8, %c0_40, %c0_41] : memref<9x128x128xf32, #tpu.memory_space<vmem>>, vector<1x128x128xf32>
    %92 = vector.shape_cast %91 : vector<1x128x128xf32> to vector<128x128xf32>
    %cst_42 = arith.constant dense<0.000000e+00> : vector<128x128xf32>
    %93 = tpu.matmul %90, %92, %cst_42 {dimension_numbers = #tpu.dot_dimension_numbers<[1], [0], [0], [1], [0, 0, 1, 1], [], []>} : vector<128x128xf32>, vector<128x128xf32>, vector<128x128xf32> -> vector<128x128xf32>
    %94 = arith.addf %88, %93 : vector<128x128xf32>
    %c0_43 = arith.constant 0 : index
    %c0_44 = arith.constant 0 : index
    %c0_45 = arith.constant 0 : index
    %c0_46 = arith.constant 0 : index
    %95 = vector.load %arg7[%c0_43, %c0_44, %c0_45, %c0_46] : memref<1x8x16x128xf32, #tpu.memory_space<vmem>>, vector<1x8x16x128xf32>
    %96 = vector.shape_cast %95 : vector<1x8x16x128xf32> to vector<8x16x128xf32>
    %97 = vector.shape_cast %96 : vector<8x16x128xf32> to vector<128x128xf32>
    %c0_47 = arith.constant 0 : index
    %c0_48 = arith.constant 0 : index
    %98 = vector.load %arg8[%c0_47, %c0_48] : memref<128x128xf32, #tpu.memory_space<vmem>>, vector<128x128xf32>
    %cst_49 = arith.constant dense<0.000000e+00> : vector<128x128xf32>
    %99 = tpu.matmul %97, %98, %cst_49 {dimension_numbers = #tpu.dot_dimension_numbers<[1], [0], [0], [1], [0, 0, 1, 1], [], []>} : vector<128x128xf32>, vector<128x128xf32>, vector<128x128xf32> -> vector<128x128xf32>
    %100 = arith.addf %94, %99 : vector<128x128xf32>
    %c0_50 = arith.constant 0 : index
    %c0_51 = arith.constant 0 : index
    %101 = vector.load %arg6[%c0_50, %c0_51] : memref<1x128xf32, #tpu.memory_space<vmem>>, vector<1x128xf32>
    %102 = vector.broadcast %101 : vector<1x128xf32> to vector<128x128xf32>
    %103 = arith.addf %100, %102 : vector<128x128xf32>
    %104 = vector.shape_cast %103 : vector<128x128xf32> to vector<1x8x16x128xf32>
    %c0_52 = arith.constant 0 : index
    %c0_53 = arith.constant 0 : index
    %c0_54 = arith.constant 0 : index
    %c0_55 = arith.constant 0 : index
    %105 = vector.load %arg9[%c0_52, %c0_53, %c0_54, %c0_55] : memref<1x8x16x128xf32, #tpu.memory_space<vmem>>, vector<1x8x16x128xf32>
    tpu.vector_store %arg9[%c0_52, %c0_53, %c0_54, %c0_55], %104 {strides = array<i32>} : memref<1x8x16x128xf32, #tpu.memory_space<vmem>>, vector<1x8x16x128xf32>,
    return
  }
  func.func @transform_1(%arg0: i32, %arg1: i32) -> (i32, i32) {
    %c0_i32 = arith.constant 0 : i32
    %c0_i32_0 = arith.constant 0 : i32
    %c0_i32_1 = arith.constant 0 : i32
    return %c0_i32, %c0_i32_0 : i32, i32
  }
  func.func @transform_2(%arg0: i32, %arg1: i32) -> (i32, i32) {
    %c0_i32 = arith.constant 0 : i32
    %c0_i32_0 = arith.constant 0 : i32
    %c0_i32_1 = arith.constant 0 : i32
    return %c0_i32, %c0_i32_0 : i32, i32
  }
  func.func @transform_3(%arg0: i32, %arg1: i32) -> (i32, i32, i32) {
    %c0_i32 = arith.constant 0 : i32
    %c0_i32_0 = arith.constant 0 : i32
    %c0_i32_1 = arith.constant 0 : i32
    %c0_i32_2 = arith.constant 0 : i32
    return %c0_i32, %c0_i32_0, %c0_i32_1 : i32, i32, i32
  }
  func.func @transform_4(%arg0: i32, %arg1: i32) -> (i32, i32) {
    %c0_i32 = arith.constant 0 : i32
    %c0_i32_0 = arith.constant 0 : i32
    %c0_i32_1 = arith.constant 0 : i32
    return %c0_i32, %c0_i32_0 : i32, i32
  }
  func.func @transform_5(%arg0: i32, %arg1: i32) -> (i32, i32, i32, i32) {
    %c0_i32 = arith.constant 0 : i32
    %c0_i32_0 = arith.constant 0 : i32
    %c0_i32_1 = arith.constant 0 : i32
    return %arg0, %arg1, %c0_i32, %c0_i32_0 : i32, i32, i32, i32
  }
  func.func @transform_6(%arg0: i32, %arg1: i32) -> (i32, i32) {
    %c0_i32 = arith.constant 0 : i32
    %c0_i32_0 = arith.constant 0 : i32
    %c0_i32_1 = arith.constant 0 : i32
    return %c0_i32, %c0_i32_0 : i32, i32
  }
  func.func @transform_7(%arg0: i32, %arg1: i32) -> (i32, i32, i32, i32) {
    %c0_i32 = arith.constant 0 : i32
    %c0_i32_0 = arith.constant 0 : i32
    %c0_i32_1 = arith.constant 0 : i32
    return %arg0, %arg1, %c0_i32, %c0_i32_0 : i32, i32, i32, i32
  }
}

module attributes {stable_mosaic.version = 11 : i64} {
  func.func @kernel(%arg0: i32, %arg1: i32, %arg2: memref<2x18x18x128xf32, #tpu.memory_space<any>>, %arg3: memref<1x128xf32, #tpu.memory_space<vmem>>, %arg4: memref<1x128xf32, #tpu.memory_space<vmem>>, %arg5: memref<9x128x128xf32, #tpu.memory_space<vmem>>, %arg6: memref<1x128xf32, #tpu.memory_space<vmem>>, %arg7: memref<1x8x16x128xf32, #tpu.memory_space<vmem>>, %arg8: memref<10x18x128xf32, #tpu.memory_space<vmem>>, %arg9: memref<!tpu.dma_semaphore, #tpu.memory_space<semaphore_mem>>) attributes {dimension_semantics = [#tpu.dimension_semantics<parallel>, #tpu.dimension_semantics<parallel>], iteration_bounds = array<i64: 2, 2>, scalar_prefetch = 0 : i64, scratch_operands = 2 : i64, tpu.core_type = #tpu.core_type<tc>, window_params = [{}, {pipeline_mode = #tpu.pipeline_mode<synchronous>, transform_indices = @transform_1, window_bounds = array<i64: 1, 128>}, {pipeline_mode = #tpu.pipeline_mode<synchronous>, transform_indices = @transform_2, window_bounds = array<i64: 1, 128>}, {pipeline_mode = #tpu.pipeline_mode<synchronous>, transform_indices = @transform_3, window_bounds = array<i64: 9, 128, 128>}, {pipeline_mode = #tpu.pipeline_mode<synchronous>, transform_indices = @transform_4, window_bounds = array<i64: 1, 128>}, {transform_indices = @transform_5, window_bounds = array<i64: 1, 8, 16, 128>}]} {
    %c8_i32 = arith.constant 8 : i32
    %0 = arith.muli %arg1, %c8_i32 : i32
    %c0_i32 = arith.constant 0 : i32
    %c0_i32_0 = arith.constant 0 : i32
    %1 = tpu.memref_slice %arg2[%arg0, %0, %c0_i32, %c0_i32_0] : memref<2x18x18x128xf32, #tpu.memory_space<any>> -> memref<1x10x18x128xf32, #tpu.memory_space<any>>
    %2 = tpu.memref_squeeze %1 : memref<1x10x18x128xf32, #tpu.memory_space<any>> -> memref<10x18x128xf32, #tpu.memory_space<any>>
    tpu.enqueue_dma source(%2 : memref<10x18x128xf32, #tpu.memory_space<any>>) target(%arg8 : memref<10x18x128xf32, #tpu.memory_space<vmem>>) target_semaphore(%arg9 : memref<!tpu.dma_semaphore, #tpu.memory_space<semaphore_mem>>)
    %c0_i32_1 = arith.constant 0 : i32
    %c0_i32_2 = arith.constant 0 : i32
    %3 = tpu.memref_slice %arg2[%arg0, %0, %c0_i32_1, %c0_i32_2] : memref<2x18x18x128xf32, #tpu.memory_space<any>> -> memref<1x10x18x128xf32, #tpu.memory_space<any>>
    %4 = tpu.memref_squeeze %3 : memref<1x10x18x128xf32, #tpu.memory_space<any>> -> memref<10x18x128xf32, #tpu.memory_space<any>>
    tpu.wait_dma2 semaphore(%arg9 : memref<!tpu.dma_semaphore, #tpu.memory_space<semaphore_mem>>) src(%4 : memref<10x18x128xf32, #tpu.memory_space<any>>) dst(%arg8 : memref<10x18x128xf32, #tpu.memory_space<vmem>>)
    %c0 = arith.constant 0 : index
    %c0_3 = arith.constant 0 : index
    %c0_4 = arith.constant 0 : index
    %5 = vector.load %arg8[%c0, %c0_3, %c0_4] : memref<10x18x128xf32, #tpu.memory_space<vmem>>, vector<10x18x128xf32>
    %c0_5 = arith.constant 0 : index
    %c0_6 = arith.constant 0 : index
    %6 = vector.load %arg3[%c0_5, %c0_6] : memref<1x128xf32, #tpu.memory_space<vmem>>, vector<1x128xf32>
    %7 = vector.shape_cast %6 : vector<1x128xf32> to vector<1x1x128xf32>
    %8 = vector.broadcast %7 : vector<1x1x128xf32> to vector<10x18x128xf32>
    %9 = arith.mulf %5, %8 : vector<10x18x128xf32>
    %c0_7 = arith.constant 0 : index
    %c0_8 = arith.constant 0 : index
    %10 = vector.load %arg4[%c0_7, %c0_8] : memref<1x128xf32, #tpu.memory_space<vmem>>, vector<1x128xf32>
    %11 = vector.shape_cast %10 : vector<1x128xf32> to vector<1x1x128xf32>
    %12 = vector.broadcast %11 : vector<1x1x128xf32> to vector<10x18x128xf32>
    %13 = arith.addf %9, %12 : vector<10x18x128xf32>
    %cst = arith.constant 0.000000e+00 : f32
    %14 = vector.broadcast %cst : f32 to vector<10x18x128xf32>
    %15 = arith.maximumf %13, %14 : vector<10x18x128xf32>
    %16 = tpu.iota {dimensions = array<i32: 0>} : vector<10x18x128xi32>
    %17 = tpu.iota {dimensions = array<i32: 1>} : vector<10x18x128xi32>
    %c1_i32 = arith.constant 1 : i32
    %18 = vector.broadcast %c1_i32 : i32 to vector<10x18x128xi32>
    %19 = arith.cmpi sge, %17, %18 : vector<10x18x128xi32>
    %c16_i32 = arith.constant 16 : i32
    %20 = vector.broadcast %c16_i32 : i32 to vector<10x18x128xi32>
    %21 = arith.cmpi sle, %17, %20 : vector<10x18x128xi32>
    %22 = arith.andi %19, %21 : vector<10x18x128xi1>
    %c1_i32_9 = arith.constant 1 : i32
    %23 = vector.broadcast %c1_i32_9 : i32 to vector<10x18x128xi32>
    %24 = arith.cmpi sge, %16, %23 : vector<10x18x128xi32>
    %c0_i32_10 = arith.constant 0 : i32
    %25 = arith.cmpi ne, %arg1, %c0_i32_10 : i32
    %26 = vector.broadcast %25 : i1 to vector<10x18x128xi1>
    %27 = arith.ori %24, %26 : vector<10x18x128xi1>
    %28 = arith.andi %22, %27 : vector<10x18x128xi1>
    %c8_i32_11 = arith.constant 8 : i32
    %29 = vector.broadcast %c8_i32_11 : i32 to vector<10x18x128xi32>
    %30 = arith.cmpi sle, %16, %29 : vector<10x18x128xi32>
    %c1_i32_12 = arith.constant 1 : i32
    %31 = arith.cmpi ne, %arg1, %c1_i32_12 : i32
    %32 = vector.broadcast %31 : i1 to vector<10x18x128xi1>
    %33 = arith.ori %30, %32 : vector<10x18x128xi1>
    %34 = arith.andi %28, %33 : vector<10x18x128xi1>
    %cst_13 = arith.constant 0.000000e+00 : f32
    %35 = vector.broadcast %cst_13 : f32 to vector<10x18x128xf32>
    %36 = arith.select %34, %15, %35 : vector<10x18x128xi1>, vector<10x18x128xf32>
    %cst_14 = arith.constant 0.000000e+00 : f32
    %37 = vector.broadcast %cst_14 : f32 to vector<128x128xf32>
    %38 = vector.extract_strided_slice %36 {offsets = [0, 0, 0], sizes = [10, 16, 128], strides = [1, 1, 1]} : vector<10x18x128xf32> to vector<10x16x128xf32>
    %39 = vector.extract_strided_slice %38 {offsets = [0, 0, 0], sizes = [8, 16, 128], strides = [1, 1, 1]} : vector<10x16x128xf32> to vector<8x16x128xf32>
    %40 = vector.shape_cast %39 : vector<8x16x128xf32> to vector<128x128xf32>
    %c0_15 = arith.constant 0 : index
    %c0_16 = arith.constant 0 : index
    %c0_17 = arith.constant 0 : index
    %41 = vector.load %arg5[%c0_15, %c0_16, %c0_17] : memref<9x128x128xf32, #tpu.memory_space<vmem>>, vector<1x128x128xf32>
    %42 = vector.shape_cast %41 : vector<1x128x128xf32> to vector<128x128xf32>
    %cst_18 = arith.constant dense<0.000000e+00> : vector<128x128xf32>
    %43 = tpu.matmul %40, %42, %cst_18 {dimension_numbers = #tpu.dot_dimension_numbers<[1], [0], [0], [1], [0, 0, 1, 1], [], []>} : vector<128x128xf32>, vector<128x128xf32>, vector<128x128xf32> -> vector<128x128xf32>
    %44 = arith.addf %37, %43 : vector<128x128xf32>
    %45 = vector.extract_strided_slice %38 {offsets = [1, 0, 0], sizes = [8, 16, 128], strides = [1, 1, 1]} : vector<10x16x128xf32> to vector<8x16x128xf32>
    %46 = vector.shape_cast %45 : vector<8x16x128xf32> to vector<128x128xf32>
    %c3 = arith.constant 3 : index
    %c0_19 = arith.constant 0 : index
    %c0_20 = arith.constant 0 : index
    %47 = vector.load %arg5[%c3, %c0_19, %c0_20] : memref<9x128x128xf32, #tpu.memory_space<vmem>>, vector<1x128x128xf32>
    %48 = vector.shape_cast %47 : vector<1x128x128xf32> to vector<128x128xf32>
    %cst_21 = arith.constant dense<0.000000e+00> : vector<128x128xf32>
    %49 = tpu.matmul %46, %48, %cst_21 {dimension_numbers = #tpu.dot_dimension_numbers<[1], [0], [0], [1], [0, 0, 1, 1], [], []>} : vector<128x128xf32>, vector<128x128xf32>, vector<128x128xf32> -> vector<128x128xf32>
    %50 = arith.addf %44, %49 : vector<128x128xf32>
    %51 = vector.extract_strided_slice %38 {offsets = [2, 0, 0], sizes = [8, 16, 128], strides = [1, 1, 1]} : vector<10x16x128xf32> to vector<8x16x128xf32>
    %52 = vector.shape_cast %51 : vector<8x16x128xf32> to vector<128x128xf32>
    %c6 = arith.constant 6 : index
    %c0_22 = arith.constant 0 : index
    %c0_23 = arith.constant 0 : index
    %53 = vector.load %arg5[%c6, %c0_22, %c0_23] : memref<9x128x128xf32, #tpu.memory_space<vmem>>, vector<1x128x128xf32>
    %54 = vector.shape_cast %53 : vector<1x128x128xf32> to vector<128x128xf32>
    %cst_24 = arith.constant dense<0.000000e+00> : vector<128x128xf32>
    %55 = tpu.matmul %52, %54, %cst_24 {dimension_numbers = #tpu.dot_dimension_numbers<[1], [0], [0], [1], [0, 0, 1, 1], [], []>} : vector<128x128xf32>, vector<128x128xf32>, vector<128x128xf32> -> vector<128x128xf32>
    %56 = arith.addf %50, %55 : vector<128x128xf32>
    %57 = vector.extract_strided_slice %36 {offsets = [0, 1, 0], sizes = [10, 16, 128], strides = [1, 1, 1]} : vector<10x18x128xf32> to vector<10x16x128xf32>
    %58 = vector.extract_strided_slice %57 {offsets = [0, 0, 0], sizes = [8, 16, 128], strides = [1, 1, 1]} : vector<10x16x128xf32> to vector<8x16x128xf32>
    %59 = vector.shape_cast %58 : vector<8x16x128xf32> to vector<128x128xf32>
    %c1 = arith.constant 1 : index
    %c0_25 = arith.constant 0 : index
    %c0_26 = arith.constant 0 : index
    %60 = vector.load %arg5[%c1, %c0_25, %c0_26] : memref<9x128x128xf32, #tpu.memory_space<vmem>>, vector<1x128x128xf32>
    %61 = vector.shape_cast %60 : vector<1x128x128xf32> to vector<128x128xf32>
    %cst_27 = arith.constant dense<0.000000e+00> : vector<128x128xf32>
    %62 = tpu.matmul %59, %61, %cst_27 {dimension_numbers = #tpu.dot_dimension_numbers<[1], [0], [0], [1], [0, 0, 1, 1], [], []>} : vector<128x128xf32>, vector<128x128xf32>, vector<128x128xf32> -> vector<128x128xf32>
    %63 = arith.addf %56, %62 : vector<128x128xf32>
    %64 = vector.extract_strided_slice %57 {offsets = [1, 0, 0], sizes = [8, 16, 128], strides = [1, 1, 1]} : vector<10x16x128xf32> to vector<8x16x128xf32>
    %65 = vector.shape_cast %64 : vector<8x16x128xf32> to vector<128x128xf32>
    %c4 = arith.constant 4 : index
    %c0_28 = arith.constant 0 : index
    %c0_29 = arith.constant 0 : index
    %66 = vector.load %arg5[%c4, %c0_28, %c0_29] : memref<9x128x128xf32, #tpu.memory_space<vmem>>, vector<1x128x128xf32>
    %67 = vector.shape_cast %66 : vector<1x128x128xf32> to vector<128x128xf32>
    %cst_30 = arith.constant dense<0.000000e+00> : vector<128x128xf32>
    %68 = tpu.matmul %65, %67, %cst_30 {dimension_numbers = #tpu.dot_dimension_numbers<[1], [0], [0], [1], [0, 0, 1, 1], [], []>} : vector<128x128xf32>, vector<128x128xf32>, vector<128x128xf32> -> vector<128x128xf32>
    %69 = arith.addf %63, %68 : vector<128x128xf32>
    %70 = vector.extract_strided_slice %57 {offsets = [2, 0, 0], sizes = [8, 16, 128], strides = [1, 1, 1]} : vector<10x16x128xf32> to vector<8x16x128xf32>
    %71 = vector.shape_cast %70 : vector<8x16x128xf32> to vector<128x128xf32>
    %c7 = arith.constant 7 : index
    %c0_31 = arith.constant 0 : index
    %c0_32 = arith.constant 0 : index
    %72 = vector.load %arg5[%c7, %c0_31, %c0_32] : memref<9x128x128xf32, #tpu.memory_space<vmem>>, vector<1x128x128xf32>
    %73 = vector.shape_cast %72 : vector<1x128x128xf32> to vector<128x128xf32>
    %cst_33 = arith.constant dense<0.000000e+00> : vector<128x128xf32>
    %74 = tpu.matmul %71, %73, %cst_33 {dimension_numbers = #tpu.dot_dimension_numbers<[1], [0], [0], [1], [0, 0, 1, 1], [], []>} : vector<128x128xf32>, vector<128x128xf32>, vector<128x128xf32> -> vector<128x128xf32>
    %75 = arith.addf %69, %74 : vector<128x128xf32>
    %76 = vector.extract_strided_slice %36 {offsets = [0, 2, 0], sizes = [10, 16, 128], strides = [1, 1, 1]} : vector<10x18x128xf32> to vector<10x16x128xf32>
    %77 = vector.extract_strided_slice %76 {offsets = [0, 0, 0], sizes = [8, 16, 128], strides = [1, 1, 1]} : vector<10x16x128xf32> to vector<8x16x128xf32>
    %78 = vector.shape_cast %77 : vector<8x16x128xf32> to vector<128x128xf32>
    %c2 = arith.constant 2 : index
    %c0_34 = arith.constant 0 : index
    %c0_35 = arith.constant 0 : index
    %79 = vector.load %arg5[%c2, %c0_34, %c0_35] : memref<9x128x128xf32, #tpu.memory_space<vmem>>, vector<1x128x128xf32>
    %80 = vector.shape_cast %79 : vector<1x128x128xf32> to vector<128x128xf32>
    %cst_36 = arith.constant dense<0.000000e+00> : vector<128x128xf32>
    %81 = tpu.matmul %78, %80, %cst_36 {dimension_numbers = #tpu.dot_dimension_numbers<[1], [0], [0], [1], [0, 0, 1, 1], [], []>} : vector<128x128xf32>, vector<128x128xf32>, vector<128x128xf32> -> vector<128x128xf32>
    %82 = arith.addf %75, %81 : vector<128x128xf32>
    %83 = vector.extract_strided_slice %76 {offsets = [1, 0, 0], sizes = [8, 16, 128], strides = [1, 1, 1]} : vector<10x16x128xf32> to vector<8x16x128xf32>
    %84 = vector.shape_cast %83 : vector<8x16x128xf32> to vector<128x128xf32>
    %c5 = arith.constant 5 : index
    %c0_37 = arith.constant 0 : index
    %c0_38 = arith.constant 0 : index
    %85 = vector.load %arg5[%c5, %c0_37, %c0_38] : memref<9x128x128xf32, #tpu.memory_space<vmem>>, vector<1x128x128xf32>
    %86 = vector.shape_cast %85 : vector<1x128x128xf32> to vector<128x128xf32>
    %cst_39 = arith.constant dense<0.000000e+00> : vector<128x128xf32>
    %87 = tpu.matmul %84, %86, %cst_39 {dimension_numbers = #tpu.dot_dimension_numbers<[1], [0], [0], [1], [0, 0, 1, 1], [], []>} : vector<128x128xf32>, vector<128x128xf32>, vector<128x128xf32> -> vector<128x128xf32>
    %88 = arith.addf %82, %87 : vector<128x128xf32>
    %89 = vector.extract_strided_slice %76 {offsets = [2, 0, 0], sizes = [8, 16, 128], strides = [1, 1, 1]} : vector<10x16x128xf32> to vector<8x16x128xf32>
    %90 = vector.shape_cast %89 : vector<8x16x128xf32> to vector<128x128xf32>
    %c8 = arith.constant 8 : index
    %c0_40 = arith.constant 0 : index
    %c0_41 = arith.constant 0 : index
    %91 = vector.load %arg5[%c8, %c0_40, %c0_41] : memref<9x128x128xf32, #tpu.memory_space<vmem>>, vector<1x128x128xf32>
    %92 = vector.shape_cast %91 : vector<1x128x128xf32> to vector<128x128xf32>
    %cst_42 = arith.constant dense<0.000000e+00> : vector<128x128xf32>
    %93 = tpu.matmul %90, %92, %cst_42 {dimension_numbers = #tpu.dot_dimension_numbers<[1], [0], [0], [1], [0, 0, 1, 1], [], []>} : vector<128x128xf32>, vector<128x128xf32>, vector<128x128xf32> -> vector<128x128xf32>
    %94 = arith.addf %88, %93 : vector<128x128xf32>
    %c0_43 = arith.constant 0 : index
    %c0_44 = arith.constant 0 : index
    %95 = vector.load %arg6[%c0_43, %c0_44] : memref<1x128xf32, #tpu.memory_space<vmem>>, vector<1x128xf32>
    %96 = vector.broadcast %95 : vector<1x128xf32> to vector<128x128xf32>
    %97 = arith.addf %94, %96 : vector<128x128xf32>
    %98 = vector.shape_cast %97 : vector<128x128xf32> to vector<1x8x16x128xf32>
    %c0_45 = arith.constant 0 : index
    %c0_46 = arith.constant 0 : index
    %c0_47 = arith.constant 0 : index
    %c0_48 = arith.constant 0 : index
    %99 = vector.load %arg7[%c0_45, %c0_46, %c0_47, %c0_48] : memref<1x8x16x128xf32, #tpu.memory_space<vmem>>, vector<1x8x16x128xf32>
    tpu.vector_store %arg7[%c0_45, %c0_46, %c0_47, %c0_48], %98 {strides = array<i32>} : memref<1x8x16x128xf32, #tpu.memory_space<vmem>>, vector<1x8x16x128xf32>,
    return
  }
  func.func @transform_1(%arg0: i32, %arg1: i32) -> (i32, i32) {
    %c0_i32 = arith.constant 0 : i32
    %c0_i32_0 = arith.constant 0 : i32
    %c0_i32_1 = arith.constant 0 : i32
    return %c0_i32, %c0_i32_0 : i32, i32
  }
  func.func @transform_2(%arg0: i32, %arg1: i32) -> (i32, i32) {
    %c0_i32 = arith.constant 0 : i32
    %c0_i32_0 = arith.constant 0 : i32
    %c0_i32_1 = arith.constant 0 : i32
    return %c0_i32, %c0_i32_0 : i32, i32
  }
  func.func @transform_3(%arg0: i32, %arg1: i32) -> (i32, i32, i32) {
    %c0_i32 = arith.constant 0 : i32
    %c0_i32_0 = arith.constant 0 : i32
    %c0_i32_1 = arith.constant 0 : i32
    %c0_i32_2 = arith.constant 0 : i32
    return %c0_i32, %c0_i32_0, %c0_i32_1 : i32, i32, i32
  }
  func.func @transform_4(%arg0: i32, %arg1: i32) -> (i32, i32) {
    %c0_i32 = arith.constant 0 : i32
    %c0_i32_0 = arith.constant 0 : i32
    %c0_i32_1 = arith.constant 0 : i32
    return %c0_i32, %c0_i32_0 : i32, i32
  }
  func.func @transform_5(%arg0: i32, %arg1: i32) -> (i32, i32, i32, i32) {
    %c0_i32 = arith.constant 0 : i32
    %c0_i32_0 = arith.constant 0 : i32
    %c0_i32_1 = arith.constant 0 : i32
    return %arg0, %arg1, %c0_i32, %c0_i32_0 : i32, i32, i32, i32
  }
}

</mosaic_0001>

<llo_original>
// kernel: decoder_block_pallas.4
$region0: #{decoder_block_pallas.4}
  #allocation0 [shape = 'u32[]', space=smem, size = 0x4, offset = 0x4, fixed_abs, tag = 'smem constant byte address 0x4 - core index']
  #allocation1 [shape = 'u32[144,128]{1,0:T(1,128)}', space=vmem, size = 0x12000, scoped, tag = 'internal scratch']
  #allocation2 [shape = 'f32[16,128]{1,0:T(8,128)}', space=vmem, size = 0x2000, scoped, tag = 'scratch operand']
  %s0 = inlined_call_operand.vmem [shape: f32[512,128], index: 0, kind: input, shape index: {}]
  %s1 = inlined_call_operand.vmem [shape: f32[2,2,128], index: 1, kind: output, shape index: {}]
  %s2 = sld [smem:[#allocation0]]
  $region45: #{decoder_block_pallas.4} parent=0
    _
  %s4 = ssub.s32 1, %s2
  %s5 = scalar_select 0, %s4, %s2
  loop: start=0, step=1, limit=4
  $region2: #{decoder_block_pallas.4} parent=0 // loop_pre_header
    _
  $region3: #{decoder_block_pallas.4} parent=0 // loop_header
    %s7 = sphi 0, %s11
    %p8 = scmp.ge.s32.totalorder %s7, 4
    %s14 = sphi 0, %s26
    %s15 = sphi 0, %s22
    %s16 = sphi 0, %s14
    %s17 = sphi 0, %s15
    %s18 = sphi 0, %s16
    %s19 = sphi 0, %s17
    %s31 = sphi 0, %s33
    %s34 = sphi 0, %s31
    %s35 = sphi 0, %s34
    %s51 = sphi 0, %s35
    %s57 = sphi 0, %s59
    %s60 = sphi 0, %s57
    %s61 = sphi 0, %s60
    %s77 = sphi 0, %s61
  $region4: #{decoder_block_pallas.4} parent=0 // loop_header_branch
    %10 = sbr.rel (%p8) target = $region8
  $region5: #{decoder_block_pallas.4} parent=0 // loop_body
    %s12 = ssub.s32 %s7, 1
    %s13 = ssub.s32 %s7, 2
    %s20 = sadd.s32 1, %s15
    %p21 = scmp.ge.s32.totalorder %s20, 1
    %s22 = scalar_select %p21, 0, %s20
    %s23 = sadd.s32 1, %s14
    %s24 = scalar_select %p21, %s23, %s14
    %p25 = scmp.ge.s32.totalorder %s24, 2
    %s26 = scalar_select %p25, 0, %s24
    %s27 = sadd.s32 %s14, %s15
    %s28 = sadd.s32 %s26, %s22
    %s29 = ssub.s32 %s27, %s28
    %p30 = scmp.eq.s32.totalorder %s29, 0
    %s32 = sadd.s32 %s31, 1
    %s33 = scalar_select %p30, %s31, %s32
    %p36 = pneg %p30
    %p37 = scmp.eq.s32.totalorder %s7, 1
    %p38 = por %p36, %p37
    %p39 = scmp.ne.s32.totalorder %s31, %s34
    %p40 = scmp.eq.s32.totalorder %s7, 0
    %p41 = por %p39, %p40
    %p42 = scmp.ne.s32.totalorder %s31, %s34
    %p43 = scmp.eq.s32.totalorder %s12, 1
    %p44 = por %p42, %p43
    %p45 = scmp.ne.s32.totalorder %s34, %s35
    %p46 = scmp.eq.s32.totalorder %s12, 0
    %p47 = por %p45, %p46
    %p48 = scmp.ne.s32.totalorder %s34, %s35
    %p49 = scmp.eq.s32.totalorder %s13, 1
    %p50 = por %p48, %p49
    %p52 = scmp.ne.s32.totalorder %s35, %s51
    %p53 = scmp.eq.s32.totalorder %s13, 0
    %p54 = por %p52, %p53
    %s55 = ssub.s32 %s14, %s26
    %p56 = scmp.eq.s32.totalorder %s55, 0
    %s58 = sadd.s32 %s57, 1
    %s59 = scalar_select %p56, %s57, %s58
    %p62 = pneg %p56
    %p63 = scmp.eq.s32.totalorder %s7, 1
    %p64 = por %p62, %p63
    %p65 = scmp.ne.s32.totalorder %s57, %s60
    %p66 = scmp.eq.s32.totalorder %s7, 0
    %p67 = por %p65, %p66
    %p68 = scmp.ne.s32.totalorder %s57, %s60
    %p69 = scmp.eq.s32.totalorder %s12, 1
    %p70 = por %p68, %p69
    %p71 = scmp.ne.s32.totalorder %s60, %s61
    %p72 = scmp.eq.s32.totalorder %s12, 0
    %p73 = por %p71, %p72
    %p74 = scmp.ne.s32.totalorder %s60, %s61
    %p75 = scmp.eq.s32.totalorder %s13, 1
    %p76 = por %p74, %p75
    %p78 = scmp.ne.s32.totalorder %s61, %s77
    %p79 = scmp.eq.s32.totalorder %s13, 0
    %p80 = por %p78, %p79
    %p81 = scmp.le.s32.totalorder 1, %s7
    %p82 = scmp.lt.s32.totalorder %s7, 3
    %p83 = pnand %p81, %p82
    %p84 = pneg %p83
    // Predicated region
    $region9: #{decoder_block_pallas.4} parent=5 // pred_check
      _
    $region10: #{decoder_block_pallas.4} parent=5 // pred_check_branch
      %86 = sbr.rel (%p83) target = $region12
    $region11: #{decoder_block_pallas.4} parent=5 // pred_region
      %s87 = ssub.s32 %s7, 1
    $region12: #{decoder_block_pallas.4} parent=5 // pred_fallthru
      _
    %p88 = scmp.lt.s32.totalorder %s7, 2
    // Predicated region
    $region13: #{decoder_block_pallas.4} parent=5 // pred_check
      %p89 = pneg %p88
    $region14: #{decoder_block_pallas.4} parent=5 // pred_check_branch
      %91 = sbr.rel (%p89) target = $region16
    $region15: #{decoder_block_pallas.4} parent=5 // pred_region
      // Predicated region
      $region17: #{decoder_block_pallas.4} parent=15 // pred_check
        %p92 = pneg %p41
      $region18: #{decoder_block_pallas.4} parent=15 // pred_check_branch
        %94 = sbr.rel (%p92) target = $region20
      $region19: #{decoder_block_pallas.4} parent=15 // pred_region
        %s95 = sadd.s32 %s14, %s15
        %s96 = smul.u32 32, %s95
        %p97 = scmp.lt.s32.totalorder %s96, 63
        %s98 = scalar_select %p97, %s96, 63
        %s99 = smul.addr %s98, 8
        %s100 = scalar_lea.vmem %s0, %s99
        %s101 = sadd.s32 %s14, %s15
        %s102 = smul.u32 32, %s101
      $region20: #{decoder_block_pallas.4} parent=15 // pred_fallthru
        _
    $region16: #{decoder_block_pallas.4} parent=5 // pred_fallthru
      _
    %p103 = scmp.le.s32.totalorder 1, %s7
    %p104 = scmp.lt.s32.totalorder %s7, 3
    %p105 = pnand %p103, %p104
    %p106 = pneg %p105
    // Predicated region
    $region21: #{decoder_block_pallas.4} parent=5 // pred_check
      _
    $region22: #{decoder_block_pallas.4} parent=5 // pred_check_branch
      %108 = sbr.rel (%p105) target = $region24
    $region23: #{decoder_block_pallas.4} parent=5 // pred_region
      %s109 = ssub.s32 %s7, 1
      %s110 = sadd.s32 %s16, %s17
      %s111 = smul.u32 32, %s110
      %p112 = scmp.lt.s32.totalorder %s111, 63
      %s113 = scalar_select %p112, %s111, 63
      %s114 = smul.addr %s113, 8
      %s115 = scalar_lea.vmem %s0, %s114
      %p116 = pneg %p47
      %p117 = pneg %p44
      %p118 = pneg %p73
      %p119 = pneg %p70
      %p120 = scmp.lt.s32.totalorder %s16, 1
      %s121 = scalar_select %p120, %s16, 1
      %s122 = smul.addr %s121, 2
      %s123 = scalar_lea.vmem %s1, %s122
      %s124 = sadd.s32 %s16, %s17
      %s125 = smul.u32 32, %s124
      %p126 = scmp.lt.s32.totalorder %s125, 63
      %s127 = scalar_select %p126, %s125, 63
      %s128 = smul.addr %s127, 8
      %s129 = scalar_lea.vmem %s0, %s128
      %s130 = sadd.s32 %s16, %s17
      %s131 = smul.u32 32, %s130
      %p132 = scmp.lt.s32.totalorder %s16, 1
      %s133 = scalar_select %p132, %s16, 1
      %s134 = smul.addr %s133, 2
      %s135 = scalar_lea.vmem %s1, %s134
      %p136 = scmp.eq.s32.totalorder %s17, 0
      // Predicated region
      $region25: #{decoder_block_pallas.4} parent=23 // pred_check
        %p137 = pneg %p136
      $region26: #{decoder_block_pallas.4} parent=23 // pred_check_branch
        %139 = sbr.rel (%p137) target = $region28
      $region27: #{decoder_block_pallas.4} parent=23 // pred_region
        %140 = vst [vmem:[#allocation2] sm:$0xff] 0.0
        %141 = vst [vmem:[#allocation2 + $0x8] sm:$0xff] 0.0
      $region28: #{decoder_block_pallas.4} parent=23 // pred_fallthru
        _
      %v142 = vld [vmem:[%s129] sm:$0xff]
      %v143 = vld [vmem:[%s129 + $0x8] sm:$0xff]
      %v144 = vld [vmem:[%s129 + $0x10] sm:$0xff]
      %v145 = vld [vmem:[%s129 + $0x18] sm:$0xff]
      %v146 = vld [vmem:[%s129 + $0x20] sm:$0xff]
      %v147 = vld [vmem:[%s129 + $0x28] sm:$0xff]
      %v148 = vld [vmem:[%s129 + $0x30] sm:$0xff]
      %v149 = vld [vmem:[%s129 + $0x38] sm:$0xff]
      %v150 = vld [vmem:[%s129 + $0x40] sm:$0xff]
      %v151 = vld [vmem:[%s129 + $0x48] sm:$0xff]
      %v152 = vld [vmem:[%s129 + $0x50] sm:$0xff]
      %v153 = vld [vmem:[%s129 + $0x58] sm:$0xff]
      %v154 = vld [vmem:[%s129 + $0x60] sm:$0xff]
      %v155 = vld [vmem:[%s129 + $0x68] sm:$0xff]
      %v156 = vld [vmem:[%s129 + $0x70] sm:$0xff]
      %v157 = vld [vmem:[%s129 + $0x78] sm:$0xff]
      %v158 = vld [vmem:[%s129 + $0x80] sm:$0xff]
      %v159 = vld [vmem:[%s129 + $0x88] sm:$0xff]
      %v160 = vld [vmem:[%s129 + $0x90] sm:$0xff]
      %v161 = vld [vmem:[%s129 + $0x98] sm:$0xff]
      %v162 = vld [vmem:[%s129 + $0xa0] sm:$0xff]
      %v163 = vld [vmem:[%s129 + $0xa8] sm:$0xff]
      %v164 = vld [vmem:[%s129 + $0xb0] sm:$0xff]
      %v165 = vld [vmem:[%s129 + $0xb8] sm:$0xff]
      %v166 = vld [vmem:[%s129 + $0xc0] sm:$0xff]
      %v167 = vld [vmem:[%s129 + $0xc8] sm:$0xff]
      %v168 = vld [vmem:[%s129 + $0xd0] sm:$0xff]
      %v169 = vld [vmem:[%s129 + $0xd8] sm:$0xff]
      %v170 = vld [vmem:[%s129 + $0xe0] sm:$0xff]
      %v171 = vld [vmem:[%s129 + $0xe8] sm:$0xff]
      %v172 = vld [vmem:[%s129 + $0xf0] sm:$0xff]
      %v173 = vld [vmem:[%s129 + $0xf8] sm:$0xff]
      %v174 = vld [vmem:[#allocation2] sm:$0xff]
      %v175 = vadd.f32 %v142, %v143
      %v176 = vadd.f32 %v175, %v144
      %v177 = vadd.f32 %v176, %v145
      %v178 = vadd.f32 %v177, %v146
      %v179 = vadd.f32 %v178, %v147
      %v180 = vadd.f32 %v179, %v148
      %v181 = vadd.f32 %v180, %v149
      %v182 = vadd.f32 %v181, %v150
      %v183 = vadd.f32 %v182, %v151
      %v184 = vadd.f32 %v183, %v152
      %v185 = vadd.f32 %v184, %v153
      %v186 = vadd.f32 %v185, %v154
      %v187 = vadd.f32 %v186, %v155
      %v188 = vadd.f32 %v187, %v156
      %v189 = vadd.f32 %v188, %v157
      %v190 = vadd.f32 %v189, %v158
      %v191 = vadd.f32 %v190, %v159
      %v192 = vadd.f32 %v191, %v160
      %v193 = vadd.f32 %v192, %v161
      %v194 = vadd.f32 %v193, %v162
      %v195 = vadd.f32 %v194, %v163
      %v196 = vadd.f32 %v195, %v164
      %v197 = vadd.f32 %v196, %v165
      %v198 = vadd.f32 %v197, %v166
      %v199 = vadd.f32 %v198, %v167
      %v200 = vadd.f32 %v199, %v168
      %v201 = vadd.f32 %v200, %v169
      %v202 = vadd.f32 %v201, %v170
      %v203 = vadd.f32 %v202, %v171
      %v204 = vadd.f32 %v203, %v172
      %v205 = vadd.f32 %v204, %v173
      %v206 = vadd.f32 %v174, %v205
      %207 = vst [vmem:[#allocation2] sm:$0xff] %v206
      %v208 = vld [vmem:[#allocation2 + $0x8] sm:$0xff]
      %v209 = vmul.f32 %v142, %v142
      %v210 = vmul.f32 %v143, %v143
      %v211 = vmul.f32 %v144, %v144
      %v212 = vmul.f32 %v145, %v145
      %v213 = vmul.f32 %v146, %v146
      %v214 = vmul.f32 %v147, %v147
      %v215 = vmul.f32 %v148, %v148
      %v216 = vmul.f32 %v149, %v149
      %v217 = vmul.f32 %v150, %v150
      %v218 = vmul.f32 %v151, %v151
      %v219 = vmul.f32 %v152, %v152
      %v220 = vmul.f32 %v153, %v153
      %v221 = vmul.f32 %v154, %v154
      %v222 = vmul.f32 %v155, %v155
      %v223 = vmul.f32 %v156, %v156
      %v224 = vmul.f32 %v157, %v157
      %v225 = vmul.f32 %v158, %v158
      %v226 = vmul.f32 %v159, %v159
      %v227 = vmul.f32 %v160, %v160
      %v228 = vmul.f32 %v161, %v161
      %v229 = vmul.f32 %v162, %v162
      %v230 = vmul.f32 %v163, %v163
      %v231 = vmul.f32 %v164, %v164
      %v232 = vmul.f32 %v165, %v165
      %v233 = vmul.f32 %v166, %v166
      %v234 = vmul.f32 %v167, %v167
      %v235 = vmul.f32 %v168, %v168
      %v236 = vmul.f32 %v169, %v169
      %v237 = vmul.f32 %v170, %v170
      %v238 = vmul.f32 %v171, %v171
      %v239 = vmul.f32 %v172, %v172
      %v240 = vmul.f32 %v173, %v173
      %v241 = vadd.f32 %v209, %v210
      %v242 = vadd.f32 %v241, %v211
      %v243 = vadd.f32 %v242, %v212
      %v244 = vadd.f32 %v243, %v213
      %v245 = vadd.f32 %v244, %v214
      %v246 = vadd.f32 %v245, %v215
      %v247 = vadd.f32 %v246, %v216
      %v248 = vadd.f32 %v247, %v217
      %v249 = vadd.f32 %v248, %v218
      %v250 = vadd.f32 %v249, %v219
      %v251 = vadd.f32 %v250, %v220
      %v252 = vadd.f32 %v251, %v221
      %v253 = vadd.f32 %v252, %v222
      %v254 = vadd.f32 %v253, %v223
      %v255 = vadd.f32 %v254, %v224
      %v256 = vadd.f32 %v255, %v225
      %v257 = vadd.f32 %v256, %v226
      %v258 = vadd.f32 %v257, %v227
      %v259 = vadd.f32 %v258, %v228
      %v260 = vadd.f32 %v259, %v229
      %v261 = vadd.f32 %v260, %v230
      %v262 = vadd.f32 %v261, %v231
      %v263 = vadd.f32 %v262, %v232
      %v264 = vadd.f32 %v263, %v233
      %v265 = vadd.f32 %v264, %v234
      %v266 = vadd.f32 %v265, %v235
      %v267 = vadd.f32 %v266, %v236
      %v268 = vadd.f32 %v267, %v237
      %v269 = vadd.f32 %v268, %v238
      %v270 = vadd.f32 %v269, %v239
      %v271 = vadd.f32 %v270, %v240
      %v272 = vadd.f32 %v208, %v271
      %273 = vst [vmem:[#allocation2 + $0x8] sm:$0xff] %v272
      // Predicated region
      $region29: #{decoder_block_pallas.4} parent=23 // pred_check
        %p274 = pneg %p136
      $region30: #{decoder_block_pallas.4} parent=23 // pred_check_branch
        %276 = sbr.rel (%p274) target = $region32
      $region31: #{decoder_block_pallas.4} parent=23 // pred_region
        %v277 = vld [vmem:[#allocation2] sm:$0xff]
        %v278 = vrot.slane %v277, 4
        %v279 = vadd.f32 %v277, %v278
        %v280 = vrot.slane %v279, 2
        %v281 = vadd.f32 %v279, %v280
        %v282 = vrot.slane %v281, 1
        %v283 = vadd.f32 %v281, %v282
        %v284 = vld [vmem:[#allocation2 + $0x8] sm:$0xff]
        %v285 = vrot.slane %v284, 4
        %v286 = vadd.f32 %v284, %v285
        %v287 = vrot.slane %v286, 2
        %v288 = vadd.f32 %v286, %v287
        %v289 = vrot.slane %v288, 1
        %v290 = vadd.f32 %v288, %v289
        %vm291 = vcmask 1040384
        %v292 = vsel %vm291, %v283, %v290
        %293 = vst [vmem:[%s135] sm:$0x3] %v292
      $region32: #{decoder_block_pallas.4} parent=23 // pred_fallthru
        _
      %p294 = scmp.lt.s32.totalorder %s16, 1
      %s295 = scalar_select %p294, %s16, 1
      %s296 = smul.addr %s295, 2
      %s297 = scalar_lea.vmem %s1, %s296
      // Predicated region
      $region33: #{decoder_block_pallas.4} parent=23 // pred_check
        %p298 = pneg %p70
      $region34: #{decoder_block_pallas.4} parent=23 // pred_check_branch
        %300 = sbr.rel (%p298) target = $region36
      $region35: #{decoder_block_pallas.4} parent=23 // pred_region
        _
      $region36: #{decoder_block_pallas.4} parent=23 // pred_fallthru
        _
    $region24: #{decoder_block_pallas.4} parent=5 // pred_fallthru
      _
    %p301 = scmp.le.s32.totalorder 2, %s7
    // Predicated region
    $region37: #{decoder_block_pallas.4} parent=5 // pred_check
      %p302 = pneg %p301
    $region38: #{decoder_block_pallas.4} parent=5 // pred_check_branch
      %304 = sbr.rel (%p302) target = $region40
    $region39: #{decoder_block_pallas.4} parent=5 // pred_region
      %s305 = ssub.s32 %s7, 2
      // Predicated region
      $region41: #{decoder_block_pallas.4} parent=39 // pred_check
        %p306 = pneg %p76
      $region42: #{decoder_block_pallas.4} parent=39 // pred_check_branch
        %308 = sbr.rel (%p306) target = $region44
      $region43: #{decoder_block_pallas.4} parent=39 // pred_region
        %p309 = scmp.lt.s32.totalorder %s18, 1
        %s310 = scalar_select %p309, %s18, 1
        %s311 = smul.addr %s310, 2
        %s312 = scalar_lea.vmem %s1, %s311
      $region44: #{decoder_block_pallas.4} parent=39 // pred_fallthru
        _
    $region40: #{decoder_block_pallas.4} parent=5 // pred_fallthru
      _
  $region6: #{decoder_block_pallas.4} parent=0 // loop_footer
    %s11 = sadd.s32 1, %s7
  $region7: #{decoder_block_pallas.4} parent=0 // loop_footer_branch
    %6 = sbr.rel target = $region3
  $region8: #{decoder_block_pallas.4} parent=0 // loop_exit
    _

// kernel: decoder_block_pallas.7
$region0: #{decoder_block_pallas.7}
  #allocation0 [shape = 'u32[]', space=smem, size = 0x4, offset = 0x4, fixed_abs, tag = 'smem constant byte address 0x4 - core index']
  #allocation1 [shape = 'u32[144,128]{1,0:T(1,128)}', space=vmem, size = 0x12000, scoped, tag = 'internal scratch']
  #allocation2 [shape = 'f32[10,18,128]{2,1,0:T(8,128)}', space=vmem, size = 0x1e000, scoped, tag = 'scratch operand']
  #allocation3 [shape = 's32[1]{0}', space=sflag, size = 0x4, scoped, tag = 'scratch operand']
  #allocation4 [shape = 's32[]', space=sflag, size = 0x4, offset = 0, fixed_abs, tag = 'sflag constant byte address 0x0 - dummy sync flag']
  %s0 = inlined_call_operand.vmem [shape: f32[2,18,18,128], index: 0, kind: input, shape index: {}]
  %s1 = inlined_call_operand.vmem [shape: f32[1,128], index: 1, kind: input, shape index: {}]
  %s2 = inlined_call_operand.vmem [shape: f32[1,128], index: 2, kind: input, shape index: {}]
  %s3 = inlined_call_operand.vmem [shape: f32[9,128,128], index: 3, kind: input, shape index: {}]
  %s4 = inlined_call_operand.vmem [shape: f32[1,128], index: 4, kind: input, shape index: {}]
  %s5 = inlined_call_operand.vmem [shape: f32[2,16,16,128], index: 5, kind: input, shape index: {}]
  %s6 = inlined_call_operand.vmem [shape: f32[128,128], index: 6, kind: input, shape index: {}]
  %s7 = inlined_call_operand.vmem [shape: f32[2,16,16,128], index: 7, kind: output, shape index: {}]
  %s8 = sld [smem:[#allocation0]]
  $region94: #{decoder_block_pallas.7} parent=0
    _
  %s10 = ssub.s32 1, %s8
  %s11 = scalar_select 0, %s10, %s8
  loop: start=0, step=1, limit=6
  $region2: #{decoder_block_pallas.7} parent=0 // loop_pre_header
    _
  $region3: #{decoder_block_pallas.7} parent=0 // loop_header
    %s13 = sphi 0, %s17
    %p14 = scmp.ge.s32.totalorder %s13, 6
    %s20 = sphi 0, %s32
    %s21 = sphi 0, %s28
    %s22 = sphi 0, %s20
    %s23 = sphi 0, %s21
    %s24 = sphi 0, %s22
    %s25 = sphi 0, %s23
    %s33 = sphi 0, %s33
    %s35 = sphi 0, %s33
    %s36 = sphi 0, %s35
    %s50 = sphi 0, %s36
    %s54 = sphi 0, %s54
    %s56 = sphi 0, %s54
    %s57 = sphi 0, %s56
    %s71 = sphi 0, %s57
    %s75 = sphi 0, %s75
    %s77 = sphi 0, %s75
    %s78 = sphi 0, %s77
    %s92 = sphi 0, %s78
    %s96 = sphi 0, %s96
    %s98 = sphi 0, %s96
    %s99 = sphi 0, %s98
    %s113 = sphi 0, %s99
    %s121 = sphi 0, %s123
    %s124 = sphi 0, %s121
    %s125 = sphi 0, %s124
    %s141 = sphi 0, %s125
    %s145 = sphi 0, %s145
    %s147 = sphi 0, %s145
    %s148 = sphi 0, %s147
    %s162 = sphi 0, %s148
    %s170 = sphi 0, %s172
    %s173 = sphi 0, %s170
    %s174 = sphi 0, %s173
    %s190 = sphi 0, %s174
  $region4: #{decoder_block_pallas.7} parent=0 // loop_header_branch
    %16 = sbr.rel (%p14) target = $region8
  $region5: #{decoder_block_pallas.7} parent=0 // loop_body
    %s18 = ssub.s32 %s13, 1
    %s19 = ssub.s32 %s13, 2
    %s26 = sadd.s32 1, %s21
    %p27 = scmp.ge.s32.totalorder %s26, 2
    %s28 = scalar_select %p27, 0, %s26
    %s29 = sadd.s32 1, %s20
    %s30 = scalar_select %p27, %s29, %s20
    %p31 = scmp.ge.s32.totalorder %s30, 2
    %s32 = scalar_select %p31, 0, %s30
    %s34 = sadd.s32 %s33, 1
    %p37 = scmp.eq.s32.totalorder %s13, 3
    %p38 = scmp.ne.s32.totalorder %s33, %s35
    %p39 = scmp.eq.s32.totalorder %s13, 0
    %p40 = por %p38, %p39
    %p41 = scmp.ne.s32.totalorder %s33, %s35
    %p42 = scmp.eq.s32.totalorder %s18, 3
    %p43 = por %p41, %p42
    %p44 = scmp.ne.s32.totalorder %s35, %s36
    %p45 = scmp.eq.s32.totalorder %s18, 0
    %p46 = por %p44, %p45
    %p47 = scmp.ne.s32.totalorder %s35, %s36
    %p48 = scmp.eq.s32.totalorder %s19, 3
    %p49 = por %p47, %p48
    %p51 = scmp.ne.s32.totalorder %s36, %s50
    %p52 = scmp.eq.s32.totalorder %s19, 0
    %p53 = por %p51, %p52
    %s55 = sadd.s32 %s54, 1
    %p58 = scmp.eq.s32.totalorder %s13, 3
    %p59 = scmp.ne.s32.totalorder %s54, %s56
    %p60 = scmp.eq.s32.totalorder %s13, 0
    %p61 = por %p59, %p60
    %p62 = scmp.ne.s32.totalorder %s54, %s56
    %p63 = scmp.eq.s32.totalorder %s18, 3
    %p64 = por %p62, %p63
    %p65 = scmp.ne.s32.totalorder %s56, %s57
    %p66 = scmp.eq.s32.totalorder %s18, 0
    %p67 = por %p65, %p66
    %p68 = scmp.ne.s32.totalorder %s56, %s57
    %p69 = scmp.eq.s32.totalorder %s19, 3
    %p70 = por %p68, %p69
    %p72 = scmp.ne.s32.totalorder %s57, %s71
    %p73 = scmp.eq.s32.totalorder %s19, 0
    %p74 = por %p72, %p73
    %s76 = sadd.s32 %s75, 1
    %p79 = scmp.eq.s32.totalorder %s13, 3
    %p80 = scmp.ne.s32.totalorder %s75, %s77
    %p81 = scmp.eq.s32.totalorder %s13, 0
    %p82 = por %p80, %p81
    %p83 = scmp.ne.s32.totalorder %s75, %s77
    %p84 = scmp.eq.s32.totalorder %s18, 3
    %p85 = por %p83, %p84
    %p86 = scmp.ne.s32.totalorder %s77, %s78
    %p87 = scmp.eq.s32.totalorder %s18, 0
    %p88 = por %p86, %p87
    %p89 = scmp.ne.s32.totalorder %s77, %s78
    %p90 = scmp.eq.s32.totalorder %s19, 3
    %p91 = por %p89, %p90
    %p93 = scmp.ne.s32.totalorder %s78, %s92
    %p94 = scmp.eq.s32.totalorder %s19, 0
    %p95 = por %p93, %p94
    %s97 = sadd.s32 %s96, 1
    %p100 = scmp.eq.s32.totalorder %s13, 3
    %p101 = scmp.ne.s32.totalorder %s96, %s98
    %p102 = scmp.eq.s32.totalorder %s13, 0
    %p103 = por %p101, %p102
    %p104 = scmp.ne.s32.totalorder %s96, %s98
    %p105 = scmp.eq.s32.totalorder %s18, 3
    %p106 = por %p104, %p105
    %p107 = scmp.ne.s32.totalorder %s98, %s99
    %p108 = scmp.eq.s32.totalorder %s18, 0
    %p109 = por %p107, %p108
    %p110 = scmp.ne.s32.totalorder %s98, %s99
    %p111 = scmp.eq.s32.totalorder %s19, 3
    %p112 = por %p110, %p111
    %p114 = scmp.ne.s32.totalorder %s99, %s113
    %p115 = scmp.eq.s32.totalorder %s19, 0
    %p116 = por %p114, %p115
    %s117 = ssub.s32 %s20, %s32
    %s118 = ssub.s32 %s21, %s28
    %s119 = sor.u32 %s117, %s118
    %p120 = scmp.eq.s32.totalorder %s119, 0
    %s122 = sadd.s32 %s121, 1
    %s123 = scalar_select %p120, %s121, %s122
    %p126 = pneg %p120
    %p127 = scmp.eq.s32.totalorder %s13, 3
    %p128 = por %p126, %p127
    %p129 = scmp.ne.s32.totalorder %s121, %s124
    %p130 = scmp.eq.s32.totalorder %s13, 0
    %p131 = por %p129, %p130
    %p132 = scmp.ne.s32.totalorder %s121, %s124
    %p133 = scmp.eq.s32.totalorder %s18, 3
    %p134 = por %p132, %p133
    %p135 = scmp.ne.s32.totalorder %s124, %s125
    %p136 = scmp.eq.s32.totalorder %s18, 0
    %p137 = por %p135, %p136
    %p138 = scmp.ne.s32.totalorder %s124, %s125
    %p139 = scmp.eq.s32.totalorder %s19, 3
    %p140 = por %p138, %p139
    %p142 = scmp.ne.s32.totalorder %s125, %s141
    %p143 = scmp.eq.s32.totalorder %s19, 0
    %p144 = por %p142, %p143
    %s146 = sadd.s32 %s145, 1
    %p149 = scmp.eq.s32.totalorder %s13, 3
    %p150 = scmp.ne.s32.totalorder %s145, %s147
    %p151 = scmp.eq.s32.totalorder %s13, 0
    %p152 = por %p150, %p151
    %p153 = scmp.ne.s32.totalorder %s145, %s147
    %p154 = scmp.eq.s32.totalorder %s18, 3
    %p155 = por %p153, %p154
    %p156 = scmp.ne.s32.totalorder %s147, %s148
    %p157 = scmp.eq.s32.totalorder %s18, 0
    %p158 = por %p156, %p157
    %p159 = scmp.ne.s32.totalorder %s147, %s148
    %p160 = scmp.eq.s32.totalorder %s19, 3
    %p161 = por %p159, %p160
    %p163 = scmp.ne.s32.totalorder %s148, %s162
    %p164 = scmp.eq.s32.totalorder %s19, 0
    %p165 = por %p163, %p164
    %s166 = ssub.s32 %s20, %s32
    %s167 = ssub.s32 %s21, %s28
    %s168 = sor.u32 %s166, %s167
    %p169 = scmp.eq.s32.totalorder %s168, 0
    %s171 = sadd.s32 %s170, 1
    %s172 = scalar_select %p169, %s170, %s171
    %p175 = pneg %p169
    %p176 = scmp.eq.s32.totalorder %s13, 3
    %p177 = por %p175, %p176
    %p178 = scmp.ne.s32.totalorder %s170, %s173
    %p179 = scmp.eq.s32.totalorder %s13, 0
    %p180 = por %p178, %p179
    %p181 = scmp.ne.s32.totalorder %s170, %s173
    %p182 = scmp.eq.s32.totalorder %s18, 3
    %p183 = por %p181, %p182
    %p184 = scmp.ne.s32.totalorder %s173, %s174
    %p185 = scmp.eq.s32.totalorder %s18, 0
    %p186 = por %p184, %p185
    %p187 = scmp.ne.s32.totalorder %s173, %s174
    %p188 = scmp.eq.s32.totalorder %s19, 3
    %p189 = por %p187, %p188
    %p191 = scmp.ne.s32.totalorder %s174, %s190
    %p192 = scmp.eq.s32.totalorder %s19, 0
    %p193 = por %p191, %p192
    %p194 = scmp.le.s32.totalorder 1, %s13
    %p195 = scmp.lt.s32.totalorder %s13, 5
    %p196 = pnand %p194, %p195
    %p197 = pneg %p196
    // Predicated region
    $region9: #{decoder_block_pallas.7} parent=5 // pred_check
      _
    $region10: #{decoder_block_pallas.7} parent=5 // pred_check_branch
      %199 = sbr.rel (%p196) target = $region12
    $region11: #{decoder_block_pallas.7} parent=5 // pred_region
      %s200 = ssub.s32 %s13, 1
      // Predicated region
      $region13: #{decoder_block_pallas.7} parent=11 // pred_check
        %p201 = pneg %p46
      $region14: #{decoder_block_pallas.7} parent=11 // pred_check_branch
        %203 = sbr.rel (%p201) target = $region16
      $region15: #{decoder_block_pallas.7} parent=11 // pred_region
        _
      $region16: #{decoder_block_pallas.7} parent=11 // pred_fallthru
        _
      // Predicated region
      $region17: #{decoder_block_pallas.7} parent=11 // pred_check
        %p204 = pneg %p67
      $region18: #{decoder_block_pallas.7} parent=11 // pred_check_branch
        %206 = sbr.rel (%p204) target = $region20
      $region19: #{decoder_block_pallas.7} parent=11 // pred_region
        _
      $region20: #{decoder_block_pallas.7} parent=11 // pred_fallthru
        _
      // Predicated region
      $region21: #{decoder_block_pallas.7} parent=11 // pred_check
        %p207 = pneg %p88
      $region22: #{decoder_block_pallas.7} parent=11 // pred_check_branch
        %209 = sbr.rel (%p207) target = $region24
      $region23: #{decoder_block_pallas.7} parent=11 // pred_region
        _
      $region24: #{decoder_block_pallas.7} parent=11 // pred_fallthru
        _
      // Predicated region
      $region25: #{decoder_block_pallas.7} parent=11 // pred_check
        %p210 = pneg %p109
      $region26: #{decoder_block_pallas.7} parent=11 // pred_check_branch
        %212 = sbr.rel (%p210) target = $region28
      $region27: #{decoder_block_pallas.7} parent=11 // pred_region
        _
      $region28: #{decoder_block_pallas.7} parent=11 // pred_fallthru
        _
      // Predicated region
      $region29: #{decoder_block_pallas.7} parent=11 // pred_check
        %p213 = pneg %p158
      $region30: #{decoder_block_pallas.7} parent=11 // pred_check_branch
        %215 = sbr.rel (%p213) target = $region32
      $region31: #{decoder_block_pallas.7} parent=11 // pred_region
        _
      $region32: #{decoder_block_pallas.7} parent=11 // pred_fallthru
        _
    $region12: #{decoder_block_pallas.7} parent=5 // pred_fallthru
      _
    %p216 = scmp.lt.s32.totalorder %s13, 4
    // Predicated region
    $region33: #{decoder_block_pallas.7} parent=5 // pred_check
      %p217 = pneg %p216
    $region34: #{decoder_block_pallas.7} parent=5 // pred_check_branch
      %219 = sbr.rel (%p217) target = $region36
    $region35: #{decoder_block_pallas.7} parent=5 // pred_region
      // Predicated region
      $region37: #{decoder_block_pallas.7} parent=35 // pred_check
        %p220 = pneg %p131
      $region38: #{decoder_block_pallas.7} parent=35 // pred_check_branch
        %222 = sbr.rel (%p220) target = $region40
      $region39: #{decoder_block_pallas.7} parent=35 // pred_region
        %s223 = smul.u32 8, %s21
        %p224 = scmp.lt.s32.totalorder %s20, 1
        %s225 = scalar_select %p224, %s20, 1
        %p226 = scmp.lt.s32.totalorder %s223, 15
        %s227 = scalar_select %p226, %s223, 15
        %s228 = smul.addr %s227, 2
        %s229 = smul.addr %s225, 32
        %s230 = sadd.s32 %s228, %s229
        %s231 = smul.addr %s230, 8
        %s232 = scalar_lea.vmem %s5, %s231
        %s233 = smul.u32 8, %s21
      $region40: #{decoder_block_pallas.7} parent=35 // pred_fallthru
        _
    $region36: #{decoder_block_pallas.7} parent=5 // pred_fallthru
      _
    %p234 = scmp.le.s32.totalorder 1, %s13
    %p235 = scmp.lt.s32.totalorder %s13, 5
    %p236 = pnand %p234, %p235
    %p237 = pneg %p236
    // Predicated region
    $region41: #{decoder_block_pallas.7} parent=5 // pred_check
      _
    $region42: #{decoder_block_pallas.7} parent=5 // pred_check_branch
      %239 = sbr.rel (%p236) target = $region44
    $region43: #{decoder_block_pallas.7} parent=5 // pred_region
      %s240 = ssub.s32 %s13, 1
      %p241 = pneg %p46
      %p242 = pneg %p43
      %p243 = pneg %p67
      %p244 = pneg %p64
      %p245 = pneg %p88
      %p246 = pneg %p85
      %p247 = pneg %p109
      %p248 = pneg %p106
      %s249 = smul.u32 8, %s23
      %p250 = scmp.lt.s32.totalorder %s22, 1
      %s251 = scalar_select %p250, %s22, 1
      %p252 = scmp.lt.s32.totalorder %s249, 15
      %s253 = scalar_select %p252, %s249, 15
      %s254 = smul.addr %s253, 2
      %s255 = smul.addr %s251, 32
      %s256 = sadd.s32 %s254, %s255
      %s257 = smul.addr %s256, 8
      %s258 = scalar_lea.vmem %s5, %s257
      %p259 = pneg %p137
      %p260 = pneg %p134
      %p261 = pneg %p158
      %p262 = pneg %p155
      %p263 = pneg %p186
      %p264 = pneg %p183
      %s265 = smul.u32 8, %s23
      %p266 = scmp.lt.s32.totalorder %s22, 1
      %s267 = scalar_select %p266, %s22, 1
      %p268 = scmp.lt.s32.totalorder %s265, 15
      %s269 = scalar_select %p268, %s265, 15
      %s270 = smul.addr %s269, 2
      %s271 = smul.addr %s267, 32
      %s272 = sadd.s32 %s270, %s271
      %s273 = smul.addr %s272, 8
      %s274 = scalar_lea.vmem %s7, %s273
      %s275 = smul.u32 8, %s23
      %p276 = scmp.lt.s32.totalorder %s22, 1
      %s277 = scalar_select %p276, %s22, 1
      %p278 = scmp.lt.s32.totalorder %s275, 15
      %s279 = scalar_select %p278, %s275, 15
      %s280 = smul.addr %s279, 2
      %s281 = smul.addr %s277, 32
      %s282 = sadd.s32 %s280, %s281
      %s283 = smul.addr %s282, 8
      %s284 = scalar_lea.vmem %s5, %s283
      %s285 = smul.u32 8, %s23
      %s286 = smul.u32 8, %s23
      %p287 = scmp.lt.s32.totalorder %s22, 1
      %s288 = scalar_select %p287, %s22, 1
      %p289 = scmp.lt.s32.totalorder %s286, 15
      %s290 = scalar_select %p289, %s286, 15
      %s291 = smul.addr %s290, 2
      %s292 = smul.addr %s288, 32
      %s293 = sadd.s32 %s291, %s292
      %s294 = smul.addr %s293, 8
      %s295 = scalar_lea.vmem %s7, %s294
      %s296 = smul.u32 8, %s23
      %s297 = smul.u32 %s23, 8
      %s298 = smul.u32 %s297, 24
      %s299 = smul.u32 %s22, 432
      %s300 = sadd.s32 %s298, %s299
      %s301 = scalar_lea.vmem %s0, %s300
      %p303 = scmp.lt.u32.totalorder 18, 8
      %p304 = pneg %p303
      // Predicated region
      $region45: #{decoder_block_pallas.7} parent=43 // pred_check
        _
      $region46: #{decoder_block_pallas.7} parent=43 // pred_check_branch
        %306 = sbr.rel (%p303) target = $region48
      $region47: #{decoder_block_pallas.7} parent=43 // pred_region
        %s340 = sand.u32 18, 7
        %p341 = scmp.eq.s32.totalorder %s340, 0
        %p342 = pneg %p341
        // Predicated region
        $region60: #{decoder_block_pallas.7} parent=47 // pred_check
          _
        $region61: #{decoder_block_pallas.7} parent=47 // pred_check_branch
          %344 = sbr.rel (%p341) target = $region63
        $region62: #{decoder_block_pallas.7} parent=47 // pred_region
          %s345 = sand.u32 18, 7
          %s346 = ssub.s32 18, %s345
          %s347 = scalar_lea.vmem %s301, %s346
          %s348 = ssub.s32 18, %s345
          %s349 = scalar_lea.vmem [#allocation2], %s348
          loop: start=0, step=1, limit=1
          $region64: #{decoder_block_pallas.7} parent=62 // loop_pre_header
            _
          $region65: #{decoder_block_pallas.7} parent=62 // loop_header
            %s351 = sphi 0, %s355
            %p352 = scmp.ge.s32.totalorder %s351, 1
            %s356 = sphi %s301, %s301
            %s357 = sphi [#allocation2], [#allocation2]
          $region66: #{decoder_block_pallas.7} parent=62 // loop_header_branch
            %354 = sbr.rel (%p352) target = $region70
          $region67: #{decoder_block_pallas.7} parent=62 // loop_body
            %v358 = vld [vmem:[%s356] sm:$0xff]
            %359 = vst [vmem:[%s357] sm:$0xff] %v358
            %v360 = vld [vmem:[%s356 + $0x8] sm:$0xff]
            %361 = vst [vmem:[%s357 + $0x8] sm:$0xff] %v360
            %v362 = vld [vmem:[%s356 + $0x18] sm:$0xff]
            %363 = vst [vmem:[%s357 + $0x18] sm:$0xff] %v362
            %v364 = vld [vmem:[%s356 + $0x20] sm:$0xff]
            %365 = vst [vmem:[%s357 + $0x20] sm:$0xff] %v364
            %v366 = vld [vmem:[%s356 + $0x30] sm:$0xff]
            %367 = vst [vmem:[%s357 + $0x30] sm:$0xff] %v366
            %v368 = vld [vmem:[%s356 + $0x38] sm:$0xff]
            %369 = vst [vmem:[%s357 + $0x38] sm:$0xff] %v368
            %v370 = vld [vmem:[%s356 + $0x48] sm:$0xff]
            %371 = vst [vmem:[%s357 + $0x48] sm:$0xff] %v370
            %v372 = vld [vmem:[%s356 + $0x50] sm:$0xff]
            %373 = vst [vmem:[%s357 + $0x50] sm:$0xff] %v372
            %v374 = vld [vmem:[%s356 + $0x60] sm:$0xff]
            %375 = vst [vmem:[%s357 + $0x60] sm:$0xff] %v374
            %v376 = vld [vmem:[%s356 + $0x68] sm:$0xff]
            %377 = vst [vmem:[%s357 + $0x68] sm:$0xff] %v376
            %v378 = vld [vmem:[%s356 + $0x78] sm:$0xff]
            %379 = vst [vmem:[%s357 + $0x78] sm:$0xff] %v378
            %v380 = vld [vmem:[%s356 + $0x80] sm:$0xff]
            %381 = vst [vmem:[%s357 + $0x80] sm:$0xff] %v380
            %v382 = vld [vmem:[%s356 + $0x90] sm:$0xff]
            %383 = vst [vmem:[%s357 + $0x90] sm:$0xff] %v382
            %v384 = vld [vmem:[%s356 + $0x98] sm:$0xff]
            %385 = vst [vmem:[%s357 + $0x98] sm:$0xff] %v384
            %v386 = vld [vmem:[%s356 + $0xa8] sm:$0xff]
            %387 = vst [vmem:[%s357 + $0xa8] sm:$0xff] %v386
            %v388 = vld [vmem:[%s356 + $0xb0] sm:$0xff]
            %389 = vst [vmem:[%s357 + $0xb0] sm:$0xff] %v388
            %v390 = vld [vmem:[%s356 + $0xc0] sm:$0xff]
            %391 = vst [vmem:[%s357 + $0xc0] sm:$0xff] %v390
            %v392 = vld [vmem:[%s356 + $0xc8] sm:$0xff]
            %393 = vst [vmem:[%s357 + $0xc8] sm:$0xff] %v392
            %v394 = vld [vmem:[%s356 + $0xd8] sm:$0xff]
            %395 = vst [vmem:[%s357 + $0xd8] sm:$0xff] %v394
            %v396 = vld [vmem:[%s356 + $0xe0] sm:$0xff]
            %397 = vst [vmem:[%s357 + $0xe0] sm:$0xff] %v396
          $region68: #{decoder_block_pallas.7} parent=62 // loop_footer
            %s355 = sadd.s32 1, %s351
          $region69: #{decoder_block_pallas.7} parent=62 // loop_footer_branch
            %350 = sbr.rel target = $region65
          $region70: #{decoder_block_pallas.7} parent=62 // loop_exit
            _
          %s398 = sshll.u32 1, %s345
          %s399 = ssub.s32 %s398, 1
          loop: start=0, step=1, limit=1
          $region71: #{decoder_block_pallas.7} parent=62 // loop_pre_header
            _
          $region72: #{decoder_block_pallas.7} parent=62 // loop_header
            %s401 = sphi 0, %s405
            %p402 = scmp.ge.s32.totalorder %s401, 1
            %s406 = sphi %s347, %s347
            %s407 = sphi %s349, %s349
          $region73: #{decoder_block_pallas.7} parent=62 // loop_header_branch
            %404 = sbr.rel (%p402) target = $region77
          $region74: #{decoder_block_pallas.7} parent=62 // loop_body
            %v408 = vld [vmem:[%s406] sm:%s399]
            %409 = vst [vmem:[%s407] sm:%s399] %v408
            %v410 = vld [vmem:[%s406 + $0x18] sm:%s399]
            %411 = vst [vmem:[%s407 + $0x18] sm:%s399] %v410
            %v412 = vld [vmem:[%s406 + $0x30] sm:%s399]
            %413 = vst [vmem:[%s407 + $0x30] sm:%s399] %v412
            %v414 = vld [vmem:[%s406 + $0x48] sm:%s399]
            %415 = vst [vmem:[%s407 + $0x48] sm:%s399] %v414
            %v416 = vld [vmem:[%s406 + $0x60] sm:%s399]
            %417 = vst [vmem:[%s407 + $0x60] sm:%s399] %v416
            %v418 = vld [vmem:[%s406 + $0x78] sm:%s399]
            %419 = vst [vmem:[%s407 + $0x78] sm:%s399] %v418
            %v420 = vld [vmem:[%s406 + $0x90] sm:%s399]
            %421 = vst [vmem:[%s407 + $0x90] sm:%s399] %v420
            %v422 = vld [vmem:[%s406 + $0xa8] sm:%s399]
            %423 = vst [vmem:[%s407 + $0xa8] sm:%s399] %v422
            %v424 = vld [vmem:[%s406 + $0xc0] sm:%s399]
            %425 = vst [vmem:[%s407 + $0xc0] sm:%s399] %v424
            %v426 = vld [vmem:[%s406 + $0xd8] sm:%s399]
            %427 = vst [vmem:[%s407 + $0xd8] sm:%s399] %v426
          $region75: #{decoder_block_pallas.7} parent=62 // loop_footer
            %s405 = sadd.s32 1, %s401
          $region76: #{decoder_block_pallas.7} parent=62 // loop_footer_branch
            %400 = sbr.rel target = $region72
          $region77: #{decoder_block_pallas.7} parent=62 // loop_exit
            _
        $region63: #{decoder_block_pallas.7} parent=47 // pred_fallthru
          _
      $region48: #{decoder_block_pallas.7} parent=43 // pred_fallthru
        _
      // Predicated region
      $region49: #{decoder_block_pallas.7} parent=43 // pred_check
        %p307 = pneg %p303
      $region50: #{decoder_block_pallas.7} parent=43 // pred_check_branch
        %309 = sbr.rel (%p307) target = $region52
      $region51: #{decoder_block_pallas.7} parent=43 // pred_region
        %s310 = sshll.u32 1, 18
        %s311 = ssub.s32 %s310, 1
        loop: start=0, step=1, limit=1
        $region53: #{decoder_block_pallas.7} parent=51 // loop_pre_header
          _
        $region54: #{decoder_block_pallas.7} parent=51 // loop_header
          %s313 = sphi 0, %s317
          %p314 = scmp.ge.s32.totalorder %s313, 1
          %s318 = sphi %s301, %s301
          %s319 = sphi [#allocation2], [#allocation2]
        $region55: #{decoder_block_pallas.7} parent=51 // loop_header_branch
          %316 = sbr.rel (%p314) target = $region59
        $region56: #{decoder_block_pallas.7} parent=51 // loop_body
          %v320 = vld [vmem:[%s318] sm:%s311]
          %321 = vst [vmem:[%s319] sm:%s311] %v320
          %v322 = vld [vmem:[%s318 + $0x18] sm:%s311]
          %323 = vst [vmem:[%s319 + $0x18] sm:%s311] %v322
          %v324 = vld [vmem:[%s318 + $0x30] sm:%s311]
          %325 = vst [vmem:[%s319 + $0x30] sm:%s311] %v324
          %v326 = vld [vmem:[%s318 + $0x48] sm:%s311]
          %327 = vst [vmem:[%s319 + $0x48] sm:%s311] %v326
          %v328 = vld [vmem:[%s318 + $0x60] sm:%s311]
          %329 = vst [vmem:[%s319 + $0x60] sm:%s311] %v328
          %v330 = vld [vmem:[%s318 + $0x78] sm:%s311]
          %331 = vst [vmem:[%s319 + $0x78] sm:%s311] %v330
          %v332 = vld [vmem:[%s318 + $0x90] sm:%s311]
          %333 = vst [vmem:[%s319 + $0x90] sm:%s311] %v332
          %v334 = vld [vmem:[%s318 + $0xa8] sm:%s311]
          %335 = vst [vmem:[%s319 + $0xa8] sm:%s311] %v334
          %v336 = vld [vmem:[%s318 + $0xc0] sm:%s311]
          %337 = vst [vmem:[%s319 + $0xc0] sm:%s311] %v336
          %v338 = vld [vmem:[%s318 + $0xd8] sm:%s311]
          %339 = vst [vmem:[%s319 + $0xd8] sm:%s311] %v338
        $region57: #{decoder_block_pallas.7} parent=51 // loop_footer
          %s317 = sadd.s32 1, %s313
        $region58: #{decoder_block_pallas.7} parent=51 // loop_footer_branch
          %312 = sbr.rel target = $region54
        $region59: #{decoder_block_pallas.7} parent=51 // loop_exit
          _
      $region52: #{decoder_block_pallas.7} parent=43 // pred_fallthru
        _
      // Predicated region
      $region78: #{decoder_block_pallas.7} parent=43 // pred_check
        _
      $region79: #{decoder_block_pallas.7} parent=43 // pred_check_branch
        %430 = sbr.rel (0) target = $region81
      $region80: #{decoder_block_pallas.7} parent=43 // pred_region
        %431 = vsyncadd [#allocation3], 2880
      $region81: #{decoder_block_pallas.7} parent=43 // pred_fallthru
        _
      %s432 = smul.u32 10, 18
      %s433 = smul.u32 %s432, 1
      %s434 = sshll.u32 %s433, 4
      %435 = dma.done [#allocation3], %s434
      %v436 = vld [vmem:[#allocation2] sm:$0xff]
      %v437 = vld [vmem:[#allocation2 + $0x8] sm:$0xff]
      %v438 = vld [vmem:[#allocation2 + $0x10] sm:$0x3]
      %v439 = vld [vmem:[#allocation2 + $0x18] sm:$0xff]
      %v440 = vld [vmem:[#allocation2 + $0x20] sm:$0xff]
      %v441 = vld [vmem:[#allocation2 + $0x28] sm:$0x3]
      %v442 = vld [vmem:[#allocation2 + $0x30] sm:$0xff]
      %v443 = vld [vmem:[#allocation2 + $0x38] sm:$0xff]
      %v444 = vld [vmem:[#allocation2 + $0x40] sm:$0x3]
      %v445 = vld [vmem:[#allocation2 + $0x48] sm:$0xff]
      %v446 = vld [vmem:[#allocation2 + $0x50] sm:$0xff]
      %v447 = vld [vmem:[#allocation2 + $0x58] sm:$0x3]
      %v448 = vld [vmem:[#allocation2 + $0x60] sm:$0xff]
      %v449 = vld [vmem:[#allocation2 + $0x68] sm:$0xff]
      %v450 = vld [vmem:[#allocation2 + $0x70] sm:$0x3]
      %v451 = vld [vmem:[#allocation2 + $0x78] sm:$0xff]
      %v452 = vld [vmem:[#allocation2 + $0x80] sm:$0xff]
      %v453 = vld [vmem:[#allocation2 + $0x88] sm:$0x3]
      %v454 = vld [vmem:[#allocation2 + $0x90] sm:$0xff]
      %v455 = vld [vmem:[#allocation2 + $0x98] sm:$0xff]
      %v456 = vld [vmem:[#allocation2 + $0xa0] sm:$0x3]
      %v457 = vld [vmem:[#allocation2 + $0xa8] sm:$0xff]
      %v458 = vld [vmem:[#allocation2 + $0xb0] sm:$0xff]
      %v459 = vld [vmem:[#allocation2 + $0xb8] sm:$0x3]
      %v460 = vld [vmem:[#allocation2 + $0xc0] sm:$0xff]
      %v461 = vld [vmem:[#allocation2 + $0xc8] sm:$0xff]
      %v462 = vld [vmem:[#allocation2 + $0xd0] sm:$0x3]
      %v463 = vld [vmem:[#allocation2 + $0xd8] sm:$0xff]
      %v464 = vld [vmem:[#allocation2 + $0xe0] sm:$0xff]
      %v465 = vld [vmem:[#allocation2 + $0xe8] sm:$0x3]
      %v466 = vld [vmem:[%s1] sm:$0x1]
      %v468 = vlaneseq
      %v469 = vshrl.u32 %v468, 7
      %v470 = vsub.s32 0, %v469
      %v471 = vrot.slane %v466, %v470
      %v473 = vmul.f32 %v436, %v471
      %v474 = vmul.f32 %v437, %v471
      %v475 = vmul.f32 %v438, %v471
      %v476 = vmul.f32 %v439, %v471
      %v477 = vmul.f32 %v440, %v471
      %v478 = vmul.f32 %v441, %v471
      %v479 = vmul.f32 %v442, %v471
      %v480 = vmul.f32 %v443, %v471
      %v481 = vmul.f32 %v444, %v471
      %v482 = vmul.f32 %v445, %v471
      %v483 = vmul.f32 %v446, %v471
      %v484 = vmul.f32 %v447, %v471
      %v485 = vmul.f32 %v448, %v471
      %v486 = vmul.f32 %v449, %v471
      %v487 = vmul.f32 %v450, %v471
      %v488 = vmul.f32 %v451, %v471
      %v489 = vmul.f32 %v452, %v471
      %v490 = vmul.f32 %v453, %v471
      %v491 = vmul.f32 %v454, %v471
      %v492 = vmul.f32 %v455, %v471
      %v493 = vmul.f32 %v456, %v471
      %v494 = vmul.f32 %v457, %v471
      %v495 = vmul.f32 %v458, %v471
      %v496 = vmul.f32 %v459, %v471
      %v497 = vmul.f32 %v460, %v471
      %v498 = vmul.f32 %v461, %v471
      %v499 = vmul.f32 %v462, %v471
      %v500 = vmul.f32 %v463, %v471
      %v501 = vmul.f32 %v464, %v471
      %v502 = vmul.f32 %v465, %v471
      %v503 = vld [vmem:[%s2] sm:$0x1]
      %v505 = vlaneseq
      %v506 = vshrl.u32 %v505, 7
      %v507 = vsub.s32 0, %v506
      %v508 = vrot.slane %v503, %v507
      %v510 = vadd.f32 %v473, %v508
      %v511 = vadd.f32 %v474, %v508
      %v512 = vadd.f32 %v475, %v508
      %v513 = vadd.f32 %v476, %v508
      %v514 = vadd.f32 %v477, %v508
      %v515 = vadd.f32 %v478, %v508
      %v516 = vadd.f32 %v479, %v508
      %v517 = vadd.f32 %v480, %v508
      %v518 = vadd.f32 %v481, %v508
      %v519 = vadd.f32 %v482, %v508
      %v520 = vadd.f32 %v483, %v508
      %v521 = vadd.f32 %v484, %v508
      %v522 = vadd.f32 %v485, %v508
      %v523 = vadd.f32 %v486, %v508
      %v524 = vadd.f32 %v487, %v508
      %v525 = vadd.f32 %v488, %v508
      %v526 = vadd.f32 %v489, %v508
      %v527 = vadd.f32 %v490, %v508
      %v528 = vadd.f32 %v491, %v508
      %v529 = vadd.f32 %v492, %v508
      %v530 = vadd.f32 %v493, %v508
      %v531 = vadd.f32 %v494, %v508
      %v532 = vadd.f32 %v495, %v508
      %v533 = vadd.f32 %v496, %v508
      %v534 = vadd.f32 %v497, %v508
      %v535 = vadd.f32 %v498, %v508
      %v536 = vadd.f32 %v499, %v508
      %v537 = vadd.f32 %v500, %v508
      %v538 = vadd.f32 %v501, %v508
      %v539 = vadd.f32 %v502, %v508
      %v540 = vmax.f32 %v510, 0.0
      %v541 = vmax.f32 %v511, 0.0
      %v542 = vmax.f32 %v512, 0.0
      %v543 = vmax.f32 %v513, 0.0
      %v544 = vmax.f32 %v514, 0.0
      %v545 = vmax.f32 %v515, 0.0
      %v546 = vmax.f32 %v516, 0.0
      %v547 = vmax.f32 %v517, 0.0
      %v548 = vmax.f32 %v518, 0.0
      %v549 = vmax.f32 %v519, 0.0
      %v550 = vmax.f32 %v520, 0.0
      %v551 = vmax.f32 %v521, 0.0
      %v552 = vmax.f32 %v522, 0.0
      %v553 = vmax.f32 %v523, 0.0
      %v554 = vmax.f32 %v524, 0.0
      %v555 = vmax.f32 %v525, 0.0
      %v556 = vmax.f32 %v526, 0.0
      %v557 = vmax.f32 %v527, 0.0
      %v558 = vmax.f32 %v528, 0.0
      %v559 = vmax.f32 %v529, 0.0
      %v560 = vmax.f32 %v530, 0.0
      %v561 = vmax.f32 %v531, 0.0
      %v562 = vmax.f32 %v532, 0.0
      %v563 = vmax.f32 %v533, 0.0
      %v564 = vmax.f32 %v534, 0.0
      %v565 = vmax.f32 %v535, 0.0
      %v566 = vmax.f32 %v536, 0.0
      %v567 = vmax.f32 %v537, 0.0
      %v568 = vmax.f32 %v538, 0.0
      %v569 = vmax.f32 %v539, 0.0
      %v570 = vlaneseq
      %v571 = vshrl.u32 %v570, 7
      %v572 = vadd.s32 %v571, 8
      %v573 = vadd.s32 %v571, 16
      %vm574 = vcmp.ge.s32.totalorder %v571, 1
      %vm575 = vcmp.ge.s32.totalorder %v572, 1
      %vm576 = vcmp.ge.s32.totalorder %v573, 1
      %vm577 = vcmp.le.s32.totalorder %v571, 16
      %vm578 = vcmp.le.s32.totalorder %v572, 16
      %vm579 = vcmp.le.s32.totalorder %v573, 16
      %vm580 = vmand %vm574, %vm577
      %vm581 = vmand %vm575, %vm578
      %vm582 = vmand %vm576, %vm579
      %p583 = scmp.ne.s32.totalorder %s23, 0
      %s584 = scalar_select %p583, 1, 0
      %v585 = vstv %s584
      %vm586 = vcmp.eq.s32.totalorder %v585, 1
      %vm587 = vmand %vm580, %vm586
      %vm588 = vmand %vm581, %vm586
      %vm589 = vmand %vm582, %vm586
      %vm590 = vmand %vm580, 1
      %vm591 = vmand %vm581, 1
      %vm592 = vmand %vm582, 1
      %p593 = scmp.ne.s32.totalorder %s23, 1
      %s594 = scalar_select %p593, 1, 0
      %v595 = vstv %s594
      %vm596 = vcmp.eq.s32.totalorder %v595, 1
      %vm597 = vmand %vm587, 1
      %vm598 = vmand %vm588, 1
      %vm599 = vmand %vm589, 1
      %vm600 = vmand %vm590, %vm596
      %vm601 = vmand %vm591, %vm596
      %vm602 = vmand %vm592, %vm596
      %v603 = vsel %vm597, %v540, 0.0
      %v604 = vsel %vm598, %v541, 0.0
      %v605 = vsel %vm599, %v542, 0.0
      %v606 = vsel %vm590, %v543, 0.0
      %v607 = vsel %vm591, %v544, 0.0
      %v608 = vsel %vm592, %v545, 0.0
      %v609 = vsel %vm590, %v546, 0.0
      %v610 = vsel %vm591, %v547, 0.0
      %v611 = vsel %vm592, %v548, 0.0
      %v612 = vsel %vm590, %v549, 0.0
      %v613 = vsel %vm591, %v550, 0.0
      %v614 = vsel %vm592, %v551, 0.0
      %v615 = vsel %vm590, %v552, 0.0
      %v616 = vsel %vm591, %v553, 0.0
      %v617 = vsel %vm592, %v554, 0.0
      %v618 = vsel %vm590, %v555, 0.0
      %v619 = vsel %vm591, %v556, 0.0
      %v620 = vsel %vm592, %v557, 0.0
      %v621 = vsel %vm590, %v558, 0.0
      %v622 = vsel %vm591, %v559, 0.0
      %v623 = vsel %vm592, %v560, 0.0
      %v624 = vsel %vm590, %v561, 0.0
      %v625 = vsel %vm591, %v562, 0.0
      %v626 = vsel %vm592, %v563, 0.0
      %v627 = vsel %vm590, %v564, 0.0
      %v628 = vsel %vm591, %v565, 0.0
      %v629 = vsel %vm592, %v566, 0.0
      %v630 = vsel %vm600, %v567, 0.0
      %v631 = vsel %vm601, %v568, 0.0
      %v632 = vsel %vm602, %v569, 0.0
      %v633 = vld [vmem:[%s3] sm:$0xff]
      %v634 = vld [vmem:[%s3 + $0x8] sm:$0xff]
      %v635 = vld [vmem:[%s3 + $0x10] sm:$0xff]
      %v636 = vld [vmem:[%s3 + $0x18] sm:$0xff]
      %v637 = vld [vmem:[%s3 + $0x20] sm:$0xff]
      %v638 = vld [vmem:[%s3 + $0x28] sm:$0xff]
      %v639 = vld [vmem:[%s3 + $0x30] sm:$0xff]
      %v640 = vld [vmem:[%s3 + $0x38] sm:$0xff]
      %v641 = vld [vmem:[%s3 + $0x40] sm:$0xff]
      %v642 = vld [vmem:[%s3 + $0x48] sm:$0xff]
      %v643 = vld [vmem:[%s3 + $0x50] sm:$0xff]
      %v644 = vld [vmem:[%s3 + $0x58] sm:$0xff]
      %v645 = vld [vmem:[%s3 + $0x60] sm:$0xff]
      %v646 = vld [vmem:[%s3 + $0x68] sm:$0xff]
      %v647 = vld [vmem:[%s3 + $0x70] sm:$0xff]
      %v648 = vld [vmem:[%s3 + $0x78] sm:$0xff]
      %s649 = scalar_lea.vmem %s3, 384
      %v650 = vld [vmem:[%s649] sm:$0xff]
      %v651 = vld [vmem:[%s649 + $0x8] sm:$0xff]
      %v652 = vld [vmem:[%s649 + $0x10] sm:$0xff]
      %v653 = vld [vmem:[%s649 + $0x18] sm:$0xff]
      %v654 = vld [vmem:[%s649 + $0x20] sm:$0xff]
      %v655 = vld [vmem:[%s649 + $0x28] sm:$0xff]
      %v656 = vld [vmem:[%s649 + $0x30] sm:$0xff]
      %v657 = vld [vmem:[%s649 + $0x38] sm:$0xff]
      %v658 = vld [vmem:[%s649 + $0x40] sm:$0xff]
      %v659 = vld [vmem:[%s649 + $0x48] sm:$0xff]
      %v660 = vld [vmem:[%s649 + $0x50] sm:$0xff]
      %v661 = vld [vmem:[%s649 + $0x58] sm:$0xff]
      %v662 = vld [vmem:[%s649 + $0x60] sm:$0xff]
      %v663 = vld [vmem:[%s649 + $0x68] sm:$0xff]
      %v664 = vld [vmem:[%s649 + $0x70] sm:$0xff]
      %v665 = vld [vmem:[%s649 + $0x78] sm:$0xff]
      %666 = vmatprep.subr.mxu0 0.0
      %667 = vmatpush1.msra.mxu0 %v665
      %668 = vmatprep.subr.mxu0 0.0
      %669 = vmatpush1.msra.mxu0 %v664
      %670 = vmatprep.subr.mxu0 0.0
      %671 = vmatpush1.msra.mxu0 %v663
      %672 = vmatprep.subr.mxu0 0.0
      %673 = vmatpush1.msra.mxu0 %v662
      %674 = vmatprep.subr.mxu0 0.0
      %675 = vmatpush1.msra.mxu0 %v661
      %676 = vmatprep.subr.mxu0 0.0
      %677 = vmatpush1.msra.mxu0 %v660
      %678 = vmatprep.subr.mxu0 0.0
      %679 = vmatpush1.msra.mxu0 %v659
      %680 = vmatprep.subr.mxu0 0.0
      %681 = vmatpush1.msra.mxu0 %v658
      %682 = vmatprep.subr.mxu0 0.0
      %683 = vmatpush1.msra.mxu0 %v657
      %684 = vmatprep.subr.mxu0 0.0
      %685 = vmatpush1.msra.mxu0 %v656
      %686 = vmatprep.subr.mxu0 0.0
      %687 = vmatpush1.msra.mxu0 %v655
      %688 = vmatprep.subr.mxu0 0.0
      %689 = vmatpush1.msra.mxu0 %v654
      %690 = vmatprep.subr.mxu0 0.0
      %691 = vmatpush1.msra.mxu0 %v653
      %692 = vmatprep.subr.mxu0 0.0
      %693 = vmatpush1.msra.mxu0 %v652
      %694 = vmatprep.subr.mxu0 0.0
      %695 = vmatpush1.msra.mxu0 %v651
      %696 = vmatprep.subr.mxu0 0.0
      %697 = vmatpush1.msra.mxu0 %v650
      %698 = vmatprep.subr.mxu0 0.0
      %699 = vmatpush2.msra.mxu0 0.0
      %700 = vmatprep.subr.mxu0 0.0
      %701 = vmatpush2.msra.mxu0 0.0
      %702 = vmatprep.subr.mxu0 0.0
      %703 = vmatpush2.msra.mxu0 0.0
      %704 = vmatprep.subr.mxu0 0.0
      %705 = vmatpush2.msra.mxu0 0.0
      %706 = vmatprep.subr.mxu0 0.0
      %707 = vmatpush2.msra.mxu0 0.0
      %708 = vmatprep.subr.mxu0 0.0
      %709 = vmatpush2.msra.mxu0 0.0
      %710 = vmatprep.subr.mxu0 0.0
      %711 = vmatpush2.msra.mxu0 0.0
      %712 = vmatprep.subr.mxu0 0.0
      %713 = vmatpush2.msra.mxu0 0.0
      %714 = vmatprep.subr.mxu0 0.0
      %715 = vmatpush2.msra.mxu0 0.0
      %716 = vmatprep.subr.mxu0 0.0
      %717 = vmatpush2.msra.mxu0 0.0
      %718 = vmatprep.subr.mxu0 0.0
      %719 = vmatpush2.msra.mxu0 0.0
      %720 = vmatprep.subr.mxu0 0.0
      %721 = vmatpush2.msra.mxu0 0.0
      %722 = vmatprep.subr.mxu0 0.0
      %723 = vmatpush2.msra.mxu0 0.0
      %724 = vmatprep.subr.mxu0 0.0
      %725 = vmatpush2.msra.mxu0 0.0
      %726 = vmatprep.subr.mxu0 0.0
      %727 = vmatpush2.msra.mxu0 0.0
      %728 = vmatprep.subr.mxu0 0.0
      %729 = vmatpush2.msra.mxu0 0.0
      %730 = vmatprep.mubr.f32.mxu0 0.0
      %731 = vmatmul.mubr.f32.gmra.mxu0 %v606
      %v732 = vpop.f32.mrf.mxu0
      %v733 = vadd.f32 0.0, %v732
      %v734 = vpop.f32.mrf.mxu0
      %735 = vmatprep.mubr.f32.mxu0 0.0
      %736 = vmatmul.mubr.f32.gmra.mxu0 %v607
      %v737 = vpop.f32.mrf.mxu0
      %v738 = vadd.f32 0.0, %v737
      %v739 = vpop.f32.mrf.mxu0
      %740 = vmatprep.mubr.f32.mxu0 0.0
      %741 = vmatmul.mubr.f32.gmra.mxu0 %v609
      %v742 = vpop.f32.mrf.mxu0
      %v743 = vadd.f32 0.0, %v742
      %v744 = vpop.f32.mrf.mxu0
      %745 = vmatprep.mubr.f32.mxu0 0.0
      %746 = vmatmul.mubr.f32.gmra.mxu0 %v610
      %v747 = vpop.f32.mrf.mxu0
      %v748 = vadd.f32 0.0, %v747
      %v749 = vpop.f32.mrf.mxu0
      %750 = vmatprep.mubr.f32.mxu0 0.0
      %751 = vmatmul.mubr.f32.gmra.mxu0 %v612
      %v752 = vpop.f32.mrf.mxu0
      %v753 = vadd.f32 0.0, %v752
      %v754 = vpop.f32.mrf.mxu0
      %755 = vmatprep.mubr.f32.mxu0 0.0
      %756 = vmatmul.mubr.f32.gmra.mxu0 %v613
      %v757 = vpop.f32.mrf.mxu0
      %v758 = vadd.f32 0.0, %v757
      %v759 = vpop.f32.mrf.mxu0
      %760 = vmatprep.mubr.f32.mxu0 0.0
      %761 = vmatmul.mubr.f32.gmra.mxu0 %v615
      %v762 = vpop.f32.mrf.mxu0
      %v763 = vadd.f32 0.0, %v762
      %v764 = vpop.f32.mrf.mxu0
      %765 = vmatprep.mubr.f32.mxu0 0.0
      %766 = vmatmul.mubr.f32.gmra.mxu0 %v616
      %v767 = vpop.f32.mrf.mxu0
      %v768 = vadd.f32 0.0, %v767
      %v769 = vpop.f32.mrf.mxu0
      %770 = vmatprep.mubr.f32.mxu0 0.0
      %771 = vmatmul.mubr.f32.gmra.mxu0 %v618
      %v772 = vpop.f32.mrf.mxu0
      %v773 = vadd.f32 0.0, %v772
      %v774 = vpop.f32.mrf.mxu0
      %775 = vmatprep.mubr.f32.mxu0 0.0
      %776 = vmatmul.mubr.f32.gmra.mxu0 %v619
      %v777 = vpop.f32.mrf.mxu0
      %v778 = vadd.f32 0.0, %v777
      %v779 = vpop.f32.mrf.mxu0
      %780 = vmatprep.mubr.f32.mxu0 0.0
      %781 = vmatmul.mubr.f32.gmra.mxu0 %v621
      %v782 = vpop.f32.mrf.mxu0
      %v783 = vadd.f32 0.0, %v782
      %v784 = vpop.f32.mrf.mxu0
      %785 = vmatprep.mubr.f32.mxu0 0.0
      %786 = vmatmul.mubr.f32.gmra.mxu0 %v622
      %v787 = vpop.f32.mrf.mxu0
      %v788 = vadd.f32 0.0, %v787
      %v789 = vpop.f32.mrf.mxu0
      %790 = vmatprep.mubr.f32.mxu0 0.0
      %791 = vmatmul.mubr.f32.gmra.mxu0 %v624
      %v792 = vpop.f32.mrf.mxu0
      %v793 = vadd.f32 0.0, %v792
      %v794 = vpop.f32.mrf.mxu0
      %795 = vmatprep.mubr.f32.mxu0 0.0
      %796 = vmatmul.mubr.f32.gmra.mxu0 %v625
      %v797 = vpop.f32.mrf.mxu0
      %v798 = vadd.f32 0.0, %v797
      %v799 = vpop.f32.mrf.mxu0
      %800 = vmatprep.mubr.f32.mxu0 0.0
      %801 = vmatmul.mubr.f32.gmra.mxu0 %v627
      %v802 = vpop.f32.mrf.mxu0
      %v803 = vadd.f32 0.0, %v802
      %v804 = vpop.f32.mrf.mxu0
      %805 = vmatprep.mubr.f32.mxu0 0.0
      %806 = vmatmul.mubr.f32.gmra.mxu0 %v628
      %v807 = vpop.f32.mrf.mxu0
      %v808 = vadd.f32 0.0, %v807
      %v809 = vpop.f32.mrf.mxu0
      %810 = vdwg.mxu0
      %811 = vmatprep.subr.mxu0 0.0
      %812 = vmatpush1.msra.mxu0 %v648
      %813 = vmatprep.subr.mxu0 0.0
      %814 = vmatpush1.msra.mxu0 %v647
      %815 = vmatprep.subr.mxu0 0.0
      %816 = vmatpush1.msra.mxu0 %v646
      %817 = vmatprep.subr.mxu0 0.0
      %818 = vmatpush1.msra.mxu0 %v645
      %819 = vmatprep.subr.mxu0 0.0
      %820 = vmatpush1.msra.mxu0 %v644
      %821 = vmatprep.subr.mxu0 0.0
      %822 = vmatpush1.msra.mxu0 %v643
      %823 = vmatprep.subr.mxu0 0.0
      %824 = vmatpush1.msra.mxu0 %v642
      %825 = vmatprep.subr.mxu0 0.0
      %826 = vmatpush1.msra.mxu0 %v641
      %827 = vmatprep.subr.mxu0 0.0
      %828 = vmatpush1.msra.mxu0 %v640
      %829 = vmatprep.subr.mxu0 0.0
      %830 = vmatpush1.msra.mxu0 %v639
      %831 = vmatprep.subr.mxu0 0.0
      %832 = vmatpush1.msra.mxu0 %v638
      %833 = vmatprep.subr.mxu0 0.0
      %834 = vmatpush1.msra.mxu0 %v637
      %835 = vmatprep.subr.mxu0 0.0
      %836 = vmatpush1.msra.mxu0 %v636
      %837 = vmatprep.subr.mxu0 0.0
      %838 = vmatpush1.msra.mxu0 %v635
      %839 = vmatprep.subr.mxu0 0.0
      %840 = vmatpush1.msra.mxu0 %v634
      %841 = vmatprep.subr.mxu0 0.0
      %842 = vmatpush1.msra.mxu0 %v633
      %843 = vmatprep.subr.mxu0 0.0
      %844 = vmatpush2.msra.mxu0 0.0
      %845 = vmatprep.subr.mxu0 0.0
      %846 = vmatpush2.msra.mxu0 0.0
      %847 = vmatprep.subr.mxu0 0.0
      %848 = vmatpush2.msra.mxu0 0.0
      %849 = vmatprep.subr.mxu0 0.0
      %850 = vmatpush2.msra.mxu0 0.0
      %851 = vmatprep.subr.mxu0 0.0
      %852 = vmatpush2.msra.mxu0 0.0
      %853 = vmatprep.subr.mxu0 0.0
      %854 = vmatpush2.msra.mxu0 0.0
      %855 = vmatprep.subr.mxu0 0.0
      %856 = vmatpush2.msra.mxu0 0.0
      %857 = vmatprep.subr.mxu0 0.0
      %858 = vmatpush2.msra.mxu0 0.0
      %859 = vmatprep.subr.mxu0 0.0
      %860 = vmatpush2.msra.mxu0 0.0
      %861 = vmatprep.subr.mxu0 0.0
      %862 = vmatpush2.msra.mxu0 0.0
      %863 = vmatprep.subr.mxu0 0.0
      %864 = vmatpush2.msra.mxu0 0.0
      %865 = vmatprep.subr.mxu0 0.0
      %866 = vmatpush2.msra.mxu0 0.0
      %867 = vmatprep.subr.mxu0 0.0
      %868 = vmatpush2.msra.mxu0 0.0
      %869 = vmatprep.subr.mxu0 0.0
      %870 = vmatpush2.msra.mxu0 0.0
      %871 = vmatprep.subr.mxu0 0.0
      %872 = vmatpush2.msra.mxu0 0.0
      %873 = vmatprep.subr.mxu0 0.0
      %874 = vmatpush2.msra.mxu0 0.0
      %875 = vmatprep.mubr.f32.mxu0 0.0
      %876 = vmatmul.mubr.f32.gmra.mxu0 %v603
      %v877 = vpop.f32.mrf.mxu0
      %v878 = vadd.f32 %v733, %v877
      %v879 = vpop.f32.mrf.mxu0
      %880 = vmatprep.mubr.f32.mxu0 0.0
      %881 = vmatmul.mubr.f32.gmra.mxu0 %v604
      %v882 = vpop.f32.mrf.mxu0
      %v883 = vadd.f32 %v738, %v882
      %v884 = vpop.f32.mrf.mxu0
      %885 = vmatprep.mubr.f32.mxu0 0.0
      %886 = vmatmul.mubr.f32.gmra.mxu0 %v606
      %v887 = vpop.f32.mrf.mxu0
      %v888 = vadd.f32 %v743, %v887
      %v889 = vpop.f32.mrf.mxu0
      %890 = vmatprep.mubr.f32.mxu0 0.0
      %891 = vmatmul.mubr.f32.gmra.mxu0 %v607
      %v892 = vpop.f32.mrf.mxu0
      %v893 = vadd.f32 %v748, %v892
      %v894 = vpop.f32.mrf.mxu0
      %895 = vmatprep.mubr.f32.mxu0 0.0
      %896 = vmatmul.mubr.f32.gmra.mxu0 %v609
      %v897 = vpop.f32.mrf.mxu0
      %v898 = vadd.f32 %v753, %v897
      %v899 = vpop.f32.mrf.mxu0
      %900 = vmatprep.mubr.f32.mxu0 0.0
      %901 = vmatmul.mubr.f32.gmra.mxu0 %v610
      %v902 = vpop.f32.mrf.mxu0
      %v903 = vadd.f32 %v758, %v902
      %v904 = vpop.f32.mrf.mxu0
      %905 = vmatprep.mubr.f32.mxu0 0.0
      %906 = vmatmul.mubr.f32.gmra.mxu0 %v612
      %v907 = vpop.f32.mrf.mxu0
      %v908 = vadd.f32 %v763, %v907
      %v909 = vpop.f32.mrf.mxu0
      %910 = vmatprep.mubr.f32.mxu0 0.0
      %911 = vmatmul.mubr.f32.gmra.mxu0 %v613
      %v912 = vpop.f32.mrf.mxu0
      %v913 = vadd.f32 %v768, %v912
      %v914 = vpop.f32.mrf.mxu0
      %915 = vmatprep.mubr.f32.mxu0 0.0
      %916 = vmatmul.mubr.f32.gmra.mxu0 %v615
      %v917 = vpop.f32.mrf.mxu0
      %v918 = vadd.f32 %v773, %v917
      %v919 = vpop.f32.mrf.mxu0
      %920 = vmatprep.mubr.f32.mxu0 0.0
      %921 = vmatmul.mubr.f32.gmra.mxu0 %v616
      %v922 = vpop.f32.mrf.mxu0
      %v923 = vadd.f32 %v778, %v922
      %v924 = vpop.f32.mrf.mxu0
      %925 = vmatprep.mubr.f32.mxu0 0.0
      %926 = vmatmul.mubr.f32.gmra.mxu0 %v618
      %v927 = vpop.f32.mrf.mxu0
      %v928 = vadd.f32 %v783, %v927
      %v929 = vpop.f32.mrf.mxu0
      %930 = vmatprep.mubr.f32.mxu0 0.0
      %931 = vmatmul.mubr.f32.gmra.mxu0 %v619
      %v932 = vpop.f32.mrf.mxu0
      %v933 = vadd.f32 %v788, %v932
      %v934 = vpop.f32.mrf.mxu0
      %935 = vmatprep.mubr.f32.mxu0 0.0
      %936 = vmatmul.mubr.f32.gmra.mxu0 %v621
      %v937 = vpop.f32.mrf.mxu0
      %v938 = vadd.f32 %v793, %v937
      %v939 = vpop.f32.mrf.mxu0
      %940 = vmatprep.mubr.f32.mxu0 0.0
      %941 = vmatmul.mubr.f32.gmra.mxu0 %v622
      %v942 = vpop.f32.mrf.mxu0
      %v943 = vadd.f32 %v798, %v942
      %v944 = vpop.f32.mrf.mxu0
      %945 = vmatprep.mubr.f32.mxu0 0.0
      %946 = vmatmul.mubr.f32.gmra.mxu0 %v624
      %v947 = vpop.f32.mrf.mxu0
      %v948 = vadd.f32 %v803, %v947
      %v949 = vpop.f32.mrf.mxu0
      %950 = vmatprep.mubr.f32.mxu0 0.0
      %951 = vmatmul.mubr.f32.gmra.mxu0 %v625
      %v952 = vpop.f32.mrf.mxu0
      %v953 = vadd.f32 %v808, %v952
      %v954 = vpop.f32.mrf.mxu0
      %955 = vdwg.mxu0
      %s956 = scalar_lea.vmem %s3, 768
      %v957 = vld [vmem:[%s956] sm:$0xff]
      %v958 = vld [vmem:[%s956 + $0x8] sm:$0xff]
      %v959 = vld [vmem:[%s956 + $0x10] sm:$0xff]
      %v960 = vld [vmem:[%s956 + $0x18] sm:$0xff]
      %v961 = vld [vmem:[%s956 + $0x20] sm:$0xff]
      %v962 = vld [vmem:[%s956 + $0x28] sm:$0xff]
      %v963 = vld [vmem:[%s956 + $0x30] sm:$0xff]
      %v964 = vld [vmem:[%s956 + $0x38] sm:$0xff]
      %v965 = vld [vmem:[%s956 + $0x40] sm:$0xff]
      %v966 = vld [vmem:[%s956 + $0x48] sm:$0xff]
      %v967 = vld [vmem:[%s956 + $0x50] sm:$0xff]
      %v968 = vld [vmem:[%s956 + $0x58] sm:$0xff]
      %v969 = vld [vmem:[%s956 + $0x60] sm:$0xff]
      %v970 = vld [vmem:[%s956 + $0x68] sm:$0xff]
      %v971 = vld [vmem:[%s956 + $0x70] sm:$0xff]
      %v972 = vld [vmem:[%s956 + $0x78] sm:$0xff]
      %973 = vmatprep.subr.mxu0 0.0
      %974 = vmatpush1.msra.mxu0 %v972
      %975 = vmatprep.subr.mxu0 0.0
      %976 = vmatpush1.msra.mxu0 %v971
      %977 = vmatprep.subr.mxu0 0.0
      %978 = vmatpush1.msra.mxu0 %v970
      %979 = vmatprep.subr.mxu0 0.0
      %980 = vmatpush1.msra.mxu0 %v969
      %981 = vmatprep.subr.mxu0 0.0
      %982 = vmatpush1.msra.mxu0 %v968
      %983 = vmatprep.subr.mxu0 0.0
      %984 = vmatpush1.msra.mxu0 %v967
      %985 = vmatprep.subr.mxu0 0.0
      %986 = vmatpush1.msra.mxu0 %v966
      %987 = vmatprep.subr.mxu0 0.0
      %988 = vmatpush1.msra.mxu0 %v965
      %989 = vmatprep.subr.mxu0 0.0
      %990 = vmatpush1.msra.mxu0 %v964
      %991 = vmatprep.subr.mxu0 0.0
      %992 = vmatpush1.msra.mxu0 %v963
      %993 = vmatprep.subr.mxu0 0.0
      %994 = vmatpush1.msra.mxu0 %v962
      %995 = vmatprep.subr.mxu0 0.0
      %996 = vmatpush1.msra.mxu0 %v961
      %997 = vmatprep.subr.mxu0 0.0
      %998 = vmatpush1.msra.mxu0 %v960
      %999 = vmatprep.subr.mxu0 0.0
      %1000 = vmatpush1.msra.mxu0 %v959
      %1001 = vmatprep.subr.mxu0 0.0
      %1002 = vmatpush1.msra.mxu0 %v958
      %1003 = vmatprep.subr.mxu0 0.0
      %1004 = vmatpush1.msra.mxu0 %v957
      %1005 = vmatprep.subr.mxu0 0.0
      %1006 = vmatpush2.msra.mxu0 0.0
      %1007 = vmatprep.subr.mxu0 0.0
      %1008 = vmatpush2.msra.mxu0 0.0
      %1009 = vmatprep.subr.mxu0 0.0
      %1010 = vmatpush2.msra.mxu0 0.0
      %1011 = vmatprep.subr.mxu0 0.0
      %1012 = vmatpush2.msra.mxu0 0.0
      %1013 = vmatprep.subr.mxu0 0.0
      %1014 = vmatpush2.msra.mxu0 0.0
      %1015 = vmatprep.subr.mxu0 0.0
      %1016 = vmatpush2.msra.mxu0 0.0
      %1017 = vmatprep.subr.mxu0 0.0
      %1018 = vmatpush2.msra.mxu0 0.0
      %1019 = vmatprep.subr.mxu0 0.0
      %1020 = vmatpush2.msra.mxu0 0.0
      %1021 = vmatprep.subr.mxu0 0.0
      %1022 = vmatpush2.msra.mxu0 0.0
      %1023 = vmatprep.subr.mxu0 0.0
      %1024 = vmatpush2.msra.mxu0 0.0
      %1025 = vmatprep.subr.mxu0 0.0
      %1026 = vmatpush2.msra.mxu0 0.0
      %1027 = vmatprep.subr.mxu0 0.0
      %1028 = vmatpush2.msra.mxu0 0.0
      %1029 = vmatprep.subr.mxu0 0.0
      %1030 = vmatpush2.msra.mxu0 0.0
      %1031 = vmatprep.subr.mxu0 0.0
      %1032 = vmatpush2.msra.mxu0 0.0
      %1033 = vmatprep.subr.mxu0 0.0
      %1034 = vmatpush2.msra.mxu0 0.0
      %1035 = vmatprep.subr.mxu0 0.0
      %1036 = vmatpush2.msra.mxu0 0.0
      %1037 = vmatprep.mubr.f32.mxu0 0.0
      %1038 = vmatmul.mubr.f32.gmra.mxu0 %v609
      %v1039 = vpop.f32.mrf.mxu0
      %v1040 = vadd.f32 0.0, %v1039
      %v1041 = vpop.f32.mrf.mxu0
      %1042 = vmatprep.mubr.f32.mxu0 0.0
      %1043 = vmatmul.mubr.f32.gmra.mxu0 %v610
      %v1044 = vpop.f32.mrf.mxu0
      %v1045 = vadd.f32 0.0, %v1044
      %v1046 = vpop.f32.mrf.mxu0
      %1047 = vmatprep.mubr.f32.mxu0 0.0
      %1048 = vmatmul.mubr.f32.gmra.mxu0 %v612
      %v1049 = vpop.f32.mrf.mxu0
      %v1050 = vadd.f32 0.0, %v1049
      %v1051 = vpop.f32.mrf.mxu0
      %1052 = vmatprep.mubr.f32.mxu0 0.0
      %1053 = vmatmul.mubr.f32.gmra.mxu0 %v613
      %v1054 = vpop.f32.mrf.mxu0
      %v1055 = vadd.f32 0.0, %v1054
      %v1056 = vpop.f32.mrf.mxu0
      %1057 = vmatprep.mubr.f32.mxu0 0.0
      %1058 = vmatmul.mubr.f32.gmra.mxu0 %v615
      %v1059 = vpop.f32.mrf.mxu0
      %v1060 = vadd.f32 0.0, %v1059
      %v1061 = vpop.f32.mrf.mxu0
      %1062 = vmatprep.mubr.f32.mxu0 0.0
      %1063 = vmatmul.mubr.f32.gmra.mxu0 %v616
      %v1064 = vpop.f32.mrf.mxu0
      %v1065 = vadd.f32 0.0, %v1064
      %v1066 = vpop.f32.mrf.mxu0
      %1067 = vmatprep.mubr.f32.mxu0 0.0
      %1068 = vmatmul.mubr.f32.gmra.mxu0 %v618
      %v1069 = vpop.f32.mrf.mxu0
      %v1070 = vadd.f32 0.0, %v1069
      %v1071 = vpop.f32.mrf.mxu0
      %1072 = vmatprep.mubr.f32.mxu0 0.0
      %1073 = vmatmul.mubr.f32.gmra.mxu0 %v619
      %v1074 = vpop.f32.mrf.mxu0
      %v1075 = vadd.f32 0.0, %v1074
      %v1076 = vpop.f32.mrf.mxu0
      %1077 = vmatprep.mubr.f32.mxu0 0.0
      %1078 = vmatmul.mubr.f32.gmra.mxu0 %v621
      %v1079 = vpop.f32.mrf.mxu0
      %v1080 = vadd.f32 0.0, %v1079
      %v1081 = vpop.f32.mrf.mxu0
      %1082 = vmatprep.mubr.f32.mxu0 0.0
      %1083 = vmatmul.mubr.f32.gmra.mxu0 %v622
      %v1084 = vpop.f32.mrf.mxu0
      %v1085 = vadd.f32 0.0, %v1084
      %v1086 = vpop.f32.mrf.mxu0
      %1087 = vmatprep.mubr.f32.mxu0 0.0
      %1088 = vmatmul.mubr.f32.gmra.mxu0 %v624
      %v1089 = vpop.f32.mrf.mxu0
      %v1090 = vadd.f32 0.0, %v1089
      %v1091 = vpop.f32.mrf.mxu0
      %1092 = vmatprep.mubr.f32.mxu0 0.0
      %1093 = vmatmul.mubr.f32.gmra.mxu0 %v625
      %v1094 = vpop.f32.mrf.mxu0
      %v1095 = vadd.f32 0.0, %v1094
      %v1096 = vpop.f32.mrf.mxu0
      %1097 = vmatprep.mubr.f32.mxu0 0.0
      %1098 = vmatmul.mubr.f32.gmra.mxu0 %v627
      %v1099 = vpop.f32.mrf.mxu0
      %v1100 = vadd.f32 0.0, %v1099
      %v1101 = vpop.f32.mrf.mxu0
      %1102 = vmatprep.mubr.f32.mxu0 0.0
      %1103 = vmatmul.mubr.f32.gmra.mxu0 %v628
      %v1104 = vpop.f32.mrf.mxu0
      %v1105 = vadd.f32 0.0, %v1104
      %v1106 = vpop.f32.mrf.mxu0
      %1107 = vmatprep.mubr.f32.mxu0 0.0
      %1108 = vmatmul.mubr.f32.gmra.mxu0 %v630
      %v1109 = vpop.f32.mrf.mxu0
      %v1110 = vadd.f32 0.0, %v1109
      %v1111 = vpop.f32.mrf.mxu0
      %1112 = vmatprep.mubr.f32.mxu0 0.0
      %1113 = vmatmul.mubr.f32.gmra.mxu0 %v631
      %v1114 = vpop.f32.mrf.mxu0
      %v1115 = vadd.f32 0.0, %v1114
      %v1116 = vpop.f32.mrf.mxu0
      %1117 = vdwg.mxu0
      %v1118 = vadd.f32 %v878, %v1040
      %v1119 = vadd.f32 %v883, %v1045
      %v1120 = vadd.f32 %v888, %v1050
      %v1121 = vadd.f32 %v893, %v1055
      %v1122 = vadd.f32 %v898, %v1060
      %v1123 = vadd.f32 %v903, %v1065
      %v1124 = vadd.f32 %v908, %v1070
      %v1125 = vadd.f32 %v913, %v1075
      %v1126 = vadd.f32 %v918, %v1080
      %v1127 = vadd.f32 %v923, %v1085
      %v1128 = vadd.f32 %v928, %v1090
      %v1129 = vadd.f32 %v933, %v1095
      %v1130 = vadd.f32 %v938, %v1100
      %v1131 = vadd.f32 %v943, %v1105
      %v1132 = vadd.f32 %v948, %v1110
      %v1133 = vadd.f32 %v953, %v1115
      %vm1158 = vcmask 1046528
      %v1159 = vrot.slane %v603, 1
      %v1160 = vrot.slane %v604, 1
      %v1161 = vsel %vm1158, %v1159, %v1160
      %v1162 = vrot.slane %v605, 1
      %v1163 = vsel %vm1158, %v1160, %v1162
      %v1164 = vrot.slane %v606, 1
      %v1165 = vrot.slane %v607, 1
      %v1166 = vsel %vm1158, %v1164, %v1165
      %v1167 = vrot.slane %v608, 1
      %v1168 = vsel %vm1158, %v1165, %v1167
      %v1169 = vrot.slane %v609, 1
      %v1170 = vrot.slane %v610, 1
      %v1171 = vsel %vm1158, %v1169, %v1170
      %v1172 = vrot.slane %v611, 1
      %v1173 = vsel %vm1158, %v1170, %v1172
      %v1174 = vrot.slane %v612, 1
      %v1175 = vrot.slane %v613, 1
      %v1176 = vsel %vm1158, %v1174, %v1175
      %v1177 = vrot.slane %v614, 1
      %v1178 = vsel %vm1158, %v1175, %v1177
      %v1179 = vrot.slane %v615, 1
      %v1180 = vrot.slane %v616, 1
      %v1181 = vsel %vm1158, %v1179, %v1180
      %v1182 = vrot.slane %v617, 1
      %v1183 = vsel %vm1158, %v1180, %v1182
      %v1184 = vrot.slane %v618, 1
      %v1185 = vrot.slane %v619, 1
      %v1186 = vsel %vm1158, %v1184, %v1185
      %v1187 = vrot.slane %v620, 1
      %v1188 = vsel %vm1158, %v1185, %v1187
      %v1189 = vrot.slane %v621, 1
      %v1190 = vrot.slane %v622, 1
      %v1191 = vsel %vm1158, %v1189, %v1190
      %v1192 = vrot.slane %v623, 1
      %v1193 = vsel %vm1158, %v1190, %v1192
      %v1194 = vrot.slane %v624, 1
      %v1195 = vrot.slane %v625, 1
      %v1196 = vsel %vm1158, %v1194, %v1195
      %v1197 = vrot.slane %v626, 1
      %v1198 = vsel %vm1158, %v1195, %v1197
      %s1215 = scalar_lea.vmem %s3, 128
      %v1216 = vld [vmem:[%s1215] sm:$0xff]
      %v1217 = vld [vmem:[%s1215 + $0x8] sm:$0xff]
      %v1218 = vld [vmem:[%s1215 + $0x10] sm:$0xff]
      %v1219 = vld [vmem:[%s1215 + $0x18] sm:$0xff]
      %v1220 = vld [vmem:[%s1215 + $0x20] sm:$0xff]
      %v1221 = vld [vmem:[%s1215 + $0x28] sm:$0xff]
      %v1222 = vld [vmem:[%s1215 + $0x30] sm:$0xff]
      %v1223 = vld [vmem:[%s1215 + $0x38] sm:$0xff]
      %v1224 = vld [vmem:[%s1215 + $0x40] sm:$0xff]
      %v1225 = vld [vmem:[%s1215 + $0x48] sm:$0xff]
      %v1226 = vld [vmem:[%s1215 + $0x50] sm:$0xff]
      %v1227 = vld [vmem:[%s1215 + $0x58] sm:$0xff]
      %v1228 = vld [vmem:[%s1215 + $0x60] sm:$0xff]
      %v1229 = vld [vmem:[%s1215 + $0x68] sm:$0xff]
      %v1230 = vld [vmem:[%s1215 + $0x70] sm:$0xff]
      %v1231 = vld [vmem:[%s1215 + $0x78] sm:$0xff]
      %1232 = vmatprep.subr.mxu0 0.0
      %1233 = vmatpush1.msra.mxu0 %v1231
      %1234 = vmatprep.subr.mxu0 0.0
      %1235 = vmatpush1.msra.mxu0 %v1230
      %1236 = vmatprep.subr.mxu0 0.0
      %1237 = vmatpush1.msra.mxu0 %v1229
      %1238 = vmatprep.subr.mxu0 0.0
      %1239 = vmatpush1.msra.mxu0 %v1228
      %1240 = vmatprep.subr.mxu0 0.0
      %1241 = vmatpush1.msra.mxu0 %v1227
      %1242 = vmatprep.subr.mxu0 0.0
      %1243 = vmatpush1.msra.mxu0 %v1226
      %1244 = vmatprep.subr.mxu0 0.0
      %1245 = vmatpush1.msra.mxu0 %v1225
      %1246 = vmatprep.subr.mxu0 0.0
      %1247 = vmatpush1.msra.mxu0 %v1224
      %1248 = vmatprep.subr.mxu0 0.0
      %1249 = vmatpush1.msra.mxu0 %v1223
      %1250 = vmatprep.subr.mxu0 0.0
      %1251 = vmatpush1.msra.mxu0 %v1222
      %1252 = vmatprep.subr.mxu0 0.0
      %1253 = vmatpush1.msra.mxu0 %v1221
      %1254 = vmatprep.subr.mxu0 0.0
      %1255 = vmatpush1.msra.mxu0 %v1220
      %1256 = vmatprep.subr.mxu0 0.0
      %1257 = vmatpush1.msra.mxu0 %v1219
      %1258 = vmatprep.subr.mxu0 0.0
      %1259 = vmatpush1.msra.mxu0 %v1218
      %1260 = vmatprep.subr.mxu0 0.0
      %1261 = vmatpush1.msra.mxu0 %v1217
      %1262 = vmatprep.subr.mxu0 0.0
      %1263 = vmatpush1.msra.mxu0 %v1216
      %1264 = vmatprep.subr.mxu0 0.0
      %1265 = vmatpush2.msra.mxu0 0.0
      %1266 = vmatprep.subr.mxu0 0.0
      %1267 = vmatpush2.msra.mxu0 0.0
      %1268 = vmatprep.subr.mxu0 0.0
      %1269 = vmatpush2.msra.mxu0 0.0
      %1270 = vmatprep.subr.mxu0 0.0
      %1271 = vmatpush2.msra.mxu0 0.0
      %1272 = vmatprep.subr.mxu0 0.0
      %1273 = vmatpush2.msra.mxu0 0.0
      %1274 = vmatprep.subr.mxu0 0.0
      %1275 = vmatpush2.msra.mxu0 0.0
      %1276 = vmatprep.subr.mxu0 0.0
      %1277 = vmatpush2.msra.mxu0 0.0
      %1278 = vmatprep.subr.mxu0 0.0
      %1279 = vmatpush2.msra.mxu0 0.0
      %1280 = vmatprep.subr.mxu0 0.0
      %1281 = vmatpush2.msra.mxu0 0.0
      %1282 = vmatprep.subr.mxu0 0.0
      %1283 = vmatpush2.msra.mxu0 0.0
      %1284 = vmatprep.subr.mxu0 0.0
      %1285 = vmatpush2.msra.mxu0 0.0
      %1286 = vmatprep.subr.mxu0 0.0
      %1287 = vmatpush2.msra.mxu0 0.0
      %1288 = vmatprep.subr.mxu0 0.0
      %1289 = vmatpush2.msra.mxu0 0.0
      %1290 = vmatprep.subr.mxu0 0.0
      %1291 = vmatpush2.msra.mxu0 0.0
      %1292 = vmatprep.subr.mxu0 0.0
      %1293 = vmatpush2.msra.mxu0 0.0
      %1294 = vmatprep.subr.mxu0 0.0
      %1295 = vmatpush2.msra.mxu0 0.0
      %1296 = vmatprep.mubr.f32.mxu0 0.0
      %1297 = vmatmul.mubr.f32.gmra.mxu0 %v1161
      %v1298 = vpop.f32.mrf.mxu0
      %v1299 = vadd.f32 0.0, %v1298
      %v1300 = vpop.f32.mrf.mxu0
      %1301 = vmatprep.mubr.f32.mxu0 0.0
      %1302 = vmatmul.mubr.f32.gmra.mxu0 %v1163
      %v1303 = vpop.f32.mrf.mxu0
      %v1304 = vadd.f32 0.0, %v1303
      %v1305 = vpop.f32.mrf.mxu0
      %1306 = vmatprep.mubr.f32.mxu0 0.0
      %1307 = vmatmul.mubr.f32.gmra.mxu0 %v1166
      %v1308 = vpop.f32.mrf.mxu0
      %v1309 = vadd.f32 0.0, %v1308
      %v1310 = vpop.f32.mrf.mxu0
      %1311 = vmatprep.mubr.f32.mxu0 0.0
      %1312 = vmatmul.mubr.f32.gmra.mxu0 %v1168
      %v1313 = vpop.f32.mrf.mxu0
      %v1314 = vadd.f32 0.0, %v1313
      %v1315 = vpop.f32.mrf.mxu0
      %1316 = vmatprep.mubr.f32.mxu0 0.0
      %1317 = vmatmul.mubr.f32.gmra.mxu0 %v1171
      %v1318 = vpop.f32.mrf.mxu0
      %v1319 = vadd.f32 0.0, %v1318
      %v1320 = vpop.f32.mrf.mxu0
      %1321 = vmatprep.mubr.f32.mxu0 0.0
      %1322 = vmatmul.mubr.f32.gmra.mxu0 %v1173
      %v1323 = vpop.f32.mrf.mxu0
      %v1324 = vadd.f32 0.0, %v1323
      %v1325 = vpop.f32.mrf.mxu0
      %1326 = vmatprep.mubr.f32.mxu0 0.0
      %1327 = vmatmul.mubr.f32.gmra.mxu0 %v1176
      %v1328 = vpop.f32.mrf.mxu0
      %v1329 = vadd.f32 0.0, %v1328
      %v1330 = vpop.f32.mrf.mxu0
      %1331 = vmatprep.mubr.f32.mxu0 0.0
      %1332 = vmatmul.mubr.f32.gmra.mxu0 %v1178
      %v1333 = vpop.f32.mrf.mxu0
      %v1334 = vadd.f32 0.0, %v1333
      %v1335 = vpop.f32.mrf.mxu0
      %1336 = vmatprep.mubr.f32.mxu0 0.0
      %1337 = vmatmul.mubr.f32.gmra.mxu0 %v1181
      %v1338 = vpop.f32.mrf.mxu0
      %v1339 = vadd.f32 0.0, %v1338
      %v1340 = vpop.f32.mrf.mxu0
      %1341 = vmatprep.mubr.f32.mxu0 0.0
      %1342 = vmatmul.mubr.f32.gmra.mxu0 %v1183
      %v1343 = vpop.f32.mrf.mxu0
      %v1344 = vadd.f32 0.0, %v1343
      %v1345 = vpop.f32.mrf.mxu0
      %1346 = vmatprep.mubr.f32.mxu0 0.0
      %1347 = vmatmul.mubr.f32.gmra.mxu0 %v1186
      %v1348 = vpop.f32.mrf.mxu0
      %v1349 = vadd.f32 0.0, %v1348
      %v1350 = vpop.f32.mrf.mxu0
      %1351 = vmatprep.mubr.f32.mxu0 0.0
      %1352 = vmatmul.mubr.f32.gmra.mxu0 %v1188
      %v1353 = vpop.f32.mrf.mxu0
      %v1354 = vadd.f32 0.0, %v1353
      %v1355 = vpop.f32.mrf.mxu0
      %1356 = vmatprep.mubr.f32.mxu0 0.0
      %1357 = vmatmul.mubr.f32.gmra.mxu0 %v1191
      %v1358 = vpop.f32.mrf.mxu0
      %v1359 = vadd.f32 0.0, %v1358
      %v1360 = vpop.f32.mrf.mxu0
      %1361 = vmatprep.mubr.f32.mxu0 0.0
      %1362 = vmatmul.mubr.f32.gmra.mxu0 %v1193
      %v1363 = vpop.f32.mrf.mxu0
      %v1364 = vadd.f32 0.0, %v1363
      %v1365 = vpop.f32.mrf.mxu0
      %1366 = vmatprep.mubr.f32.mxu0 0.0
      %1367 = vmatmul.mubr.f32.gmra.mxu0 %v1196
      %v1368 = vpop.f32.mrf.mxu0
      %v1369 = vadd.f32 0.0, %v1368
      %v1370 = vpop.f32.mrf.mxu0
      %1371 = vmatprep.mubr.f32.mxu0 0.0
      %1372 = vmatmul.mubr.f32.gmra.mxu0 %v1198
      %v1373 = vpop.f32.mrf.mxu0
      %v1374 = vadd.f32 0.0, %v1373
      %v1375 = vpop.f32.mrf.mxu0
      %1376 = vdwg.mxu0
      %v1377 = vadd.f32 %v1118, %v1299
      %v1378 = vadd.f32 %v1119, %v1304
      %v1379 = vadd.f32 %v1120, %v1309
      %v1380 = vadd.f32 %v1121, %v1314
      %v1381 = vadd.f32 %v1122, %v1319
      %v1382 = vadd.f32 %v1123, %v1324
      %v1383 = vadd.f32 %v1124, %v1329
      %v1384 = vadd.f32 %v1125, %v1334
      %v1385 = vadd.f32 %v1126, %v1339
      %v1386 = vadd.f32 %v1127, %v1344
      %v1387 = vadd.f32 %v1128, %v1349
      %v1388 = vadd.f32 %v1129, %v1354
      %v1389 = vadd.f32 %v1130, %v1359
      %v1390 = vadd.f32 %v1131, %v1364
      %v1391 = vadd.f32 %v1132, %v1369
      %v1392 = vadd.f32 %v1133, %v1374
      %v1396 = vrot.slane %v627, 1
      %v1397 = vrot.slane %v628, 1
      %v1398 = vsel %vm1158, %v1396, %v1397
      %v1399 = vrot.slane %v629, 1
      %v1400 = vsel %vm1158, %v1397, %v1399
      %s1403 = scalar_lea.vmem %s3, 512
      %v1404 = vld [vmem:[%s1403] sm:$0xff]
      %v1405 = vld [vmem:[%s1403 + $0x8] sm:$0xff]
      %v1406 = vld [vmem:[%s1403 + $0x10] sm:$0xff]
      %v1407 = vld [vmem:[%s1403 + $0x18] sm:$0xff]
      %v1408 = vld [vmem:[%s1403 + $0x20] sm:$0xff]
      %v1409 = vld [vmem:[%s1403 + $0x28] sm:$0xff]
      %v1410 = vld [vmem:[%s1403 + $0x30] sm:$0xff]
      %v1411 = vld [vmem:[%s1403 + $0x38] sm:$0xff]
      %v1412 = vld [vmem:[%s1403 + $0x40] sm:$0xff]
      %v1413 = vld [vmem:[%s1403 + $0x48] sm:$0xff]
      %v1414 = vld [vmem:[%s1403 + $0x50] sm:$0xff]
      %v1415 = vld [vmem:[%s1403 + $0x58] sm:$0xff]
      %v1416 = vld [vmem:[%s1403 + $0x60] sm:$0xff]
      %v1417 = vld [vmem:[%s1403 + $0x68] sm:$0xff]
      %v1418 = vld [vmem:[%s1403 + $0x70] sm:$0xff]
      %v1419 = vld [vmem:[%s1403 + $0x78] sm:$0xff]
      %1420 = vmatprep.subr.mxu0 0.0
      %1421 = vmatpush1.msra.mxu0 %v1419
      %1422 = vmatprep.subr.mxu0 0.0
      %1423 = vmatpush1.msra.mxu0 %v1418
      %1424 = vmatprep.subr.mxu0 0.0
      %1425 = vmatpush1.msra.mxu0 %v1417
      %1426 = vmatprep.subr.mxu0 0.0
      %1427 = vmatpush1.msra.mxu0 %v1416
      %1428 = vmatprep.subr.mxu0 0.0
      %1429 = vmatpush1.msra.mxu0 %v1415
      %1430 = vmatprep.subr.mxu0 0.0
      %1431 = vmatpush1.msra.mxu0 %v1414
      %1432 = vmatprep.subr.mxu0 0.0
      %1433 = vmatpush1.msra.mxu0 %v1413
      %1434 = vmatprep.subr.mxu0 0.0
      %1435 = vmatpush1.msra.mxu0 %v1412
      %1436 = vmatprep.subr.mxu0 0.0
      %1437 = vmatpush1.msra.mxu0 %v1411
      %1438 = vmatprep.subr.mxu0 0.0
      %1439 = vmatpush1.msra.mxu0 %v1410
      %1440 = vmatprep.subr.mxu0 0.0
      %1441 = vmatpush1.msra.mxu0 %v1409
      %1442 = vmatprep.subr.mxu0 0.0
      %1443 = vmatpush1.msra.mxu0 %v1408
      %1444 = vmatprep.subr.mxu0 0.0
      %1445 = vmatpush1.msra.mxu0 %v1407
      %1446 = vmatprep.subr.mxu0 0.0
      %1447 = vmatpush1.msra.mxu0 %v1406
      %1448 = vmatprep.subr.mxu0 0.0
      %1449 = vmatpush1.msra.mxu0 %v1405
      %1450 = vmatprep.subr.mxu0 0.0
      %1451 = vmatpush1.msra.mxu0 %v1404
      %1452 = vmatprep.subr.mxu0 0.0
      %1453 = vmatpush2.msra.mxu0 0.0
      %1454 = vmatprep.subr.mxu0 0.0
      %1455 = vmatpush2.msra.mxu0 0.0
      %1456 = vmatprep.subr.mxu0 0.0
      %1457 = vmatpush2.msra.mxu0 0.0
      %1458 = vmatprep.subr.mxu0 0.0
      %1459 = vmatpush2.msra.mxu0 0.0
      %1460 = vmatprep.subr.mxu0 0.0
      %1461 = vmatpush2.msra.mxu0 0.0
      %1462 = vmatprep.subr.mxu0 0.0
      %1463 = vmatpush2.msra.mxu0 0.0
      %1464 = vmatprep.subr.mxu0 0.0
      %1465 = vmatpush2.msra.mxu0 0.0
      %1466 = vmatprep.subr.mxu0 0.0
      %1467 = vmatpush2.msra.mxu0 0.0
      %1468 = vmatprep.subr.mxu0 0.0
      %1469 = vmatpush2.msra.mxu0 0.0
      %1470 = vmatprep.subr.mxu0 0.0
      %1471 = vmatpush2.msra.mxu0 0.0
      %1472 = vmatprep.subr.mxu0 0.0
      %1473 = vmatpush2.msra.mxu0 0.0
      %1474 = vmatprep.subr.mxu0 0.0
      %1475 = vmatpush2.msra.mxu0 0.0
      %1476 = vmatprep.subr.mxu0 0.0
      %1477 = vmatpush2.msra.mxu0 0.0
      %1478 = vmatprep.subr.mxu0 0.0
      %1479 = vmatpush2.msra.mxu0 0.0
      %1480 = vmatprep.subr.mxu0 0.0
      %1481 = vmatpush2.msra.mxu0 0.0
      %1482 = vmatprep.subr.mxu0 0.0
      %1483 = vmatpush2.msra.mxu0 0.0
      %1484 = vmatprep.mubr.f32.mxu0 0.0
      %1485 = vmatmul.mubr.f32.gmra.mxu0 %v1166
      %v1486 = vpop.f32.mrf.mxu0
      %v1487 = vadd.f32 0.0, %v1486
      %v1488 = vpop.f32.mrf.mxu0
      %1489 = vmatprep.mubr.f32.mxu0 0.0
      %1490 = vmatmul.mubr.f32.gmra.mxu0 %v1168
      %v1491 = vpop.f32.mrf.mxu0
      %v1492 = vadd.f32 0.0, %v1491
      %v1493 = vpop.f32.mrf.mxu0
      %1494 = vmatprep.mubr.f32.mxu0 0.0
      %1495 = vmatmul.mubr.f32.gmra.mxu0 %v1171
      %v1496 = vpop.f32.mrf.mxu0
      %v1497 = vadd.f32 0.0, %v1496
      %v1498 = vpop.f32.mrf.mxu0
      %1499 = vmatprep.mubr.f32.mxu0 0.0
      %1500 = vmatmul.mubr.f32.gmra.mxu0 %v1173
      %v1501 = vpop.f32.mrf.mxu0
      %v1502 = vadd.f32 0.0, %v1501
      %v1503 = vpop.f32.mrf.mxu0
      %1504 = vmatprep.mubr.f32.mxu0 0.0
      %1505 = vmatmul.mubr.f32.gmra.mxu0 %v1176
      %v1506 = vpop.f32.mrf.mxu0
      %v1507 = vadd.f32 0.0, %v1506
      %v1508 = vpop.f32.mrf.mxu0
      %1509 = vmatprep.mubr.f32.mxu0 0.0
      %1510 = vmatmul.mubr.f32.gmra.mxu0 %v1178
      %v1511 = vpop.f32.mrf.mxu0
      %v1512 = vadd.f32 0.0, %v1511
      %v1513 = vpop.f32.mrf.mxu0
      %1514 = vmatprep.mubr.f32.mxu0 0.0
      %1515 = vmatmul.mubr.f32.gmra.mxu0 %v1181
      %v1516 = vpop.f32.mrf.mxu0
      %v1517 = vadd.f32 0.0, %v1516
      %v1518 = vpop.f32.mrf.mxu0
      %1519 = vmatprep.mubr.f32.mxu0 0.0
      %1520 = vmatmul.mubr.f32.gmra.mxu0 %v1183
      %v1521 = vpop.f32.mrf.mxu0
      %v1522 = vadd.f32 0.0, %v1521
      %v1523 = vpop.f32.mrf.mxu0
      %1524 = vmatprep.mubr.f32.mxu0 0.0
      %1525 = vmatmul.mubr.f32.gmra.mxu0 %v1186
      %v1526 = vpop.f32.mrf.mxu0
      %v1527 = vadd.f32 0.0, %v1526
      %v1528 = vpop.f32.mrf.mxu0
      %1529 = vmatprep.mubr.f32.mxu0 0.0
      %1530 = vmatmul.mubr.f32.gmra.mxu0 %v1188
      %v1531 = vpop.f32.mrf.mxu0
      %v1532 = vadd.f32 0.0, %v1531
      %v1533 = vpop.f32.mrf.mxu0
      %1534 = vmatprep.mubr.f32.mxu0 0.0
      %1535 = vmatmul.mubr.f32.gmra.mxu0 %v1191
      %v1536 = vpop.f32.mrf.mxu0
      %v1537 = vadd.f32 0.0, %v1536
      %v1538 = vpop.f32.mrf.mxu0
      %1539 = vmatprep.mubr.f32.mxu0 0.0
      %1540 = vmatmul.mubr.f32.gmra.mxu0 %v1193
      %v1541 = vpop.f32.mrf.mxu0
      %v1542 = vadd.f32 0.0, %v1541
      %v1543 = vpop.f32.mrf.mxu0
      %1544 = vmatprep.mubr.f32.mxu0 0.0
      %1545 = vmatmul.mubr.f32.gmra.mxu0 %v1196
      %v1546 = vpop.f32.mrf.mxu0
      %v1547 = vadd.f32 0.0, %v1546
      %v1548 = vpop.f32.mrf.mxu0
      %1549 = vmatprep.mubr.f32.mxu0 0.0
      %1550 = vmatmul.mubr.f32.gmra.mxu0 %v1198
      %v1551 = vpop.f32.mrf.mxu0
      %v1552 = vadd.f32 0.0, %v1551
      %v1553 = vpop.f32.mrf.mxu0
      %1554 = vmatprep.mubr.f32.mxu0 0.0
      %1555 = vmatmul.mubr.f32.gmra.mxu0 %v1398
      %v1556 = vpop.f32.mrf.mxu0
      %v1557 = vadd.f32 0.0, %v1556
      %v1558 = vpop.f32.mrf.mxu0
      %1559 = vmatprep.mubr.f32.mxu0 0.0
      %1560 = vmatmul.mubr.f32.gmra.mxu0 %v1400
      %v1561 = vpop.f32.mrf.mxu0
      %v1562 = vadd.f32 0.0, %v1561
      %v1563 = vpop.f32.mrf.mxu0
      %1564 = vdwg.mxu0
      %v1565 = vadd.f32 %v1377, %v1487
      %v1566 = vadd.f32 %v1378, %v1492
      %v1567 = vadd.f32 %v1379, %v1497
      %v1568 = vadd.f32 %v1380, %v1502
      %v1569 = vadd.f32 %v1381, %v1507
      %v1570 = vadd.f32 %v1382, %v1512
      %v1571 = vadd.f32 %v1383, %v1517
      %v1572 = vadd.f32 %v1384, %v1522
      %v1573 = vadd.f32 %v1385, %v1527
      %v1574 = vadd.f32 %v1386, %v1532
      %v1575 = vadd.f32 %v1387, %v1537
      %v1576 = vadd.f32 %v1388, %v1542
      %v1577 = vadd.f32 %v1389, %v1547
      %v1578 = vadd.f32 %v1390, %v1552
      %v1579 = vadd.f32 %v1391, %v1557
      %v1580 = vadd.f32 %v1392, %v1562
      %v1584 = vrot.slane %v630, 1
      %v1585 = vrot.slane %v631, 1
      %v1586 = vsel %vm1158, %v1584, %v1585
      %v1587 = vrot.slane %v632, 1
      %v1588 = vsel %vm1158, %v1585, %v1587
      %s1591 = scalar_lea.vmem %s3, 896
      %v1592 = vld [vmem:[%s1591] sm:$0xff]
      %v1593 = vld [vmem:[%s1591 + $0x8] sm:$0xff]
      %v1594 = vld [vmem:[%s1591 + $0x10] sm:$0xff]
      %v1595 = vld [vmem:[%s1591 + $0x18] sm:$0xff]
      %v1596 = vld [vmem:[%s1591 + $0x20] sm:$0xff]
      %v1597 = vld [vmem:[%s1591 + $0x28] sm:$0xff]
      %v1598 = vld [vmem:[%s1591 + $0x30] sm:$0xff]
      %v1599 = vld [vmem:[%s1591 + $0x38] sm:$0xff]
      %v1600 = vld [vmem:[%s1591 + $0x40] sm:$0xff]
      %v1601 = vld [vmem:[%s1591 + $0x48] sm:$0xff]
      %v1602 = vld [vmem:[%s1591 + $0x50] sm:$0xff]
      %v1603 = vld [vmem:[%s1591 + $0x58] sm:$0xff]
      %v1604 = vld [vmem:[%s1591 + $0x60] sm:$0xff]
      %v1605 = vld [vmem:[%s1591 + $0x68] sm:$0xff]
      %v1606 = vld [vmem:[%s1591 + $0x70] sm:$0xff]
      %v1607 = vld [vmem:[%s1591 + $0x78] sm:$0xff]
      %1608 = vmatprep.subr.mxu0 0.0
      %1609 = vmatpush1.msra.mxu0 %v1607
      %1610 = vmatprep.subr.mxu0 0.0
      %1611 = vmatpush1.msra.mxu0 %v1606
      %1612 = vmatprep.subr.mxu0 0.0
      %1613 = vmatpush1.msra.mxu0 %v1605
      %1614 = vmatprep.subr.mxu0 0.0
      %1615 = vmatpush1.msra.mxu0 %v1604
      %1616 = vmatprep.subr.mxu0 0.0
      %1617 = vmatpush1.msra.mxu0 %v1603
      %1618 = vmatprep.subr.mxu0 0.0
      %1619 = vmatpush1.msra.mxu0 %v1602
      %1620 = vmatprep.subr.mxu0 0.0
      %1621 = vmatpush1.msra.mxu0 %v1601
      %1622 = vmatprep.subr.mxu0 0.0
      %1623 = vmatpush1.msra.mxu0 %v1600
      %1624 = vmatprep.subr.mxu0 0.0
      %1625 = vmatpush1.msra.mxu0 %v1599
      %1626 = vmatprep.subr.mxu0 0.0
      %1627 = vmatpush1.msra.mxu0 %v1598
      %1628 = vmatprep.subr.mxu0 0.0
      %1629 = vmatpush1.msra.mxu0 %v1597
      %1630 = vmatprep.subr.mxu0 0.0
      %1631 = vmatpush1.msra.mxu0 %v1596
      %1632 = vmatprep.subr.mxu0 0.0
      %1633 = vmatpush1.msra.mxu0 %v1595
      %1634 = vmatprep.subr.mxu0 0.0
      %1635 = vmatpush1.msra.mxu0 %v1594
      %1636 = vmatprep.subr.mxu0 0.0
      %1637 = vmatpush1.msra.mxu0 %v1593
      %1638 = vmatprep.subr.mxu0 0.0
      %1639 = vmatpush1.msra.mxu0 %v1592
      %1640 = vmatprep.subr.mxu0 0.0
      %1641 = vmatpush2.msra.mxu0 0.0
      %1642 = vmatprep.subr.mxu0 0.0
      %1643 = vmatpush2.msra.mxu0 0.0
      %1644 = vmatprep.subr.mxu0 0.0
      %1645 = vmatpush2.msra.mxu0 0.0
      %1646 = vmatprep.subr.mxu0 0.0
      %1647 = vmatpush2.msra.mxu0 0.0
      %1648 = vmatprep.subr.mxu0 0.0
      %1649 = vmatpush2.msra.mxu0 0.0
      %1650 = vmatprep.subr.mxu0 0.0
      %1651 = vmatpush2.msra.mxu0 0.0
      %1652 = vmatprep.subr.mxu0 0.0
      %1653 = vmatpush2.msra.mxu0 0.0
      %1654 = vmatprep.subr.mxu0 0.0
      %1655 = vmatpush2.msra.mxu0 0.0
      %1656 = vmatprep.subr.mxu0 0.0
      %1657 = vmatpush2.msra.mxu0 0.0
      %1658 = vmatprep.subr.mxu0 0.0
      %1659 = vmatpush2.msra.mxu0 0.0
      %1660 = vmatprep.subr.mxu0 0.0
      %1661 = vmatpush2.msra.mxu0 0.0
      %1662 = vmatprep.subr.mxu0 0.0
      %1663 = vmatpush2.msra.mxu0 0.0
      %1664 = vmatprep.subr.mxu0 0.0
      %1665 = vmatpush2.msra.mxu0 0.0
      %1666 = vmatprep.subr.mxu0 0.0
      %1667 = vmatpush2.msra.mxu0 0.0
      %1668 = vmatprep.subr.mxu0 0.0
      %1669 = vmatpush2.msra.mxu0 0.0
      %1670 = vmatprep.subr.mxu0 0.0
      %1671 = vmatpush2.msra.mxu0 0.0
      %1672 = vmatprep.mubr.f32.mxu0 0.0
      %1673 = vmatmul.mubr.f32.gmra.mxu0 %v1171
      %v1674 = vpop.f32.mrf.mxu0
      %v1675 = vadd.f32 0.0, %v1674
      %v1676 = vpop.f32.mrf.mxu0
      %1677 = vmatprep.mubr.f32.mxu0 0.0
      %1678 = vmatmul.mubr.f32.gmra.mxu0 %v1173
      %v1679 = vpop.f32.mrf.mxu0
      %v1680 = vadd.f32 0.0, %v1679
      %v1681 = vpop.f32.mrf.mxu0
      %1682 = vmatprep.mubr.f32.mxu0 0.0
      %1683 = vmatmul.mubr.f32.gmra.mxu0 %v1176
      %v1684 = vpop.f32.mrf.mxu0
      %v1685 = vadd.f32 0.0, %v1684
      %v1686 = vpop.f32.mrf.mxu0
      %1687 = vmatprep.mubr.f32.mxu0 0.0
      %1688 = vmatmul.mubr.f32.gmra.mxu0 %v1178
      %v1689 = vpop.f32.mrf.mxu0
      %v1690 = vadd.f32 0.0, %v1689
      %v1691 = vpop.f32.mrf.mxu0
      %1692 = vmatprep.mubr.f32.mxu0 0.0
      %1693 = vmatmul.mubr.f32.gmra.mxu0 %v1181
      %v1694 = vpop.f32.mrf.mxu0
      %v1695 = vadd.f32 0.0, %v1694
      %v1696 = vpop.f32.mrf.mxu0
      %1697 = vmatprep.mubr.f32.mxu0 0.0
      %1698 = vmatmul.mubr.f32.gmra.mxu0 %v1183
      %v1699 = vpop.f32.mrf.mxu0
      %v1700 = vadd.f32 0.0, %v1699
      %v1701 = vpop.f32.mrf.mxu0
      %1702 = vmatprep.mubr.f32.mxu0 0.0
      %1703 = vmatmul.mubr.f32.gmra.mxu0 %v1186
      %v1704 = vpop.f32.mrf.mxu0
      %v1705 = vadd.f32 0.0, %v1704
      %v1706 = vpop.f32.mrf.mxu0
      %1707 = vmatprep.mubr.f32.mxu0 0.0
      %1708 = vmatmul.mubr.f32.gmra.mxu0 %v1188
      %v1709 = vpop.f32.mrf.mxu0
      %v1710 = vadd.f32 0.0, %v1709
      %v1711 = vpop.f32.mrf.mxu0
      %1712 = vmatprep.mubr.f32.mxu0 0.0
      %1713 = vmatmul.mubr.f32.gmra.mxu0 %v1191
      %v1714 = vpop.f32.mrf.mxu0
      %v1715 = vadd.f32 0.0, %v1714
      %v1716 = vpop.f32.mrf.mxu0
      %1717 = vmatprep.mubr.f32.mxu0 0.0
      %1718 = vmatmul.mubr.f32.gmra.mxu0 %v1193
      %v1719 = vpop.f32.mrf.mxu0
      %v1720 = vadd.f32 0.0, %v1719
      %v1721 = vpop.f32.mrf.mxu0
      %1722 = vmatprep.mubr.f32.mxu0 0.0
      %1723 = vmatmul.mubr.f32.gmra.mxu0 %v1196
      %v1724 = vpop.f32.mrf.mxu0
      %v1725 = vadd.f32 0.0, %v1724
      %v1726 = vpop.f32.mrf.mxu0
      %1727 = vmatprep.mubr.f32.mxu0 0.0
      %1728 = vmatmul.mubr.f32.gmra.mxu0 %v1198
      %v1729 = vpop.f32.mrf.mxu0
      %v1730 = vadd.f32 0.0, %v1729
      %v1731 = vpop.f32.mrf.mxu0
      %1732 = vmatprep.mubr.f32.mxu0 0.0
      %1733 = vmatmul.mubr.f32.gmra.mxu0 %v1398
      %v1734 = vpop.f32.mrf.mxu0
      %v1735 = vadd.f32 0.0, %v1734
      %v1736 = vpop.f32.mrf.mxu0
      %1737 = vmatprep.mubr.f32.mxu0 0.0
      %1738 = vmatmul.mubr.f32.gmra.mxu0 %v1400
      %v1739 = vpop.f32.mrf.mxu0
      %v1740 = vadd.f32 0.0, %v1739
      %v1741 = vpop.f32.mrf.mxu0
      %1742 = vmatprep.mubr.f32.mxu0 0.0
      %1743 = vmatmul.mubr.f32.gmra.mxu0 %v1586
      %v1744 = vpop.f32.mrf.mxu0
      %v1745 = vadd.f32 0.0, %v1744
      %v1746 = vpop.f32.mrf.mxu0
      %1747 = vmatprep.mubr.f32.mxu0 0.0
      %1748 = vmatmul.mubr.f32.gmra.mxu0 %v1588
      %v1749 = vpop.f32.mrf.mxu0
      %v1750 = vadd.f32 0.0, %v1749
      %v1751 = vpop.f32.mrf.mxu0
      %1752 = vdwg.mxu0
      %v1753 = vadd.f32 %v1565, %v1675
      %v1754 = vadd.f32 %v1566, %v1680
      %v1755 = vadd.f32 %v1567, %v1685
      %v1756 = vadd.f32 %v1568, %v1690
      %v1757 = vadd.f32 %v1569, %v1695
      %v1758 = vadd.f32 %v1570, %v1700
      %v1759 = vadd.f32 %v1571, %v1705
      %v1760 = vadd.f32 %v1572, %v1710
      %v1761 = vadd.f32 %v1573, %v1715
      %v1762 = vadd.f32 %v1574, %v1720
      %v1763 = vadd.f32 %v1575, %v1725
      %v1764 = vadd.f32 %v1576, %v1730
      %v1765 = vadd.f32 %v1577, %v1735
      %v1766 = vadd.f32 %v1578, %v1740
      %v1767 = vadd.f32 %v1579, %v1745
      %v1768 = vadd.f32 %v1580, %v1750
      %vm1769 = vcmask 1045504
      %v1770 = vrot.slane %v603, 2
      %v1771 = vrot.slane %v604, 2
      %v1772 = vsel %vm1769, %v1770, %v1771
      %v1773 = vrot.slane %v605, 2
      %v1774 = vsel %vm1769, %v1771, %v1773
      %v1775 = vrot.slane %v606, 2
      %v1776 = vrot.slane %v607, 2
      %v1777 = vsel %vm1769, %v1775, %v1776
      %v1778 = vrot.slane %v608, 2
      %v1779 = vsel %vm1769, %v1776, %v1778
      %v1780 = vrot.slane %v609, 2
      %v1781 = vrot.slane %v610, 2
      %v1782 = vsel %vm1769, %v1780, %v1781
      %v1783 = vrot.slane %v611, 2
      %v1784 = vsel %vm1769, %v1781, %v1783
      %v1785 = vrot.slane %v612, 2
      %v1786 = vrot.slane %v613, 2
      %v1787 = vsel %vm1769, %v1785, %v1786
      %v1788 = vrot.slane %v614, 2
      %v1789 = vsel %vm1769, %v1786, %v1788
      %v1790 = vrot.slane %v615, 2
      %v1791 = vrot.slane %v616, 2
      %v1792 = vsel %vm1769, %v1790, %v1791
      %v1793 = vrot.slane %v617, 2
      %v1794 = vsel %vm1769, %v1791, %v1793
      %v1795 = vrot.slane %v618, 2
      %v1796 = vrot.slane %v619, 2
      %v1797 = vsel %vm1769, %v1795, %v1796
      %v1798 = vrot.slane %v620, 2
      %v1799 = vsel %vm1769, %v1796, %v1798
      %v1800 = vrot.slane %v621, 2
      %v1801 = vrot.slane %v622, 2
      %v1802 = vsel %vm1769, %v1800, %v1801
      %v1803 = vrot.slane %v623, 2
      %v1804 = vsel %vm1769, %v1801, %v1803
      %v1805 = vrot.slane %v624, 2
      %v1806 = vrot.slane %v625, 2
      %v1807 = vsel %vm1769, %v1805, %v1806
      %v1808 = vrot.slane %v626, 2
      %v1809 = vsel %vm1769, %v1806, %v1808
      %s1826 = scalar_lea.vmem %s3, 256
      %v1827 = vld [vmem:[%s1826] sm:$0xff]
      %v1828 = vld [vmem:[%s1826 + $0x8] sm:$0xff]
      %v1829 = vld [vmem:[%s1826 + $0x10] sm:$0xff]
      %v1830 = vld [vmem:[%s1826 + $0x18] sm:$0xff]
      %v1831 = vld [vmem:[%s1826 + $0x20] sm:$0xff]
      %v1832 = vld [vmem:[%s1826 + $0x28] sm:$0xff]
      %v1833 = vld [vmem:[%s1826 + $0x30] sm:$0xff]
      %v1834 = vld [vmem:[%s1826 + $0x38] sm:$0xff]
      %v1835 = vld [vmem:[%s1826 + $0x40] sm:$0xff]
      %v1836 = vld [vmem:[%s1826 + $0x48] sm:$0xff]
      %v1837 = vld [vmem:[%s1826 + $0x50] sm:$0xff]
      %v1838 = vld [vmem:[%s1826 + $0x58] sm:$0xff]
      %v1839 = vld [vmem:[%s1826 + $0x60] sm:$0xff]
      %v1840 = vld [vmem:[%s1826 + $0x68] sm:$0xff]
      %v1841 = vld [vmem:[%s1826 + $0x70] sm:$0xff]
      %v1842 = vld [vmem:[%s1826 + $0x78] sm:$0xff]
      %1843 = vmatprep.subr.mxu0 0.0
      %1844 = vmatpush1.msra.mxu0 %v1842
      %1845 = vmatprep.subr.mxu0 0.0
      %1846 = vmatpush1.msra.mxu0 %v1841
      %1847 = vmatprep.subr.mxu0 0.0
      %1848 = vmatpush1.msra.mxu0 %v1840
      %1849 = vmatprep.subr.mxu0 0.0
      %1850 = vmatpush1.msra.mxu0 %v1839
      %1851 = vmatprep.subr.mxu0 0.0
      %1852 = vmatpush1.msra.mxu0 %v1838
      %1853 = vmatprep.subr.mxu0 0.0
      %1854 = vmatpush1.msra.mxu0 %v1837
      %1855 = vmatprep.subr.mxu0 0.0
      %1856 = vmatpush1.msra.mxu0 %v1836
      %1857 = vmatprep.subr.mxu0 0.0
      %1858 = vmatpush1.msra.mxu0 %v1835
      %1859 = vmatprep.subr.mxu0 0.0
      %1860 = vmatpush1.msra.mxu0 %v1834
      %1861 = vmatprep.subr.mxu0 0.0
      %1862 = vmatpush1.msra.mxu0 %v1833
      %1863 = vmatprep.subr.mxu0 0.0
      %1864 = vmatpush1.msra.mxu0 %v1832
      %1865 = vmatprep.subr.mxu0 0.0
      %1866 = vmatpush1.msra.mxu0 %v1831
      %1867 = vmatprep.subr.mxu0 0.0
      %1868 = vmatpush1.msra.mxu0 %v1830
      %1869 = vmatprep.subr.mxu0 0.0
      %1870 = vmatpush1.msra.mxu0 %v1829
      %1871 = vmatprep.subr.mxu0 0.0
      %1872 = vmatpush1.msra.mxu0 %v1828
      %1873 = vmatprep.subr.mxu0 0.0
      %1874 = vmatpush1.msra.mxu0 %v1827
      %1875 = vmatprep.subr.mxu0 0.0
      %1876 = vmatpush2.msra.mxu0 0.0
      %1877 = vmatprep.subr.mxu0 0.0
      %1878 = vmatpush2.msra.mxu0 0.0
      %1879 = vmatprep.subr.mxu0 0.0
      %1880 = vmatpush2.msra.mxu0 0.0
      %1881 = vmatprep.subr.mxu0 0.0
      %1882 = vmatpush2.msra.mxu0 0.0
      %1883 = vmatprep.subr.mxu0 0.0
      %1884 = vmatpush2.msra.mxu0 0.0
      %1885 = vmatprep.subr.mxu0 0.0
      %1886 = vmatpush2.msra.mxu0 0.0
      %1887 = vmatprep.subr.mxu0 0.0
      %1888 = vmatpush2.msra.mxu0 0.0
      %1889 = vmatprep.subr.mxu0 0.0
      %1890 = vmatpush2.msra.mxu0 0.0
      %1891 = vmatprep.subr.mxu0 0.0
      %1892 = vmatpush2.msra.mxu0 0.0
      %1893 = vmatprep.subr.mxu0 0.0
      %1894 = vmatpush2.msra.mxu0 0.0
      %1895 = vmatprep.subr.mxu0 0.0
      %1896 = vmatpush2.msra.mxu0 0.0
      %1897 = vmatprep.subr.mxu0 0.0
      %1898 = vmatpush2.msra.mxu0 0.0
      %1899 = vmatprep.subr.mxu0 0.0
      %1900 = vmatpush2.msra.mxu0 0.0
      %1901 = vmatprep.subr.mxu0 0.0
      %1902 = vmatpush2.msra.mxu0 0.0
      %1903 = vmatprep.subr.mxu0 0.0
      %1904 = vmatpush2.msra.mxu0 0.0
      %1905 = vmatprep.subr.mxu0 0.0
      %1906 = vmatpush2.msra.mxu0 0.0
      %1907 = vmatprep.mubr.f32.mxu0 0.0
      %1908 = vmatmul.mubr.f32.gmra.mxu0 %v1772
      %v1909 = vpop.f32.mrf.mxu0
      %v1910 = vadd.f32 0.0, %v1909
      %v1911 = vpop.f32.mrf.mxu0
      %1912 = vmatprep.mubr.f32.mxu0 0.0
      %1913 = vmatmul.mubr.f32.gmra.mxu0 %v1774
      %v1914 = vpop.f32.mrf.mxu0
      %v1915 = vadd.f32 0.0, %v1914
      %v1916 = vpop.f32.mrf.mxu0
      %1917 = vmatprep.mubr.f32.mxu0 0.0
      %1918 = vmatmul.mubr.f32.gmra.mxu0 %v1777
      %v1919 = vpop.f32.mrf.mxu0
      %v1920 = vadd.f32 0.0, %v1919
      %v1921 = vpop.f32.mrf.mxu0
      %1922 = vmatprep.mubr.f32.mxu0 0.0
      %1923 = vmatmul.mubr.f32.gmra.mxu0 %v1779
      %v1924 = vpop.f32.mrf.mxu0
      %v1925 = vadd.f32 0.0, %v1924
      %v1926 = vpop.f32.mrf.mxu0
      %1927 = vmatprep.mubr.f32.mxu0 0.0
      %1928 = vmatmul.mubr.f32.gmra.mxu0 %v1782
      %v1929 = vpop.f32.mrf.mxu0
      %v1930 = vadd.f32 0.0, %v1929
      %v1931 = vpop.f32.mrf.mxu0
      %1932 = vmatprep.mubr.f32.mxu0 0.0
      %1933 = vmatmul.mubr.f32.gmra.mxu0 %v1784
      %v1934 = vpop.f32.mrf.mxu0
      %v1935 = vadd.f32 0.0, %v1934
      %v1936 = vpop.f32.mrf.mxu0
      %1937 = vmatprep.mubr.f32.mxu0 0.0
      %1938 = vmatmul.mubr.f32.gmra.mxu0 %v1787
      %v1939 = vpop.f32.mrf.mxu0
      %v1940 = vadd.f32 0.0, %v1939
      %v1941 = vpop.f32.mrf.mxu0
      %1942 = vmatprep.mubr.f32.mxu0 0.0
      %1943 = vmatmul.mubr.f32.gmra.mxu0 %v1789
      %v1944 = vpop.f32.mrf.mxu0
      %v1945 = vadd.f32 0.0, %v1944
      %v1946 = vpop.f32.mrf.mxu0
      %1947 = vmatprep.mubr.f32.mxu0 0.0
      %1948 = vmatmul.mubr.f32.gmra.mxu0 %v1792
      %v1949 = vpop.f32.mrf.mxu0
      %v1950 = vadd.f32 0.0, %v1949
      %v1951 = vpop.f32.mrf.mxu0
      %1952 = vmatprep.mubr.f32.mxu0 0.0
      %1953 = vmatmul.mubr.f32.gmra.mxu0 %v1794
      %v1954 = vpop.f32.mrf.mxu0
      %v1955 = vadd.f32 0.0, %v1954
      %v1956 = vpop.f32.mrf.mxu0
      %1957 = vmatprep.mubr.f32.mxu0 0.0
      %1958 = vmatmul.mubr.f32.gmra.mxu0 %v1797
      %v1959 = vpop.f32.mrf.mxu0
      %v1960 = vadd.f32 0.0, %v1959
      %v1961 = vpop.f32.mrf.mxu0
      %1962 = vmatprep.mubr.f32.mxu0 0.0
      %1963 = vmatmul.mubr.f32.gmra.mxu0 %v1799
      %v1964 = vpop.f32.mrf.mxu0
      %v1965 = vadd.f32 0.0, %v1964
      %v1966 = vpop.f32.mrf.mxu0
      %1967 = vmatprep.mubr.f32.mxu0 0.0
      %1968 = vmatmul.mubr.f32.gmra.mxu0 %v1802
      %v1969 = vpop.f32.mrf.mxu0
      %v1970 = vadd.f32 0.0, %v1969
      %v1971 = vpop.f32.mrf.mxu0
      %1972 = vmatprep.mubr.f32.mxu0 0.0
      %1973 = vmatmul.mubr.f32.gmra.mxu0 %v1804
      %v1974 = vpop.f32.mrf.mxu0
      %v1975 = vadd.f32 0.0, %v1974
      %v1976 = vpop.f32.mrf.mxu0
      %1977 = vmatprep.mubr.f32.mxu0 0.0
      %1978 = vmatmul.mubr.f32.gmra.mxu0 %v1807
      %v1979 = vpop.f32.mrf.mxu0
      %v1980 = vadd.f32 0.0, %v1979
      %v1981 = vpop.f32.mrf.mxu0
      %1982 = vmatprep.mubr.f32.mxu0 0.0
      %1983 = vmatmul.mubr.f32.gmra.mxu0 %v1809
      %v1984 = vpop.f32.mrf.mxu0
      %v1985 = vadd.f32 0.0, %v1984
      %v1986 = vpop.f32.mrf.mxu0
      %1987 = vdwg.mxu0
      %v1988 = vadd.f32 %v1753, %v1910
      %v1989 = vadd.f32 %v1754, %v1915
      %v1990 = vadd.f32 %v1755, %v1920
      %v1991 = vadd.f32 %v1756, %v1925
      %v1992 = vadd.f32 %v1757, %v1930
      %v1993 = vadd.f32 %v1758, %v1935
      %v1994 = vadd.f32 %v1759, %v1940
      %v1995 = vadd.f32 %v1760, %v1945
      %v1996 = vadd.f32 %v1761, %v1950
      %v1997 = vadd.f32 %v1762, %v1955
      %v1998 = vadd.f32 %v1763, %v1960
      %v1999 = vadd.f32 %v1764, %v1965
      %v2000 = vadd.f32 %v1765, %v1970
      %v2001 = vadd.f32 %v1766, %v1975
      %v2002 = vadd.f32 %v1767, %v1980
      %v2003 = vadd.f32 %v1768, %v1985
      %v2004 = vrot.slane %v627, 2
      %v2005 = vrot.slane %v628, 2
      %v2006 = vsel %vm1769, %v2004, %v2005
      %v2007 = vrot.slane %v629, 2
      %v2008 = vsel %vm1769, %v2005, %v2007
      %s2011 = scalar_lea.vmem %s3, 640
      %v2012 = vld [vmem:[%s2011] sm:$0xff]
      %v2013 = vld [vmem:[%s2011 + $0x8] sm:$0xff]
      %v2014 = vld [vmem:[%s2011 + $0x10] sm:$0xff]
      %v2015 = vld [vmem:[%s2011 + $0x18] sm:$0xff]
      %v2016 = vld [vmem:[%s2011 + $0x20] sm:$0xff]
      %v2017 = vld [vmem:[%s2011 + $0x28] sm:$0xff]
      %v2018 = vld [vmem:[%s2011 + $0x30] sm:$0xff]
      %v2019 = vld [vmem:[%s2011 + $0x38] sm:$0xff]
      %v2020 = vld [vmem:[%s2011 + $0x40] sm:$0xff]
      %v2021 = vld [vmem:[%s2011 + $0x48] sm:$0xff]
      %v2022 = vld [vmem:[%s2011 + $0x50] sm:$0xff]
      %v2023 = vld [vmem:[%s2011 + $0x58] sm:$0xff]
      %v2024 = vld [vmem:[%s2011 + $0x60] sm:$0xff]
      %v2025 = vld [vmem:[%s2011 + $0x68] sm:$0xff]
      %v2026 = vld [vmem:[%s2011 + $0x70] sm:$0xff]
      %v2027 = vld [vmem:[%s2011 + $0x78] sm:$0xff]
      %2028 = vmatprep.subr.mxu0 0.0
      %2029 = vmatpush1.msra.mxu0 %v2027
      %2030 = vmatprep.subr.mxu0 0.0
      %2031 = vmatpush1.msra.mxu0 %v2026
      %2032 = vmatprep.subr.mxu0 0.0
      %2033 = vmatpush1.msra.mxu0 %v2025
      %2034 = vmatprep.subr.mxu0 0.0
      %2035 = vmatpush1.msra.mxu0 %v2024
      %2036 = vmatprep.subr.mxu0 0.0
      %2037 = vmatpush1.msra.mxu0 %v2023
      %2038 = vmatprep.subr.mxu0 0.0
      %2039 = vmatpush1.msra.mxu0 %v2022
      %2040 = vmatprep.subr.mxu0 0.0
      %2041 = vmatpush1.msra.mxu0 %v2021
      %2042 = vmatprep.subr.mxu0 0.0
      %2043 = vmatpush1.msra.mxu0 %v2020
      %2044 = vmatprep.subr.mxu0 0.0
      %2045 = vmatpush1.msra.mxu0 %v2019
      %2046 = vmatprep.subr.mxu0 0.0
      %2047 = vmatpush1.msra.mxu0 %v2018
      %2048 = vmatprep.subr.mxu0 0.0
      %2049 = vmatpush1.msra.mxu0 %v2017
      %2050 = vmatprep.subr.mxu0 0.0
      %2051 = vmatpush1.msra.mxu0 %v2016
      %2052 = vmatprep.subr.mxu0 0.0
      %2053 = vmatpush1.msra.mxu0 %v2015
      %2054 = vmatprep.subr.mxu0 0.0
      %2055 = vmatpush1.msra.mxu0 %v2014
      %2056 = vmatprep.subr.mxu0 0.0
      %2057 = vmatpush1.msra.mxu0 %v2013
      %2058 = vmatprep.subr.mxu0 0.0
      %2059 = vmatpush1.msra.mxu0 %v2012
      %2060 = vmatprep.subr.mxu0 0.0
      %2061 = vmatpush2.msra.mxu0 0.0
      %2062 = vmatprep.subr.mxu0 0.0
      %2063 = vmatpush2.msra.mxu0 0.0
      %2064 = vmatprep.subr.mxu0 0.0
      %2065 = vmatpush2.msra.mxu0 0.0
      %2066 = vmatprep.subr.mxu0 0.0
      %2067 = vmatpush2.msra.mxu0 0.0
      %2068 = vmatprep.subr.mxu0 0.0
      %2069 = vmatpush2.msra.mxu0 0.0
      %2070 = vmatprep.subr.mxu0 0.0
      %2071 = vmatpush2.msra.mxu0 0.0
      %2072 = vmatprep.subr.mxu0 0.0
      %2073 = vmatpush2.msra.mxu0 0.0
      %2074 = vmatprep.subr.mxu0 0.0
      %2075 = vmatpush2.msra.mxu0 0.0
      %2076 = vmatprep.subr.mxu0 0.0
      %2077 = vmatpush2.msra.mxu0 0.0
      %2078 = vmatprep.subr.mxu0 0.0
      %2079 = vmatpush2.msra.mxu0 0.0
      %2080 = vmatprep.subr.mxu0 0.0
      %2081 = vmatpush2.msra.mxu0 0.0
      %2082 = vmatprep.subr.mxu0 0.0
      %2083 = vmatpush2.msra.mxu0 0.0
      %2084 = vmatprep.subr.mxu0 0.0
      %2085 = vmatpush2.msra.mxu0 0.0
      %2086 = vmatprep.subr.mxu0 0.0
      %2087 = vmatpush2.msra.mxu0 0.0
      %2088 = vmatprep.subr.mxu0 0.0
      %2089 = vmatpush2.msra.mxu0 0.0
      %2090 = vmatprep.subr.mxu0 0.0
      %2091 = vmatpush2.msra.mxu0 0.0
      %2092 = vmatprep.mubr.f32.mxu0 0.0
      %2093 = vmatmul.mubr.f32.gmra.mxu0 %v1777
      %v2094 = vpop.f32.mrf.mxu0
      %v2095 = vadd.f32 0.0, %v2094
      %v2096 = vpop.f32.mrf.mxu0
      %2097 = vmatprep.mubr.f32.mxu0 0.0
      %2098 = vmatmul.mubr.f32.gmra.mxu0 %v1779
      %v2099 = vpop.f32.mrf.mxu0
      %v2100 = vadd.f32 0.0, %v2099
      %v2101 = vpop.f32.mrf.mxu0
      %2102 = vmatprep.mubr.f32.mxu0 0.0
      %2103 = vmatmul.mubr.f32.gmra.mxu0 %v1782
      %v2104 = vpop.f32.mrf.mxu0
      %v2105 = vadd.f32 0.0, %v2104
      %v2106 = vpop.f32.mrf.mxu0
      %2107 = vmatprep.mubr.f32.mxu0 0.0
      %2108 = vmatmul.mubr.f32.gmra.mxu0 %v1784
      %v2109 = vpop.f32.mrf.mxu0
      %v2110 = vadd.f32 0.0, %v2109
      %v2111 = vpop.f32.mrf.mxu0
      %2112 = vmatprep.mubr.f32.mxu0 0.0
      %2113 = vmatmul.mubr.f32.gmra.mxu0 %v1787
      %v2114 = vpop.f32.mrf.mxu0
      %v2115 = vadd.f32 0.0, %v2114
      %v2116 = vpop.f32.mrf.mxu0
      %2117 = vmatprep.mubr.f32.mxu0 0.0
      %2118 = vmatmul.mubr.f32.gmra.mxu0 %v1789
      %v2119 = vpop.f32.mrf.mxu0
      %v2120 = vadd.f32 0.0, %v2119
      %v2121 = vpop.f32.mrf.mxu0
      %2122 = vmatprep.mubr.f32.mxu0 0.0
      %2123 = vmatmul.mubr.f32.gmra.mxu0 %v1792
      %v2124 = vpop.f32.mrf.mxu0
      %v2125 = vadd.f32 0.0, %v2124
      %v2126 = vpop.f32.mrf.mxu0
      %2127 = vmatprep.mubr.f32.mxu0 0.0
      %2128 = vmatmul.mubr.f32.gmra.mxu0 %v1794
      %v2129 = vpop.f32.mrf.mxu0
      %v2130 = vadd.f32 0.0, %v2129
      %v2131 = vpop.f32.mrf.mxu0
      %2132 = vmatprep.mubr.f32.mxu0 0.0
      %2133 = vmatmul.mubr.f32.gmra.mxu0 %v1797
      %v2134 = vpop.f32.mrf.mxu0
      %v2135 = vadd.f32 0.0, %v2134
      %v2136 = vpop.f32.mrf.mxu0
      %2137 = vmatprep.mubr.f32.mxu0 0.0
      %2138 = vmatmul.mubr.f32.gmra.mxu0 %v1799
      %v2139 = vpop.f32.mrf.mxu0
      %v2140 = vadd.f32 0.0, %v2139
      %v2141 = vpop.f32.mrf.mxu0
      %2142 = vmatprep.mubr.f32.mxu0 0.0
      %2143 = vmatmul.mubr.f32.gmra.mxu0 %v1802
      %v2144 = vpop.f32.mrf.mxu0
      %v2145 = vadd.f32 0.0, %v2144
      %v2146 = vpop.f32.mrf.mxu0
      %2147 = vmatprep.mubr.f32.mxu0 0.0
      %2148 = vmatmul.mubr.f32.gmra.mxu0 %v1804
      %v2149 = vpop.f32.mrf.mxu0
      %v2150 = vadd.f32 0.0, %v2149
      %v2151 = vpop.f32.mrf.mxu0
      %2152 = vmatprep.mubr.f32.mxu0 0.0
      %2153 = vmatmul.mubr.f32.gmra.mxu0 %v1807
      %v2154 = vpop.f32.mrf.mxu0
      %v2155 = vadd.f32 0.0, %v2154
      %v2156 = vpop.f32.mrf.mxu0
      %2157 = vmatprep.mubr.f32.mxu0 0.0
      %2158 = vmatmul.mubr.f32.gmra.mxu0 %v1809
      %v2159 = vpop.f32.mrf.mxu0
      %v2160 = vadd.f32 0.0, %v2159
      %v2161 = vpop.f32.mrf.mxu0
      %2162 = vmatprep.mubr.f32.mxu0 0.0
      %2163 = vmatmul.mubr.f32.gmra.mxu0 %v2006
      %v2164 = vpop.f32.mrf.mxu0
      %v2165 = vadd.f32 0.0, %v2164
      %v2166 = vpop.f32.mrf.mxu0
      %2167 = vmatprep.mubr.f32.mxu0 0.0
      %2168 = vmatmul.mubr.f32.gmra.mxu0 %v2008
      %v2169 = vpop.f32.mrf.mxu0
      %v2170 = vadd.f32 0.0, %v2169
      %v2171 = vpop.f32.mrf.mxu0
      %2172 = vdwg.mxu0
      %v2173 = vadd.f32 %v1988, %v2095
      %v2174 = vadd.f32 %v1989, %v2100
      %v2175 = vadd.f32 %v1990, %v2105
      %v2176 = vadd.f32 %v1991, %v2110
      %v2177 = vadd.f32 %v1992, %v2115
      %v2178 = vadd.f32 %v1993, %v2120
      %v2179 = vadd.f32 %v1994, %v2125
      %v2180 = vadd.f32 %v1995, %v2130
      %v2181 = vadd.f32 %v1996, %v2135
      %v2182 = vadd.f32 %v1997, %v2140
      %v2183 = vadd.f32 %v1998, %v2145
      %v2184 = vadd.f32 %v1999, %v2150
      %v2185 = vadd.f32 %v2000, %v2155
      %v2186 = vadd.f32 %v2001, %v2160
      %v2187 = vadd.f32 %v2002, %v2165
      %v2188 = vadd.f32 %v2003, %v2170
      %v2189 = vrot.slane %v630, 2
      %v2190 = vrot.slane %v631, 2
      %v2191 = vsel %vm1769, %v2189, %v2190
      %v2192 = vrot.slane %v632, 2
      %v2193 = vsel %vm1769, %v2190, %v2192
      %s2196 = scalar_lea.vmem %s3, 1024
      %v2197 = vld [vmem:[%s2196] sm:$0xff]
      %v2198 = vld [vmem:[%s2196 + $0x8] sm:$0xff]
      %v2199 = vld [vmem:[%s2196 + $0x10] sm:$0xff]
      %v2200 = vld [vmem:[%s2196 + $0x18] sm:$0xff]
      %v2201 = vld [vmem:[%s2196 + $0x20] sm:$0xff]
      %v2202 = vld [vmem:[%s2196 + $0x28] sm:$0xff]
      %v2203 = vld [vmem:[%s2196 + $0x30] sm:$0xff]
      %v2204 = vld [vmem:[%s2196 + $0x38] sm:$0xff]
      %v2205 = vld [vmem:[%s2196 + $0x40] sm:$0xff]
      %v2206 = vld [vmem:[%s2196 + $0x48] sm:$0xff]
      %v2207 = vld [vmem:[%s2196 + $0x50] sm:$0xff]
      %v2208 = vld [vmem:[%s2196 + $0x58] sm:$0xff]
      %v2209 = vld [vmem:[%s2196 + $0x60] sm:$0xff]
      %v2210 = vld [vmem:[%s2196 + $0x68] sm:$0xff]
      %v2211 = vld [vmem:[%s2196 + $0x70] sm:$0xff]
      %v2212 = vld [vmem:[%s2196 + $0x78] sm:$0xff]
      %2213 = vmatprep.subr.mxu0 0.0
      %2214 = vmatpush1.msra.mxu0 %v2212
      %2215 = vmatprep.subr.mxu0 0.0
      %2216 = vmatpush1.msra.mxu0 %v2211
      %2217 = vmatprep.subr.mxu0 0.0
      %2218 = vmatpush1.msra.mxu0 %v2210
      %2219 = vmatprep.subr.mxu0 0.0
      %2220 = vmatpush1.msra.mxu0 %v2209
      %2221 = vmatprep.subr.mxu0 0.0
      %2222 = vmatpush1.msra.mxu0 %v2208
      %2223 = vmatprep.subr.mxu0 0.0
      %2224 = vmatpush1.msra.mxu0 %v2207
      %2225 = vmatprep.subr.mxu0 0.0
      %2226 = vmatpush1.msra.mxu0 %v2206
      %2227 = vmatprep.subr.mxu0 0.0
      %2228 = vmatpush1.msra.mxu0 %v2205
      %2229 = vmatprep.subr.mxu0 0.0
      %2230 = vmatpush1.msra.mxu0 %v2204
      %2231 = vmatprep.subr.mxu0 0.0
      %2232 = vmatpush1.msra.mxu0 %v2203
      %2233 = vmatprep.subr.mxu0 0.0
      %2234 = vmatpush1.msra.mxu0 %v2202
      %2235 = vmatprep.subr.mxu0 0.0
      %2236 = vmatpush1.msra.mxu0 %v2201
      %2237 = vmatprep.subr.mxu0 0.0
      %2238 = vmatpush1.msra.mxu0 %v2200
      %2239 = vmatprep.subr.mxu0 0.0
      %2240 = vmatpush1.msra.mxu0 %v2199
      %2241 = vmatprep.subr.mxu0 0.0
      %2242 = vmatpush1.msra.mxu0 %v2198
      %2243 = vmatprep.subr.mxu0 0.0
      %2244 = vmatpush1.msra.mxu0 %v2197
      %2245 = vmatprep.subr.mxu0 0.0
      %2246 = vmatpush2.msra.mxu0 0.0
      %2247 = vmatprep.subr.mxu0 0.0
      %2248 = vmatpush2.msra.mxu0 0.0
      %2249 = vmatprep.subr.mxu0 0.0
      %2250 = vmatpush2.msra.mxu0 0.0
      %2251 = vmatprep.subr.mxu0 0.0
      %2252 = vmatpush2.msra.mxu0 0.0
      %2253 = vmatprep.subr.mxu0 0.0
      %2254 = vmatpush2.msra.mxu0 0.0
      %2255 = vmatprep.subr.mxu0 0.0
      %2256 = vmatpush2.msra.mxu0 0.0
      %2257 = vmatprep.subr.mxu0 0.0
      %2258 = vmatpush2.msra.mxu0 0.0
      %2259 = vmatprep.subr.mxu0 0.0
      %2260 = vmatpush2.msra.mxu0 0.0
      %2261 = vmatprep.subr.mxu0 0.0
      %2262 = vmatpush2.msra.mxu0 0.0
      %2263 = vmatprep.subr.mxu0 0.0
      %2264 = vmatpush2.msra.mxu0 0.0
      %2265 = vmatprep.subr.mxu0 0.0
      %2266 = vmatpush2.msra.mxu0 0.0
      %2267 = vmatprep.subr.mxu0 0.0
      %2268 = vmatpush2.msra.mxu0 0.0
      %2269 = vmatprep.subr.mxu0 0.0
      %2270 = vmatpush2.msra.mxu0 0.0
      %2271 = vmatprep.subr.mxu0 0.0
      %2272 = vmatpush2.msra.mxu0 0.0
      %2273 = vmatprep.subr.mxu0 0.0
      %2274 = vmatpush2.msra.mxu0 0.0
      %2275 = vmatprep.subr.mxu0 0.0
      %2276 = vmatpush2.msra.mxu0 0.0
      %2277 = vmatprep.mubr.f32.mxu0 0.0
      %2278 = vmatmul.mubr.f32.gmra.mxu0 %v1782
      %v2279 = vpop.f32.mrf.mxu0
      %v2280 = vadd.f32 0.0, %v2279
      %v2281 = vpop.f32.mrf.mxu0
      %2282 = vmatprep.mubr.f32.mxu0 0.0
      %2283 = vmatmul.mubr.f32.gmra.mxu0 %v1784
      %v2284 = vpop.f32.mrf.mxu0
      %v2285 = vadd.f32 0.0, %v2284
      %v2286 = vpop.f32.mrf.mxu0
      %2287 = vmatprep.mubr.f32.mxu0 0.0
      %2288 = vmatmul.mubr.f32.gmra.mxu0 %v1787
      %v2289 = vpop.f32.mrf.mxu0
      %v2290 = vadd.f32 0.0, %v2289
      %v2291 = vpop.f32.mrf.mxu0
      %2292 = vmatprep.mubr.f32.mxu0 0.0
      %2293 = vmatmul.mubr.f32.gmra.mxu0 %v1789
      %v2294 = vpop.f32.mrf.mxu0
      %v2295 = vadd.f32 0.0, %v2294
      %v2296 = vpop.f32.mrf.mxu0
      %2297 = vmatprep.mubr.f32.mxu0 0.0
      %2298 = vmatmul.mubr.f32.gmra.mxu0 %v1792
      %v2299 = vpop.f32.mrf.mxu0
      %v2300 = vadd.f32 0.0, %v2299
      %v2301 = vpop.f32.mrf.mxu0
      %2302 = vmatprep.mubr.f32.mxu0 0.0
      %2303 = vmatmul.mubr.f32.gmra.mxu0 %v1794
      %v2304 = vpop.f32.mrf.mxu0
      %v2305 = vadd.f32 0.0, %v2304
      %v2306 = vpop.f32.mrf.mxu0
      %2307 = vmatprep.mubr.f32.mxu0 0.0
      %2308 = vmatmul.mubr.f32.gmra.mxu0 %v1797
      %v2309 = vpop.f32.mrf.mxu0
      %v2310 = vadd.f32 0.0, %v2309
      %v2311 = vpop.f32.mrf.mxu0
      %2312 = vmatprep.mubr.f32.mxu0 0.0
      %2313 = vmatmul.mubr.f32.gmra.mxu0 %v1799
      %v2314 = vpop.f32.mrf.mxu0
      %v2315 = vadd.f32 0.0, %v2314
      %v2316 = vpop.f32.mrf.mxu0
      %2317 = vmatprep.mubr.f32.mxu0 0.0
      %2318 = vmatmul.mubr.f32.gmra.mxu0 %v1802
      %v2319 = vpop.f32.mrf.mxu0
      %v2320 = vadd.f32 0.0, %v2319
      %v2321 = vpop.f32.mrf.mxu0
      %2322 = vmatprep.mubr.f32.mxu0 0.0
      %2323 = vmatmul.mubr.f32.gmra.mxu0 %v1804
      %v2324 = vpop.f32.mrf.mxu0
      %v2325 = vadd.f32 0.0, %v2324
      %v2326 = vpop.f32.mrf.mxu0
      %2327 = vmatprep.mubr.f32.mxu0 0.0
      %2328 = vmatmul.mubr.f32.gmra.mxu0 %v1807
      %v2329 = vpop.f32.mrf.mxu0
      %v2330 = vadd.f32 0.0, %v2329
      %v2331 = vpop.f32.mrf.mxu0
      %2332 = vmatprep.mubr.f32.mxu0 0.0
      %2333 = vmatmul.mubr.f32.gmra.mxu0 %v1809
      %v2334 = vpop.f32.mrf.mxu0
      %v2335 = vadd.f32 0.0, %v2334
      %v2336 = vpop.f32.mrf.mxu0
      %2337 = vmatprep.mubr.f32.mxu0 0.0
      %2338 = vmatmul.mubr.f32.gmra.mxu0 %v2006
      %v2339 = vpop.f32.mrf.mxu0
      %v2340 = vadd.f32 0.0, %v2339
      %v2341 = vpop.f32.mrf.mxu0
      %2342 = vmatprep.mubr.f32.mxu0 0.0
      %2343 = vmatmul.mubr.f32.gmra.mxu0 %v2008
      %v2344 = vpop.f32.mrf.mxu0
      %v2345 = vadd.f32 0.0, %v2344
      %v2346 = vpop.f32.mrf.mxu0
      %2347 = vmatprep.mubr.f32.mxu0 0.0
      %2348 = vmatmul.mubr.f32.gmra.mxu0 %v2191
      %v2349 = vpop.f32.mrf.mxu0
      %v2350 = vadd.f32 0.0, %v2349
      %v2351 = vpop.f32.mrf.mxu0
      %2352 = vmatprep.mubr.f32.mxu0 0.0
      %2353 = vmatmul.mubr.f32.gmra.mxu0 %v2193
      %v2354 = vpop.f32.mrf.mxu0
      %v2355 = vadd.f32 0.0, %v2354
      %v2356 = vpop.f32.mrf.mxu0
      %2357 = vdwg.mxu0
      %v2358 = vadd.f32 %v2173, %v2280
      %v2359 = vadd.f32 %v2174, %v2285
      %v2360 = vadd.f32 %v2175, %v2290
      %v2361 = vadd.f32 %v2176, %v2295
      %v2362 = vadd.f32 %v2177, %v2300
      %v2363 = vadd.f32 %v2178, %v2305
      %v2364 = vadd.f32 %v2179, %v2310
      %v2365 = vadd.f32 %v2180, %v2315
      %v2366 = vadd.f32 %v2181, %v2320
      %v2367 = vadd.f32 %v2182, %v2325
      %v2368 = vadd.f32 %v2183, %v2330
      %v2369 = vadd.f32 %v2184, %v2335
      %v2370 = vadd.f32 %v2185, %v2340
      %v2371 = vadd.f32 %v2186, %v2345
      %v2372 = vadd.f32 %v2187, %v2350
      %v2373 = vadd.f32 %v2188, %v2355
      %v2374 = vld [vmem:[%s284] sm:$0xff]
      %v2375 = vld [vmem:[%s284 + $0x8] sm:$0xff]
      %v2376 = vld [vmem:[%s284 + $0x10] sm:$0xff]
      %v2377 = vld [vmem:[%s284 + $0x18] sm:$0xff]
      %v2378 = vld [vmem:[%s284 + $0x20] sm:$0xff]
      %v2379 = vld [vmem:[%s284 + $0x28] sm:$0xff]
      %v2380 = vld [vmem:[%s284 + $0x30] sm:$0xff]
      %v2381 = vld [vmem:[%s284 + $0x38] sm:$0xff]
      %v2382 = vld [vmem:[%s284 + $0x40] sm:$0xff]
      %v2383 = vld [vmem:[%s284 + $0x48] sm:$0xff]
      %v2384 = vld [vmem:[%s284 + $0x50] sm:$0xff]
      %v2385 = vld [vmem:[%s284 + $0x58] sm:$0xff]
      %v2386 = vld [vmem:[%s284 + $0x60] sm:$0xff]
      %v2387 = vld [vmem:[%s284 + $0x68] sm:$0xff]
      %v2388 = vld [vmem:[%s284 + $0x70] sm:$0xff]
      %v2389 = vld [vmem:[%s284 + $0x78] sm:$0xff]
      %v2390 = vld [vmem:[%s6] sm:$0xff]
      %v2391 = vld [vmem:[%s6 + $0x8] sm:$0xff]
      %v2392 = vld [vmem:[%s6 + $0x10] sm:$0xff]
      %v2393 = vld [vmem:[%s6 + $0x18] sm:$0xff]
      %v2394 = vld [vmem:[%s6 + $0x20] sm:$0xff]
      %v2395 = vld [vmem:[%s6 + $0x28] sm:$0xff]
      %v2396 = vld [vmem:[%s6 + $0x30] sm:$0xff]
      %v2397 = vld [vmem:[%s6 + $0x38] sm:$0xff]
      %v2398 = vld [vmem:[%s6 + $0x40] sm:$0xff]
      %v2399 = vld [vmem:[%s6 + $0x48] sm:$0xff]
      %v2400 = vld [vmem:[%s6 + $0x50] sm:$0xff]
      %v2401 = vld [vmem:[%s6 + $0x58] sm:$0xff]
      %v2402 = vld [vmem:[%s6 + $0x60] sm:$0xff]
      %v2403 = vld [vmem:[%s6 + $0x68] sm:$0xff]
      %v2404 = vld [vmem:[%s6 + $0x70] sm:$0xff]
      %v2405 = vld [vmem:[%s6 + $0x78] sm:$0xff]
      %2406 = vmatprep.subr.mxu0 0.0
      %2407 = vmatpush1.msra.mxu0 %v2405
      %2408 = vmatprep.subr.mxu0 0.0
      %2409 = vmatpush1.msra.mxu0 %v2404
      %2410 = vmatprep.subr.mxu0 0.0
      %2411 = vmatpush1.msra.mxu0 %v2403
      %2412 = vmatprep.subr.mxu0 0.0
      %2413 = vmatpush1.msra.mxu0 %v2402
      %2414 = vmatprep.subr.mxu0 0.0
      %2415 = vmatpush1.msra.mxu0 %v2401
      %2416 = vmatprep.subr.mxu0 0.0
      %2417 = vmatpush1.msra.mxu0 %v2400
      %2418 = vmatprep.subr.mxu0 0.0
      %2419 = vmatpush1.msra.mxu0 %v2399
      %2420 = vmatprep.subr.mxu0 0.0
      %2421 = vmatpush1.msra.mxu0 %v2398
      %2422 = vmatprep.subr.mxu0 0.0
      %2423 = vmatpush1.msra.mxu0 %v2397
      %2424 = vmatprep.subr.mxu0 0.0
      %2425 = vmatpush1.msra.mxu0 %v2396
      %2426 = vmatprep.subr.mxu0 0.0
      %2427 = vmatpush1.msra.mxu0 %v2395
      %2428 = vmatprep.subr.mxu0 0.0
      %2429 = vmatpush1.msra.mxu0 %v2394
      %2430 = vmatprep.subr.mxu0 0.0
      %2431 = vmatpush1.msra.mxu0 %v2393
      %2432 = vmatprep.subr.mxu0 0.0
      %2433 = vmatpush1.msra.mxu0 %v2392
      %2434 = vmatprep.subr.mxu0 0.0
      %2435 = vmatpush1.msra.mxu0 %v2391
      %2436 = vmatprep.subr.mxu0 0.0
      %2437 = vmatpush1.msra.mxu0 %v2390
      %2438 = vmatprep.subr.mxu0 0.0
      %2439 = vmatpush2.msra.mxu0 0.0
      %2440 = vmatprep.subr.mxu0 0.0
      %2441 = vmatpush2.msra.mxu0 0.0
      %2442 = vmatprep.subr.mxu0 0.0
      %2443 = vmatpush2.msra.mxu0 0.0
      %2444 = vmatprep.subr.mxu0 0.0
      %2445 = vmatpush2.msra.mxu0 0.0
      %2446 = vmatprep.subr.mxu0 0.0
      %2447 = vmatpush2.msra.mxu0 0.0
      %2448 = vmatprep.subr.mxu0 0.0
      %2449 = vmatpush2.msra.mxu0 0.0
      %2450 = vmatprep.subr.mxu0 0.0
      %2451 = vmatpush2.msra.mxu0 0.0
      %2452 = vmatprep.subr.mxu0 0.0
      %2453 = vmatpush2.msra.mxu0 0.0
      %2454 = vmatprep.subr.mxu0 0.0
      %2455 = vmatpush2.msra.mxu0 0.0
      %2456 = vmatprep.subr.mxu0 0.0
      %2457 = vmatpush2.msra.mxu0 0.0
      %2458 = vmatprep.subr.mxu0 0.0
      %2459 = vmatpush2.msra.mxu0 0.0
      %2460 = vmatprep.subr.mxu0 0.0
      %2461 = vmatpush2.msra.mxu0 0.0
      %2462 = vmatprep.subr.mxu0 0.0
      %2463 = vmatpush2.msra.mxu0 0.0
      %2464 = vmatprep.subr.mxu0 0.0
      %2465 = vmatpush2.msra.mxu0 0.0
      %2466 = vmatprep.subr.mxu0 0.0
      %2467 = vmatpush2.msra.mxu0 0.0
      %2468 = vmatprep.subr.mxu0 0.0
      %2469 = vmatpush2.msra.mxu0 0.0
      %2470 = vmatprep.mubr.f32.mxu0 0.0
      %2471 = vmatmul.mubr.f32.gmra.mxu0 %v2374
      %v2472 = vpop.f32.mrf.mxu0
      %v2473 = vadd.f32 0.0, %v2472
      %v2474 = vpop.f32.mrf.mxu0
      %2475 = vmatprep.mubr.f32.mxu0 0.0
      %2476 = vmatmul.mubr.f32.gmra.mxu0 %v2375
      %v2477 = vpop.f32.mrf.mxu0
      %v2478 = vadd.f32 0.0, %v2477
      %v2479 = vpop.f32.mrf.mxu0
      %2480 = vmatprep.mubr.f32.mxu0 0.0
      %2481 = vmatmul.mubr.f32.gmra.mxu0 %v2376
      %v2482 = vpop.f32.mrf.mxu0
      %v2483 = vadd.f32 0.0, %v2482
      %v2484 = vpop.f32.mrf.mxu0
      %2485 = vmatprep.mubr.f32.mxu0 0.0
      %2486 = vmatmul.mubr.f32.gmra.mxu0 %v2377
      %v2487 = vpop.f32.mrf.mxu0
      %v2488 = vadd.f32 0.0, %v2487
      %v2489 = vpop.f32.mrf.mxu0
      %2490 = vmatprep.mubr.f32.mxu0 0.0
      %2491 = vmatmul.mubr.f32.gmra.mxu0 %v2378
      %v2492 = vpop.f32.mrf.mxu0
      %v2493 = vadd.f32 0.0, %v2492
      %v2494 = vpop.f32.mrf.mxu0
      %2495 = vmatprep.mubr.f32.mxu0 0.0
      %2496 = vmatmul.mubr.f32.gmra.mxu0 %v2379
      %v2497 = vpop.f32.mrf.mxu0
      %v2498 = vadd.f32 0.0, %v2497
      %v2499 = vpop.f32.mrf.mxu0
      %2500 = vmatprep.mubr.f32.mxu0 0.0
      %2501 = vmatmul.mubr.f32.gmra.mxu0 %v2380
      %v2502 = vpop.f32.mrf.mxu0
      %v2503 = vadd.f32 0.0, %v2502
      %v2504 = vpop.f32.mrf.mxu0
      %2505 = vmatprep.mubr.f32.mxu0 0.0
      %2506 = vmatmul.mubr.f32.gmra.mxu0 %v2381
      %v2507 = vpop.f32.mrf.mxu0
      %v2508 = vadd.f32 0.0, %v2507
      %v2509 = vpop.f32.mrf.mxu0
      %2510 = vmatprep.mubr.f32.mxu0 0.0
      %2511 = vmatmul.mubr.f32.gmra.mxu0 %v2382
      %v2512 = vpop.f32.mrf.mxu0
      %v2513 = vadd.f32 0.0, %v2512
      %v2514 = vpop.f32.mrf.mxu0
      %2515 = vmatprep.mubr.f32.mxu0 0.0
      %2516 = vmatmul.mubr.f32.gmra.mxu0 %v2383
      %v2517 = vpop.f32.mrf.mxu0
      %v2518 = vadd.f32 0.0, %v2517
      %v2519 = vpop.f32.mrf.mxu0
      %2520 = vmatprep.mubr.f32.mxu0 0.0
      %2521 = vmatmul.mubr.f32.gmra.mxu0 %v2384
      %v2522 = vpop.f32.mrf.mxu0
      %v2523 = vadd.f32 0.0, %v2522
      %v2524 = vpop.f32.mrf.mxu0
      %2525 = vmatprep.mubr.f32.mxu0 0.0
      %2526 = vmatmul.mubr.f32.gmra.mxu0 %v2385
      %v2527 = vpop.f32.mrf.mxu0
      %v2528 = vadd.f32 0.0, %v2527
      %v2529 = vpop.f32.mrf.mxu0
      %2530 = vmatprep.mubr.f32.mxu0 0.0
      %2531 = vmatmul.mubr.f32.gmra.mxu0 %v2386
      %v2532 = vpop.f32.mrf.mxu0
      %v2533 = vadd.f32 0.0, %v2532
      %v2534 = vpop.f32.mrf.mxu0
      %2535 = vmatprep.mubr.f32.mxu0 0.0
      %2536 = vmatmul.mubr.f32.gmra.mxu0 %v2387
      %v2537 = vpop.f32.mrf.mxu0
      %v2538 = vadd.f32 0.0, %v2537
      %v2539 = vpop.f32.mrf.mxu0
      %2540 = vmatprep.mubr.f32.mxu0 0.0
      %2541 = vmatmul.mubr.f32.gmra.mxu0 %v2388
      %v2542 = vpop.f32.mrf.mxu0
      %v2543 = vadd.f32 0.0, %v2542
      %v2544 = vpop.f32.mrf.mxu0
      %2545 = vmatprep.mubr.f32.mxu0 0.0
      %2546 = vmatmul.mubr.f32.gmra.mxu0 %v2389
      %v2547 = vpop.f32.mrf.mxu0
      %v2548 = vadd.f32 0.0, %v2547
      %v2549 = vpop.f32.mrf.mxu0
      %2550 = vdwg.mxu0
      %v2551 = vadd.f32 %v2358, %v2473
      %v2552 = vadd.f32 %v2359, %v2478
      %v2553 = vadd.f32 %v2360, %v2483
      %v2554 = vadd.f32 %v2361, %v2488
      %v2555 = vadd.f32 %v2362, %v2493
      %v2556 = vadd.f32 %v2363, %v2498
      %v2557 = vadd.f32 %v2364, %v2503
      %v2558 = vadd.f32 %v2365, %v2508
      %v2559 = vadd.f32 %v2366, %v2513
      %v2560 = vadd.f32 %v2367, %v2518
      %v2561 = vadd.f32 %v2368, %v2523
      %v2562 = vadd.f32 %v2369, %v2528
      %v2563 = vadd.f32 %v2370, %v2533
      %v2564 = vadd.f32 %v2371, %v2538
      %v2565 = vadd.f32 %v2372, %v2543
      %v2566 = vadd.f32 %v2373, %v2548
      %v2567 = vld [vmem:[%s4] sm:$0x1]
      %v2569 = vlaneseq
      %v2570 = vshrl.u32 %v2569, 7
      %v2571 = vsub.s32 0, %v2570
      %v2572 = vrot.slane %v2567, %v2571
      %v2574 = vadd.f32 %v2551, %v2572
      %v2575 = vadd.f32 %v2552, %v2572
      %v2576 = vadd.f32 %v2553, %v2572
      %v2577 = vadd.f32 %v2554, %v2572
      %v2578 = vadd.f32 %v2555, %v2572
      %v2579 = vadd.f32 %v2556, %v2572
      %v2580 = vadd.f32 %v2557, %v2572
      %v2581 = vadd.f32 %v2558, %v2572
      %v2582 = vadd.f32 %v2559, %v2572
      %v2583 = vadd.f32 %v2560, %v2572
      %v2584 = vadd.f32 %v2561, %v2572
      %v2585 = vadd.f32 %v2562, %v2572
      %v2586 = vadd.f32 %v2563, %v2572
      %v2587 = vadd.f32 %v2564, %v2572
      %v2588 = vadd.f32 %v2565, %v2572
      %v2589 = vadd.f32 %v2566, %v2572
      %2590 = vst [vmem:[%s295] sm:$0xff] %v2574
      %2591 = vst [vmem:[%s295 + $0x8] sm:$0xff] %v2575
      %2592 = vst [vmem:[%s295 + $0x10] sm:$0xff] %v2576
      %2593 = vst [vmem:[%s295 + $0x18] sm:$0xff] %v2577
      %2594 = vst [vmem:[%s295 + $0x20] sm:$0xff] %v2578
      %2595 = vst [vmem:[%s295 + $0x28] sm:$0xff] %v2579
      %2596 = vst [vmem:[%s295 + $0x30] sm:$0xff] %v2580
      %2597 = vst [vmem:[%s295 + $0x38] sm:$0xff] %v2581
      %2598 = vst [vmem:[%s295 + $0x40] sm:$0xff] %v2582
      %2599 = vst [vmem:[%s295 + $0x48] sm:$0xff] %v2583
      %2600 = vst [vmem:[%s295 + $0x50] sm:$0xff] %v2584
      %2601 = vst [vmem:[%s295 + $0x58] sm:$0xff] %v2585
      %2602 = vst [vmem:[%s295 + $0x60] sm:$0xff] %v2586
      %2603 = vst [vmem:[%s295 + $0x68] sm:$0xff] %v2587
      %2604 = vst [vmem:[%s295 + $0x70] sm:$0xff] %v2588
      %2605 = vst [vmem:[%s295 + $0x78] sm:$0xff] %v2589
      %s2606 = smul.u32 8, %s23
      %p2607 = scmp.lt.s32.totalorder %s22, 1
      %s2608 = scalar_select %p2607, %s22, 1
      %p2609 = scmp.lt.s32.totalorder %s2606, 15
      %s2610 = scalar_select %p2609, %s2606, 15
      %s2611 = smul.addr %s2610, 2
      %s2612 = smul.addr %s2608, 32
      %s2613 = sadd.s32 %s2611, %s2612
      %s2614 = smul.addr %s2613, 8
      %s2615 = scalar_lea.vmem %s7, %s2614
      // Predicated region
      $region82: #{decoder_block_pallas.7} parent=43 // pred_check
        %p2616 = pneg %p183
      $region83: #{decoder_block_pallas.7} parent=43 // pred_check_branch
        %2618 = sbr.rel (%p2616) target = $region85
      $region84: #{decoder_block_pallas.7} parent=43 // pred_region
        %s2619 = smul.u32 8, %s23
      $region85: #{decoder_block_pallas.7} parent=43 // pred_fallthru
        _
    $region44: #{decoder_block_pallas.7} parent=5 // pred_fallthru
      _
    %p2620 = scmp.le.s32.totalorder 2, %s13
    // Predicated region
    $region86: #{decoder_block_pallas.7} parent=5 // pred_check
      %p2621 = pneg %p2620
    $region87: #{decoder_block_pallas.7} parent=5 // pred_check_branch
      %2623 = sbr.rel (%p2621) target = $region89
    $region88: #{decoder_block_pallas.7} parent=5 // pred_region
      %s2624 = ssub.s32 %s13, 2
      // Predicated region
      $region90: #{decoder_block_pallas.7} parent=88 // pred_check
        %p2625 = pneg %p189
      $region91: #{decoder_block_pallas.7} parent=88 // pred_check_branch
        %2627 = sbr.rel (%p2625) target = $region93
      $region92: #{decoder_block_pallas.7} parent=88 // pred_region
        %s2628 = smul.u32 8, %s25
        %p2629 = scmp.lt.s32.totalorder %s24, 1
        %s2630 = scalar_select %p2629, %s24, 1
        %p2631 = scmp.lt.s32.totalorder %s2628, 15
        %s2632 = scalar_select %p2631, %s2628, 15
        %s2633 = smul.addr %s2632, 2
        %s2634 = smul.addr %s2630, 32
        %s2635 = sadd.s32 %s2633, %s2634
        %s2636 = smul.addr %s2635, 8
        %s2637 = scalar_lea.vmem %s7, %s2636
      $region93: #{decoder_block_pallas.7} parent=88 // pred_fallthru
        _
    $region89: #{decoder_block_pallas.7} parent=5 // pred_fallthru
      _
  $region6: #{decoder_block_pallas.7} parent=0 // loop_footer
    %s17 = sadd.s32 1, %s13
  $region7: #{decoder_block_pallas.7} parent=0 // loop_footer_branch
    %12 = sbr.rel target = $region3
  $region8: #{decoder_block_pallas.7} parent=0 // loop_exit
    _
  %2638 = vsyncmov [#allocation3]
  %s2639 = vpop.sfrf %2638
  %p2640 = scmp.eq.s32.totalorder %s2639, 0
  %p2641 = pneg %p2640
  %2643 = shalt.err (%p2641)

// kernel: decoder_block_pallas.5
$region0: #{decoder_block_pallas.5}
  #allocation0 [shape = 'u32[]', space=smem, size = 0x4, offset = 0x4, fixed_abs, tag = 'smem constant byte address 0x4 - core index']
  #allocation1 [shape = 'u32[144,128]{1,0:T(1,128)}', space=vmem, size = 0x12000, scoped, tag = 'internal scratch']
  #allocation2 [shape = 'f32[10,18,128]{2,1,0:T(8,128)}', space=vmem, size = 0x1e000, scoped, tag = 'scratch operand']
  #allocation3 [shape = 's32[1]{0}', space=sflag, size = 0x4, scoped, tag = 'scratch operand']
  #allocation4 [shape = 's32[]', space=sflag, size = 0x4, offset = 0, fixed_abs, tag = 'sflag constant byte address 0x0 - dummy sync flag']
  %s0 = inlined_call_operand.vmem [shape: f32[2,18,18,128], index: 0, kind: input, shape index: {}]
  %s1 = inlined_call_operand.vmem [shape: f32[1,128], index: 1, kind: input, shape index: {}]
  %s2 = inlined_call_operand.vmem [shape: f32[1,128], index: 2, kind: input, shape index: {}]
  %s3 = inlined_call_operand.vmem [shape: f32[9,128,128], index: 3, kind: input, shape index: {}]
  %s4 = inlined_call_operand.vmem [shape: f32[1,128], index: 4, kind: input, shape index: {}]
  %s5 = inlined_call_operand.vmem [shape: f32[2,16,16,128], index: 5, kind: output, shape index: {}]
  %s6 = sld [smem:[#allocation0]]
  $region86: #{decoder_block_pallas.5} parent=0
    _
  %s8 = ssub.s32 1, %s6
  %s9 = scalar_select 0, %s8, %s6
  loop: start=0, step=1, limit=6
  $region2: #{decoder_block_pallas.5} parent=0 // loop_pre_header
    _
  $region3: #{decoder_block_pallas.5} parent=0 // loop_header
    %s11 = sphi 0, %s15
    %p12 = scmp.ge.s32.totalorder %s11, 6
    %s18 = sphi 0, %s30
    %s19 = sphi 0, %s26
    %s20 = sphi 0, %s18
    %s21 = sphi 0, %s19
    %s22 = sphi 0, %s20
    %s23 = sphi 0, %s21
    %s31 = sphi 0, %s31
    %s33 = sphi 0, %s31
    %s34 = sphi 0, %s33
    %s48 = sphi 0, %s34
    %s52 = sphi 0, %s52
    %s54 = sphi 0, %s52
    %s55 = sphi 0, %s54
    %s69 = sphi 0, %s55
    %s73 = sphi 0, %s73
    %s75 = sphi 0, %s73
    %s76 = sphi 0, %s75
    %s90 = sphi 0, %s76
    %s94 = sphi 0, %s94
    %s96 = sphi 0, %s94
    %s97 = sphi 0, %s96
    %s111 = sphi 0, %s97
    %s119 = sphi 0, %s121
    %s122 = sphi 0, %s119
    %s123 = sphi 0, %s122
    %s139 = sphi 0, %s123
  $region4: #{decoder_block_pallas.5} parent=0 // loop_header_branch
    %14 = sbr.rel (%p12) target = $region8
  $region5: #{decoder_block_pallas.5} parent=0 // loop_body
    %s16 = ssub.s32 %s11, 1
    %s17 = ssub.s32 %s11, 2
    %s24 = sadd.s32 1, %s19
    %p25 = scmp.ge.s32.totalorder %s24, 2
    %s26 = scalar_select %p25, 0, %s24
    %s27 = sadd.s32 1, %s18
    %s28 = scalar_select %p25, %s27, %s18
    %p29 = scmp.ge.s32.totalorder %s28, 2
    %s30 = scalar_select %p29, 0, %s28
    %s32 = sadd.s32 %s31, 1
    %p35 = scmp.eq.s32.totalorder %s11, 3
    %p36 = scmp.ne.s32.totalorder %s31, %s33
    %p37 = scmp.eq.s32.totalorder %s11, 0
    %p38 = por %p36, %p37
    %p39 = scmp.ne.s32.totalorder %s31, %s33
    %p40 = scmp.eq.s32.totalorder %s16, 3
    %p41 = por %p39, %p40
    %p42 = scmp.ne.s32.totalorder %s33, %s34
    %p43 = scmp.eq.s32.totalorder %s16, 0
    %p44 = por %p42, %p43
    %p45 = scmp.ne.s32.totalorder %s33, %s34
    %p46 = scmp.eq.s32.totalorder %s17, 3
    %p47 = por %p45, %p46
    %p49 = scmp.ne.s32.totalorder %s34, %s48
    %p50 = scmp.eq.s32.totalorder %s17, 0
    %p51 = por %p49, %p50
    %s53 = sadd.s32 %s52, 1
    %p56 = scmp.eq.s32.totalorder %s11, 3
    %p57 = scmp.ne.s32.totalorder %s52, %s54
    %p58 = scmp.eq.s32.totalorder %s11, 0
    %p59 = por %p57, %p58
    %p60 = scmp.ne.s32.totalorder %s52, %s54
    %p61 = scmp.eq.s32.totalorder %s16, 3
    %p62 = por %p60, %p61
    %p63 = scmp.ne.s32.totalorder %s54, %s55
    %p64 = scmp.eq.s32.totalorder %s16, 0
    %p65 = por %p63, %p64
    %p66 = scmp.ne.s32.totalorder %s54, %s55
    %p67 = scmp.eq.s32.totalorder %s17, 3
    %p68 = por %p66, %p67
    %p70 = scmp.ne.s32.totalorder %s55, %s69
    %p71 = scmp.eq.s32.totalorder %s17, 0
    %p72 = por %p70, %p71
    %s74 = sadd.s32 %s73, 1
    %p77 = scmp.eq.s32.totalorder %s11, 3
    %p78 = scmp.ne.s32.totalorder %s73, %s75
    %p79 = scmp.eq.s32.totalorder %s11, 0
    %p80 = por %p78, %p79
    %p81 = scmp.ne.s32.totalorder %s73, %s75
    %p82 = scmp.eq.s32.totalorder %s16, 3
    %p83 = por %p81, %p82
    %p84 = scmp.ne.s32.totalorder %s75, %s76
    %p85 = scmp.eq.s32.totalorder %s16, 0
    %p86 = por %p84, %p85
    %p87 = scmp.ne.s32.totalorder %s75, %s76
    %p88 = scmp.eq.s32.totalorder %s17, 3
    %p89 = por %p87, %p88
    %p91 = scmp.ne.s32.totalorder %s76, %s90
    %p92 = scmp.eq.s32.totalorder %s17, 0
    %p93 = por %p91, %p92
    %s95 = sadd.s32 %s94, 1
    %p98 = scmp.eq.s32.totalorder %s11, 3
    %p99 = scmp.ne.s32.totalorder %s94, %s96
    %p100 = scmp.eq.s32.totalorder %s11, 0
    %p101 = por %p99, %p100
    %p102 = scmp.ne.s32.totalorder %s94, %s96
    %p103 = scmp.eq.s32.totalorder %s16, 3
    %p104 = por %p102, %p103
    %p105 = scmp.ne.s32.totalorder %s96, %s97
    %p106 = scmp.eq.s32.totalorder %s16, 0
    %p107 = por %p105, %p106
    %p108 = scmp.ne.s32.totalorder %s96, %s97
    %p109 = scmp.eq.s32.totalorder %s17, 3
    %p110 = por %p108, %p109
    %p112 = scmp.ne.s32.totalorder %s97, %s111
    %p113 = scmp.eq.s32.totalorder %s17, 0
    %p114 = por %p112, %p113
    %s115 = ssub.s32 %s18, %s30
    %s116 = ssub.s32 %s19, %s26
    %s117 = sor.u32 %s115, %s116
    %p118 = scmp.eq.s32.totalorder %s117, 0
    %s120 = sadd.s32 %s119, 1
    %s121 = scalar_select %p118, %s119, %s120
    %p124 = pneg %p118
    %p125 = scmp.eq.s32.totalorder %s11, 3
    %p126 = por %p124, %p125
    %p127 = scmp.ne.s32.totalorder %s119, %s122
    %p128 = scmp.eq.s32.totalorder %s11, 0
    %p129 = por %p127, %p128
    %p130 = scmp.ne.s32.totalorder %s119, %s122
    %p131 = scmp.eq.s32.totalorder %s16, 3
    %p132 = por %p130, %p131
    %p133 = scmp.ne.s32.totalorder %s122, %s123
    %p134 = scmp.eq.s32.totalorder %s16, 0
    %p135 = por %p133, %p134
    %p136 = scmp.ne.s32.totalorder %s122, %s123
    %p137 = scmp.eq.s32.totalorder %s17, 3
    %p138 = por %p136, %p137
    %p140 = scmp.ne.s32.totalorder %s123, %s139
    %p141 = scmp.eq.s32.totalorder %s17, 0
    %p142 = por %p140, %p141
    %p143 = scmp.le.s32.totalorder 1, %s11
    %p144 = scmp.lt.s32.totalorder %s11, 5
    %p145 = pnand %p143, %p144
    %p146 = pneg %p145
    // Predicated region
    $region9: #{decoder_block_pallas.5} parent=5 // pred_check
      _
    $region10: #{decoder_block_pallas.5} parent=5 // pred_check_branch
      %148 = sbr.rel (%p145) target = $region12
    $region11: #{decoder_block_pallas.5} parent=5 // pred_region
      %s149 = ssub.s32 %s11, 1
      // Predicated region
      $region13: #{decoder_block_pallas.5} parent=11 // pred_check
        %p150 = pneg %p44
      $region14: #{decoder_block_pallas.5} parent=11 // pred_check_branch
        %152 = sbr.rel (%p150) target = $region16
      $region15: #{decoder_block_pallas.5} parent=11 // pred_region
        _
      $region16: #{decoder_block_pallas.5} parent=11 // pred_fallthru
        _
      // Predicated region
      $region17: #{decoder_block_pallas.5} parent=11 // pred_check
        %p153 = pneg %p65
      $region18: #{decoder_block_pallas.5} parent=11 // pred_check_branch
        %155 = sbr.rel (%p153) target = $region20
      $region19: #{decoder_block_pallas.5} parent=11 // pred_region
        _
      $region20: #{decoder_block_pallas.5} parent=11 // pred_fallthru
        _
      // Predicated region
      $region21: #{decoder_block_pallas.5} parent=11 // pred_check
        %p156 = pneg %p86
      $region22: #{decoder_block_pallas.5} parent=11 // pred_check_branch
        %158 = sbr.rel (%p156) target = $region24
      $region23: #{decoder_block_pallas.5} parent=11 // pred_region
        _
      $region24: #{decoder_block_pallas.5} parent=11 // pred_fallthru
        _
      // Predicated region
      $region25: #{decoder_block_pallas.5} parent=11 // pred_check
        %p159 = pneg %p107
      $region26: #{decoder_block_pallas.5} parent=11 // pred_check_branch
        %161 = sbr.rel (%p159) target = $region28
      $region27: #{decoder_block_pallas.5} parent=11 // pred_region
        _
      $region28: #{decoder_block_pallas.5} parent=11 // pred_fallthru
        _
    $region12: #{decoder_block_pallas.5} parent=5 // pred_fallthru
      _
    %p162 = scmp.lt.s32.totalorder %s11, 4
    // Predicated region
    $region29: #{decoder_block_pallas.5} parent=5 // pred_check
      %p163 = pneg %p162
    $region30: #{decoder_block_pallas.5} parent=5 // pred_check_branch
      %165 = sbr.rel (%p163) target = $region32
    $region31: #{decoder_block_pallas.5} parent=5 // pred_region
      _
    $region32: #{decoder_block_pallas.5} parent=5 // pred_fallthru
      _
    %p166 = scmp.le.s32.totalorder 1, %s11
    %p167 = scmp.lt.s32.totalorder %s11, 5
    %p168 = pnand %p166, %p167
    %p169 = pneg %p168
    // Predicated region
    $region33: #{decoder_block_pallas.5} parent=5 // pred_check
      _
    $region34: #{decoder_block_pallas.5} parent=5 // pred_check_branch
      %171 = sbr.rel (%p168) target = $region36
    $region35: #{decoder_block_pallas.5} parent=5 // pred_region
      %s172 = ssub.s32 %s11, 1
      %p173 = pneg %p44
      %p174 = pneg %p41
      %p175 = pneg %p65
      %p176 = pneg %p62
      %p177 = pneg %p86
      %p178 = pneg %p83
      %p179 = pneg %p107
      %p180 = pneg %p104
      %p181 = pneg %p135
      %p182 = pneg %p132
      %s183 = smul.u32 8, %s21
      %p184 = scmp.lt.s32.totalorder %s20, 1
      %s185 = scalar_select %p184, %s20, 1
      %p186 = scmp.lt.s32.totalorder %s183, 15
      %s187 = scalar_select %p186, %s183, 15
      %s188 = smul.addr %s187, 2
      %s189 = smul.addr %s185, 32
      %s190 = sadd.s32 %s188, %s189
      %s191 = smul.addr %s190, 8
      %s192 = scalar_lea.vmem %s5, %s191
      %s193 = smul.u32 8, %s21
      %p194 = scmp.lt.s32.totalorder %s20, 1
      %s195 = scalar_select %p194, %s20, 1
      %p196 = scmp.lt.s32.totalorder %s193, 15
      %s197 = scalar_select %p196, %s193, 15
      %s198 = smul.addr %s197, 2
      %s199 = smul.addr %s195, 32
      %s200 = sadd.s32 %s198, %s199
      %s201 = smul.addr %s200, 8
      %s202 = scalar_lea.vmem %s5, %s201
      %s203 = smul.u32 8, %s21
      %s204 = smul.u32 %s21, 8
      %s205 = smul.u32 %s204, 24
      %s206 = smul.u32 %s20, 432
      %s207 = sadd.s32 %s205, %s206
      %s208 = scalar_lea.vmem %s0, %s207
      %p210 = scmp.lt.u32.totalorder 18, 8
      %p211 = pneg %p210
      // Predicated region
      $region37: #{decoder_block_pallas.5} parent=35 // pred_check
        _
      $region38: #{decoder_block_pallas.5} parent=35 // pred_check_branch
        %213 = sbr.rel (%p210) target = $region40
      $region39: #{decoder_block_pallas.5} parent=35 // pred_region
        %s247 = sand.u32 18, 7
        %p248 = scmp.eq.s32.totalorder %s247, 0
        %p249 = pneg %p248
        // Predicated region
        $region52: #{decoder_block_pallas.5} parent=39 // pred_check
          _
        $region53: #{decoder_block_pallas.5} parent=39 // pred_check_branch
          %251 = sbr.rel (%p248) target = $region55
        $region54: #{decoder_block_pallas.5} parent=39 // pred_region
          %s252 = sand.u32 18, 7
          %s253 = ssub.s32 18, %s252
          %s254 = scalar_lea.vmem %s208, %s253
          %s255 = ssub.s32 18, %s252
          %s256 = scalar_lea.vmem [#allocation2], %s255
          loop: start=0, step=1, limit=1
          $region56: #{decoder_block_pallas.5} parent=54 // loop_pre_header
            _
          $region57: #{decoder_block_pallas.5} parent=54 // loop_header
            %s258 = sphi 0, %s262
            %p259 = scmp.ge.s32.totalorder %s258, 1
            %s263 = sphi %s208, %s208
            %s264 = sphi [#allocation2], [#allocation2]
          $region58: #{decoder_block_pallas.5} parent=54 // loop_header_branch
            %261 = sbr.rel (%p259) target = $region62
          $region59: #{decoder_block_pallas.5} parent=54 // loop_body
            %v265 = vld [vmem:[%s263] sm:$0xff]
            %266 = vst [vmem:[%s264] sm:$0xff] %v265
            %v267 = vld [vmem:[%s263 + $0x8] sm:$0xff]
            %268 = vst [vmem:[%s264 + $0x8] sm:$0xff] %v267
            %v269 = vld [vmem:[%s263 + $0x18] sm:$0xff]
            %270 = vst [vmem:[%s264 + $0x18] sm:$0xff] %v269
            %v271 = vld [vmem:[%s263 + $0x20] sm:$0xff]
            %272 = vst [vmem:[%s264 + $0x20] sm:$0xff] %v271
            %v273 = vld [vmem:[%s263 + $0x30] sm:$0xff]
            %274 = vst [vmem:[%s264 + $0x30] sm:$0xff] %v273
            %v275 = vld [vmem:[%s263 + $0x38] sm:$0xff]
            %276 = vst [vmem:[%s264 + $0x38] sm:$0xff] %v275
            %v277 = vld [vmem:[%s263 + $0x48] sm:$0xff]
            %278 = vst [vmem:[%s264 + $0x48] sm:$0xff] %v277
            %v279 = vld [vmem:[%s263 + $0x50] sm:$0xff]
            %280 = vst [vmem:[%s264 + $0x50] sm:$0xff] %v279
            %v281 = vld [vmem:[%s263 + $0x60] sm:$0xff]
            %282 = vst [vmem:[%s264 + $0x60] sm:$0xff] %v281
            %v283 = vld [vmem:[%s263 + $0x68] sm:$0xff]
            %284 = vst [vmem:[%s264 + $0x68] sm:$0xff] %v283
            %v285 = vld [vmem:[%s263 + $0x78] sm:$0xff]
            %286 = vst [vmem:[%s264 + $0x78] sm:$0xff] %v285
            %v287 = vld [vmem:[%s263 + $0x80] sm:$0xff]
            %288 = vst [vmem:[%s264 + $0x80] sm:$0xff] %v287
            %v289 = vld [vmem:[%s263 + $0x90] sm:$0xff]
            %290 = vst [vmem:[%s264 + $0x90] sm:$0xff] %v289
            %v291 = vld [vmem:[%s263 + $0x98] sm:$0xff]
            %292 = vst [vmem:[%s264 + $0x98] sm:$0xff] %v291
            %v293 = vld [vmem:[%s263 + $0xa8] sm:$0xff]
            %294 = vst [vmem:[%s264 + $0xa8] sm:$0xff] %v293
            %v295 = vld [vmem:[%s263 + $0xb0] sm:$0xff]
            %296 = vst [vmem:[%s264 + $0xb0] sm:$0xff] %v295
            %v297 = vld [vmem:[%s263 + $0xc0] sm:$0xff]
            %298 = vst [vmem:[%s264 + $0xc0] sm:$0xff] %v297
            %v299 = vld [vmem:[%s263 + $0xc8] sm:$0xff]
            %300 = vst [vmem:[%s264 + $0xc8] sm:$0xff] %v299
            %v301 = vld [vmem:[%s263 + $0xd8] sm:$0xff]
            %302 = vst [vmem:[%s264 + $0xd8] sm:$0xff] %v301
            %v303 = vld [vmem:[%s263 + $0xe0] sm:$0xff]
            %304 = vst [vmem:[%s264 + $0xe0] sm:$0xff] %v303
          $region60: #{decoder_block_pallas.5} parent=54 // loop_footer
            %s262 = sadd.s32 1, %s258
          $region61: #{decoder_block_pallas.5} parent=54 // loop_footer_branch
            %257 = sbr.rel target = $region57
          $region62: #{decoder_block_pallas.5} parent=54 // loop_exit
            _
          %s305 = sshll.u32 1, %s252
          %s306 = ssub.s32 %s305, 1
          loop: start=0, step=1, limit=1
          $region63: #{decoder_block_pallas.5} parent=54 // loop_pre_header
            _
          $region64: #{decoder_block_pallas.5} parent=54 // loop_header
            %s308 = sphi 0, %s312
            %p309 = scmp.ge.s32.totalorder %s308, 1
            %s313 = sphi %s254, %s254
            %s314 = sphi %s256, %s256
          $region65: #{decoder_block_pallas.5} parent=54 // loop_header_branch
            %311 = sbr.rel (%p309) target = $region69
          $region66: #{decoder_block_pallas.5} parent=54 // loop_body
            %v315 = vld [vmem:[%s313] sm:%s306]
            %316 = vst [vmem:[%s314] sm:%s306] %v315
            %v317 = vld [vmem:[%s313 + $0x18] sm:%s306]
            %318 = vst [vmem:[%s314 + $0x18] sm:%s306] %v317
            %v319 = vld [vmem:[%s313 + $0x30] sm:%s306]
            %320 = vst [vmem:[%s314 + $0x30] sm:%s306] %v319
            %v321 = vld [vmem:[%s313 + $0x48] sm:%s306]
            %322 = vst [vmem:[%s314 + $0x48] sm:%s306] %v321
            %v323 = vld [vmem:[%s313 + $0x60] sm:%s306]
            %324 = vst [vmem:[%s314 + $0x60] sm:%s306] %v323
            %v325 = vld [vmem:[%s313 + $0x78] sm:%s306]
            %326 = vst [vmem:[%s314 + $0x78] sm:%s306] %v325
            %v327 = vld [vmem:[%s313 + $0x90] sm:%s306]
            %328 = vst [vmem:[%s314 + $0x90] sm:%s306] %v327
            %v329 = vld [vmem:[%s313 + $0xa8] sm:%s306]
            %330 = vst [vmem:[%s314 + $0xa8] sm:%s306] %v329
            %v331 = vld [vmem:[%s313 + $0xc0] sm:%s306]
            %332 = vst [vmem:[%s314 + $0xc0] sm:%s306] %v331
            %v333 = vld [vmem:[%s313 + $0xd8] sm:%s306]
            %334 = vst [vmem:[%s314 + $0xd8] sm:%s306] %v333
          $region67: #{decoder_block_pallas.5} parent=54 // loop_footer
            %s312 = sadd.s32 1, %s308
          $region68: #{decoder_block_pallas.5} parent=54 // loop_footer_branch
            %307 = sbr.rel target = $region64
          $region69: #{decoder_block_pallas.5} parent=54 // loop_exit
            _
        $region55: #{decoder_block_pallas.5} parent=39 // pred_fallthru
          _
      $region40: #{decoder_block_pallas.5} parent=35 // pred_fallthru
        _
      // Predicated region
      $region41: #{decoder_block_pallas.5} parent=35 // pred_check
        %p214 = pneg %p210
      $region42: #{decoder_block_pallas.5} parent=35 // pred_check_branch
        %216 = sbr.rel (%p214) target = $region44
      $region43: #{decoder_block_pallas.5} parent=35 // pred_region
        %s217 = sshll.u32 1, 18
        %s218 = ssub.s32 %s217, 1
        loop: start=0, step=1, limit=1
        $region45: #{decoder_block_pallas.5} parent=43 // loop_pre_header
          _
        $region46: #{decoder_block_pallas.5} parent=43 // loop_header
          %s220 = sphi 0, %s224
          %p221 = scmp.ge.s32.totalorder %s220, 1
          %s225 = sphi %s208, %s208
          %s226 = sphi [#allocation2], [#allocation2]
        $region47: #{decoder_block_pallas.5} parent=43 // loop_header_branch
          %223 = sbr.rel (%p221) target = $region51
        $region48: #{decoder_block_pallas.5} parent=43 // loop_body
          %v227 = vld [vmem:[%s225] sm:%s218]
          %228 = vst [vmem:[%s226] sm:%s218] %v227
          %v229 = vld [vmem:[%s225 + $0x18] sm:%s218]
          %230 = vst [vmem:[%s226 + $0x18] sm:%s218] %v229
          %v231 = vld [vmem:[%s225 + $0x30] sm:%s218]
          %232 = vst [vmem:[%s226 + $0x30] sm:%s218] %v231
          %v233 = vld [vmem:[%s225 + $0x48] sm:%s218]
          %234 = vst [vmem:[%s226 + $0x48] sm:%s218] %v233
          %v235 = vld [vmem:[%s225 + $0x60] sm:%s218]
          %236 = vst [vmem:[%s226 + $0x60] sm:%s218] %v235
          %v237 = vld [vmem:[%s225 + $0x78] sm:%s218]
          %238 = vst [vmem:[%s226 + $0x78] sm:%s218] %v237
          %v239 = vld [vmem:[%s225 + $0x90] sm:%s218]
          %240 = vst [vmem:[%s226 + $0x90] sm:%s218] %v239
          %v241 = vld [vmem:[%s225 + $0xa8] sm:%s218]
          %242 = vst [vmem:[%s226 + $0xa8] sm:%s218] %v241
          %v243 = vld [vmem:[%s225 + $0xc0] sm:%s218]
          %244 = vst [vmem:[%s226 + $0xc0] sm:%s218] %v243
          %v245 = vld [vmem:[%s225 + $0xd8] sm:%s218]
          %246 = vst [vmem:[%s226 + $0xd8] sm:%s218] %v245
        $region49: #{decoder_block_pallas.5} parent=43 // loop_footer
          %s224 = sadd.s32 1, %s220
        $region50: #{decoder_block_pallas.5} parent=43 // loop_footer_branch
          %219 = sbr.rel target = $region46
        $region51: #{decoder_block_pallas.5} parent=43 // loop_exit
          _
      $region44: #{decoder_block_pallas.5} parent=35 // pred_fallthru
        _
      // Predicated region
      $region70: #{decoder_block_pallas.5} parent=35 // pred_check
        _
      $region71: #{decoder_block_pallas.5} parent=35 // pred_check_branch
        %337 = sbr.rel (0) target = $region73
      $region72: #{decoder_block_pallas.5} parent=35 // pred_region
        %338 = vsyncadd [#allocation3], 2880
      $region73: #{decoder_block_pallas.5} parent=35 // pred_fallthru
        _
      %s339 = smul.u32 10, 18
      %s340 = smul.u32 %s339, 1
      %s341 = sshll.u32 %s340, 4
      %342 = dma.done [#allocation3], %s341
      %v343 = vld [vmem:[#allocation2] sm:$0xff]
      %v344 = vld [vmem:[#allocation2 + $0x8] sm:$0xff]
      %v345 = vld [vmem:[#allocation2 + $0x10] sm:$0x3]
      %v346 = vld [vmem:[#allocation2 + $0x18] sm:$0xff]
      %v347 = vld [vmem:[#allocation2 + $0x20] sm:$0xff]
      %v348 = vld [vmem:[#allocation2 + $0x28] sm:$0x3]
      %v349 = vld [vmem:[#allocation2 + $0x30] sm:$0xff]
      %v350 = vld [vmem:[#allocation2 + $0x38] sm:$0xff]
      %v351 = vld [vmem:[#allocation2 + $0x40] sm:$0x3]
      %v352 = vld [vmem:[#allocation2 + $0x48] sm:$0xff]
      %v353 = vld [vmem:[#allocation2 + $0x50] sm:$0xff]
      %v354 = vld [vmem:[#allocation2 + $0x58] sm:$0x3]
      %v355 = vld [vmem:[#allocation2 + $0x60] sm:$0xff]
      %v356 = vld [vmem:[#allocation2 + $0x68] sm:$0xff]
      %v357 = vld [vmem:[#allocation2 + $0x70] sm:$0x3]
      %v358 = vld [vmem:[#allocation2 + $0x78] sm:$0xff]
      %v359 = vld [vmem:[#allocation2 + $0x80] sm:$0xff]
      %v360 = vld [vmem:[#allocation2 + $0x88] sm:$0x3]
      %v361 = vld [vmem:[#allocation2 + $0x90] sm:$0xff]
      %v362 = vld [vmem:[#allocation2 + $0x98] sm:$0xff]
      %v363 = vld [vmem:[#allocation2 + $0xa0] sm:$0x3]
      %v364 = vld [vmem:[#allocation2 + $0xa8] sm:$0xff]
      %v365 = vld [vmem:[#allocation2 + $0xb0] sm:$0xff]
      %v366 = vld [vmem:[#allocation2 + $0xb8] sm:$0x3]
      %v367 = vld [vmem:[#allocation2 + $0xc0] sm:$0xff]
      %v368 = vld [vmem:[#allocation2 + $0xc8] sm:$0xff]
      %v369 = vld [vmem:[#allocation2 + $0xd0] sm:$0x3]
      %v370 = vld [vmem:[#allocation2 + $0xd8] sm:$0xff]
      %v371 = vld [vmem:[#allocation2 + $0xe0] sm:$0xff]
      %v372 = vld [vmem:[#allocation2 + $0xe8] sm:$0x3]
      %v373 = vld [vmem:[%s1] sm:$0x1]
      %v375 = vlaneseq
      %v376 = vshrl.u32 %v375, 7
      %v377 = vsub.s32 0, %v376
      %v378 = vrot.slane %v373, %v377
      %v380 = vmul.f32 %v343, %v378
      %v381 = vmul.f32 %v344, %v378
      %v382 = vmul.f32 %v345, %v378
      %v383 = vmul.f32 %v346, %v378
      %v384 = vmul.f32 %v347, %v378
      %v385 = vmul.f32 %v348, %v378
      %v386 = vmul.f32 %v349, %v378
      %v387 = vmul.f32 %v350, %v378
      %v388 = vmul.f32 %v351, %v378
      %v389 = vmul.f32 %v352, %v378
      %v390 = vmul.f32 %v353, %v378
      %v391 = vmul.f32 %v354, %v378
      %v392 = vmul.f32 %v355, %v378
      %v393 = vmul.f32 %v356, %v378
      %v394 = vmul.f32 %v357, %v378
      %v395 = vmul.f32 %v358, %v378
      %v396 = vmul.f32 %v359, %v378
      %v397 = vmul.f32 %v360, %v378
      %v398 = vmul.f32 %v361, %v378
      %v399 = vmul.f32 %v362, %v378
      %v400 = vmul.f32 %v363, %v378
      %v401 = vmul.f32 %v364, %v378
      %v402 = vmul.f32 %v365, %v378
      %v403 = vmul.f32 %v366, %v378
      %v404 = vmul.f32 %v367, %v378
      %v405 = vmul.f32 %v368, %v378
      %v406 = vmul.f32 %v369, %v378
      %v407 = vmul.f32 %v370, %v378
      %v408 = vmul.f32 %v371, %v378
      %v409 = vmul.f32 %v372, %v378
      %v410 = vld [vmem:[%s2] sm:$0x1]
      %v412 = vlaneseq
      %v413 = vshrl.u32 %v412, 7
      %v414 = vsub.s32 0, %v413
      %v415 = vrot.slane %v410, %v414
      %v417 = vadd.f32 %v380, %v415
      %v418 = vadd.f32 %v381, %v415
      %v419 = vadd.f32 %v382, %v415
      %v420 = vadd.f32 %v383, %v415
      %v421 = vadd.f32 %v384, %v415
      %v422 = vadd.f32 %v385, %v415
      %v423 = vadd.f32 %v386, %v415
      %v424 = vadd.f32 %v387, %v415
      %v425 = vadd.f32 %v388, %v415
      %v426 = vadd.f32 %v389, %v415
      %v427 = vadd.f32 %v390, %v415
      %v428 = vadd.f32 %v391, %v415
      %v429 = vadd.f32 %v392, %v415
      %v430 = vadd.f32 %v393, %v415
      %v431 = vadd.f32 %v394, %v415
      %v432 = vadd.f32 %v395, %v415
      %v433 = vadd.f32 %v396, %v415
      %v434 = vadd.f32 %v397, %v415
      %v435 = vadd.f32 %v398, %v415
      %v436 = vadd.f32 %v399, %v415
      %v437 = vadd.f32 %v400, %v415
      %v438 = vadd.f32 %v401, %v415
      %v439 = vadd.f32 %v402, %v415
      %v440 = vadd.f32 %v403, %v415
      %v441 = vadd.f32 %v404, %v415
      %v442 = vadd.f32 %v405, %v415
      %v443 = vadd.f32 %v406, %v415
      %v444 = vadd.f32 %v407, %v415
      %v445 = vadd.f32 %v408, %v415
      %v446 = vadd.f32 %v409, %v415
      %v447 = vmax.f32 %v417, 0.0
      %v448 = vmax.f32 %v418, 0.0
      %v449 = vmax.f32 %v419, 0.0
      %v450 = vmax.f32 %v420, 0.0
      %v451 = vmax.f32 %v421, 0.0
      %v452 = vmax.f32 %v422, 0.0
      %v453 = vmax.f32 %v423, 0.0
      %v454 = vmax.f32 %v424, 0.0
      %v455 = vmax.f32 %v425, 0.0
      %v456 = vmax.f32 %v426, 0.0
      %v457 = vmax.f32 %v427, 0.0
      %v458 = vmax.f32 %v428, 0.0
      %v459 = vmax.f32 %v429, 0.0
      %v460 = vmax.f32 %v430, 0.0
      %v461 = vmax.f32 %v431, 0.0
      %v462 = vmax.f32 %v432, 0.0
      %v463 = vmax.f32 %v433, 0.0
      %v464 = vmax.f32 %v434, 0.0
      %v465 = vmax.f32 %v435, 0.0
      %v466 = vmax.f32 %v436, 0.0
      %v467 = vmax.f32 %v437, 0.0
      %v468 = vmax.f32 %v438, 0.0
      %v469 = vmax.f32 %v439, 0.0
      %v470 = vmax.f32 %v440, 0.0
      %v471 = vmax.f32 %v441, 0.0
      %v472 = vmax.f32 %v442, 0.0
      %v473 = vmax.f32 %v443, 0.0
      %v474 = vmax.f32 %v444, 0.0
      %v475 = vmax.f32 %v445, 0.0
      %v476 = vmax.f32 %v446, 0.0
      %v477 = vlaneseq
      %v478 = vshrl.u32 %v477, 7
      %v479 = vadd.s32 %v478, 8
      %v480 = vadd.s32 %v478, 16
      %vm481 = vcmp.ge.s32.totalorder %v478, 1
      %vm482 = vcmp.ge.s32.totalorder %v479, 1
      %vm483 = vcmp.ge.s32.totalorder %v480, 1
      %vm484 = vcmp.le.s32.totalorder %v478, 16
      %vm485 = vcmp.le.s32.totalorder %v479, 16
      %vm486 = vcmp.le.s32.totalorder %v480, 16
      %vm487 = vmand %vm481, %vm484
      %vm488 = vmand %vm482, %vm485
      %vm489 = vmand %vm483, %vm486
      %p490 = scmp.ne.s32.totalorder %s21, 0
      %s491 = scalar_select %p490, 1, 0
      %v492 = vstv %s491
      %vm493 = vcmp.eq.s32.totalorder %v492, 1
      %vm494 = vmand %vm487, %vm493
      %vm495 = vmand %vm488, %vm493
      %vm496 = vmand %vm489, %vm493
      %vm497 = vmand %vm487, 1
      %vm498 = vmand %vm488, 1
      %vm499 = vmand %vm489, 1
      %p500 = scmp.ne.s32.totalorder %s21, 1
      %s501 = scalar_select %p500, 1, 0
      %v502 = vstv %s501
      %vm503 = vcmp.eq.s32.totalorder %v502, 1
      %vm504 = vmand %vm494, 1
      %vm505 = vmand %vm495, 1
      %vm506 = vmand %vm496, 1
      %vm507 = vmand %vm497, %vm503
      %vm508 = vmand %vm498, %vm503
      %vm509 = vmand %vm499, %vm503
      %v510 = vsel %vm504, %v447, 0.0
      %v511 = vsel %vm505, %v448, 0.0
      %v512 = vsel %vm506, %v449, 0.0
      %v513 = vsel %vm497, %v450, 0.0
      %v514 = vsel %vm498, %v451, 0.0
      %v515 = vsel %vm499, %v452, 0.0
      %v516 = vsel %vm497, %v453, 0.0
      %v517 = vsel %vm498, %v454, 0.0
      %v518 = vsel %vm499, %v455, 0.0
      %v519 = vsel %vm497, %v456, 0.0
      %v520 = vsel %vm498, %v457, 0.0
      %v521 = vsel %vm499, %v458, 0.0
      %v522 = vsel %vm497, %v459, 0.0
      %v523 = vsel %vm498, %v460, 0.0
      %v524 = vsel %vm499, %v461, 0.0
      %v525 = vsel %vm497, %v462, 0.0
      %v526 = vsel %vm498, %v463, 0.0
      %v527 = vsel %vm499, %v464, 0.0
      %v528 = vsel %vm497, %v465, 0.0
      %v529 = vsel %vm498, %v466, 0.0
      %v530 = vsel %vm499, %v467, 0.0
      %v531 = vsel %vm497, %v468, 0.0
      %v532 = vsel %vm498, %v469, 0.0
      %v533 = vsel %vm499, %v470, 0.0
      %v534 = vsel %vm497, %v471, 0.0
      %v535 = vsel %vm498, %v472, 0.0
      %v536 = vsel %vm499, %v473, 0.0
      %v537 = vsel %vm507, %v474, 0.0
      %v538 = vsel %vm508, %v475, 0.0
      %v539 = vsel %vm509, %v476, 0.0
      %v540 = vld [vmem:[%s3] sm:$0xff]
      %v541 = vld [vmem:[%s3 + $0x8] sm:$0xff]
      %v542 = vld [vmem:[%s3 + $0x10] sm:$0xff]
      %v543 = vld [vmem:[%s3 + $0x18] sm:$0xff]
      %v544 = vld [vmem:[%s3 + $0x20] sm:$0xff]
      %v545 = vld [vmem:[%s3 + $0x28] sm:$0xff]
      %v546 = vld [vmem:[%s3 + $0x30] sm:$0xff]
      %v547 = vld [vmem:[%s3 + $0x38] sm:$0xff]
      %v548 = vld [vmem:[%s3 + $0x40] sm:$0xff]
      %v549 = vld [vmem:[%s3 + $0x48] sm:$0xff]
      %v550 = vld [vmem:[%s3 + $0x50] sm:$0xff]
      %v551 = vld [vmem:[%s3 + $0x58] sm:$0xff]
      %v552 = vld [vmem:[%s3 + $0x60] sm:$0xff]
      %v553 = vld [vmem:[%s3 + $0x68] sm:$0xff]
      %v554 = vld [vmem:[%s3 + $0x70] sm:$0xff]
      %v555 = vld [vmem:[%s3 + $0x78] sm:$0xff]
      %s556 = scalar_lea.vmem %s3, 384
      %v557 = vld [vmem:[%s556] sm:$0xff]
      %v558 = vld [vmem:[%s556 + $0x8] sm:$0xff]
      %v559 = vld [vmem:[%s556 + $0x10] sm:$0xff]
      %v560 = vld [vmem:[%s556 + $0x18] sm:$0xff]
      %v561 = vld [vmem:[%s556 + $0x20] sm:$0xff]
      %v562 = vld [vmem:[%s556 + $0x28] sm:$0xff]
      %v563 = vld [vmem:[%s556 + $0x30] sm:$0xff]
      %v564 = vld [vmem:[%s556 + $0x38] sm:$0xff]
      %v565 = vld [vmem:[%s556 + $0x40] sm:$0xff]
      %v566 = vld [vmem:[%s556 + $0x48] sm:$0xff]
      %v567 = vld [vmem:[%s556 + $0x50] sm:$0xff]
      %v568 = vld [vmem:[%s556 + $0x58] sm:$0xff]
      %v569 = vld [vmem:[%s556 + $0x60] sm:$0xff]
      %v570 = vld [vmem:[%s556 + $0x68] sm:$0xff]
      %v571 = vld [vmem:[%s556 + $0x70] sm:$0xff]
      %v572 = vld [vmem:[%s556 + $0x78] sm:$0xff]
      %573 = vmatprep.subr.mxu0 0.0
      %574 = vmatpush1.msra.mxu0 %v572
      %575 = vmatprep.subr.mxu0 0.0
      %576 = vmatpush1.msra.mxu0 %v571
      %577 = vmatprep.subr.mxu0 0.0
      %578 = vmatpush1.msra.mxu0 %v570
      %579 = vmatprep.subr.mxu0 0.0
      %580 = vmatpush1.msra.mxu0 %v569
      %581 = vmatprep.subr.mxu0 0.0
      %582 = vmatpush1.msra.mxu0 %v568
      %583 = vmatprep.subr.mxu0 0.0
      %584 = vmatpush1.msra.mxu0 %v567
      %585 = vmatprep.subr.mxu0 0.0
      %586 = vmatpush1.msra.mxu0 %v566
      %587 = vmatprep.subr.mxu0 0.0
      %588 = vmatpush1.msra.mxu0 %v565
      %589 = vmatprep.subr.mxu0 0.0
      %590 = vmatpush1.msra.mxu0 %v564
      %591 = vmatprep.subr.mxu0 0.0
      %592 = vmatpush1.msra.mxu0 %v563
      %593 = vmatprep.subr.mxu0 0.0
      %594 = vmatpush1.msra.mxu0 %v562
      %595 = vmatprep.subr.mxu0 0.0
      %596 = vmatpush1.msra.mxu0 %v561
      %597 = vmatprep.subr.mxu0 0.0
      %598 = vmatpush1.msra.mxu0 %v560
      %599 = vmatprep.subr.mxu0 0.0
      %600 = vmatpush1.msra.mxu0 %v559
      %601 = vmatprep.subr.mxu0 0.0
      %602 = vmatpush1.msra.mxu0 %v558
      %603 = vmatprep.subr.mxu0 0.0
      %604 = vmatpush1.msra.mxu0 %v557
      %605 = vmatprep.subr.mxu0 0.0
      %606 = vmatpush2.msra.mxu0 0.0
      %607 = vmatprep.subr.mxu0 0.0
      %608 = vmatpush2.msra.mxu0 0.0
      %609 = vmatprep.subr.mxu0 0.0
      %610 = vmatpush2.msra.mxu0 0.0
      %611 = vmatprep.subr.mxu0 0.0
      %612 = vmatpush2.msra.mxu0 0.0
      %613 = vmatprep.subr.mxu0 0.0
      %614 = vmatpush2.msra.mxu0 0.0
      %615 = vmatprep.subr.mxu0 0.0
      %616 = vmatpush2.msra.mxu0 0.0
      %617 = vmatprep.subr.mxu0 0.0
      %618 = vmatpush2.msra.mxu0 0.0
      %619 = vmatprep.subr.mxu0 0.0
      %620 = vmatpush2.msra.mxu0 0.0
      %621 = vmatprep.subr.mxu0 0.0
      %622 = vmatpush2.msra.mxu0 0.0
      %623 = vmatprep.subr.mxu0 0.0
      %624 = vmatpush2.msra.mxu0 0.0
      %625 = vmatprep.subr.mxu0 0.0
      %626 = vmatpush2.msra.mxu0 0.0
      %627 = vmatprep.subr.mxu0 0.0
      %628 = vmatpush2.msra.mxu0 0.0
      %629 = vmatprep.subr.mxu0 0.0
      %630 = vmatpush2.msra.mxu0 0.0
      %631 = vmatprep.subr.mxu0 0.0
      %632 = vmatpush2.msra.mxu0 0.0
      %633 = vmatprep.subr.mxu0 0.0
      %634 = vmatpush2.msra.mxu0 0.0
      %635 = vmatprep.subr.mxu0 0.0
      %636 = vmatpush2.msra.mxu0 0.0
      %637 = vmatprep.mubr.f32.mxu0 0.0
      %638 = vmatmul.mubr.f32.gmra.mxu0 %v513
      %v639 = vpop.f32.mrf.mxu0
      %v640 = vadd.f32 0.0, %v639
      %v641 = vpop.f32.mrf.mxu0
      %642 = vmatprep.mubr.f32.mxu0 0.0
      %643 = vmatmul.mubr.f32.gmra.mxu0 %v514
      %v644 = vpop.f32.mrf.mxu0
      %v645 = vadd.f32 0.0, %v644
      %v646 = vpop.f32.mrf.mxu0
      %647 = vmatprep.mubr.f32.mxu0 0.0
      %648 = vmatmul.mubr.f32.gmra.mxu0 %v516
      %v649 = vpop.f32.mrf.mxu0
      %v650 = vadd.f32 0.0, %v649
      %v651 = vpop.f32.mrf.mxu0
      %652 = vmatprep.mubr.f32.mxu0 0.0
      %653 = vmatmul.mubr.f32.gmra.mxu0 %v517
      %v654 = vpop.f32.mrf.mxu0
      %v655 = vadd.f32 0.0, %v654
      %v656 = vpop.f32.mrf.mxu0
      %657 = vmatprep.mubr.f32.mxu0 0.0
      %658 = vmatmul.mubr.f32.gmra.mxu0 %v519
      %v659 = vpop.f32.mrf.mxu0
      %v660 = vadd.f32 0.0, %v659
      %v661 = vpop.f32.mrf.mxu0
      %662 = vmatprep.mubr.f32.mxu0 0.0
      %663 = vmatmul.mubr.f32.gmra.mxu0 %v520
      %v664 = vpop.f32.mrf.mxu0
      %v665 = vadd.f32 0.0, %v664
      %v666 = vpop.f32.mrf.mxu0
      %667 = vmatprep.mubr.f32.mxu0 0.0
      %668 = vmatmul.mubr.f32.gmra.mxu0 %v522
      %v669 = vpop.f32.mrf.mxu0
      %v670 = vadd.f32 0.0, %v669
      %v671 = vpop.f32.mrf.mxu0
      %672 = vmatprep.mubr.f32.mxu0 0.0
      %673 = vmatmul.mubr.f32.gmra.mxu0 %v523
      %v674 = vpop.f32.mrf.mxu0
      %v675 = vadd.f32 0.0, %v674
      %v676 = vpop.f32.mrf.mxu0
      %677 = vmatprep.mubr.f32.mxu0 0.0
      %678 = vmatmul.mubr.f32.gmra.mxu0 %v525
      %v679 = vpop.f32.mrf.mxu0
      %v680 = vadd.f32 0.0, %v679
      %v681 = vpop.f32.mrf.mxu0
      %682 = vmatprep.mubr.f32.mxu0 0.0
      %683 = vmatmul.mubr.f32.gmra.mxu0 %v526
      %v684 = vpop.f32.mrf.mxu0
      %v685 = vadd.f32 0.0, %v684
      %v686 = vpop.f32.mrf.mxu0
      %687 = vmatprep.mubr.f32.mxu0 0.0
      %688 = vmatmul.mubr.f32.gmra.mxu0 %v528
      %v689 = vpop.f32.mrf.mxu0
      %v690 = vadd.f32 0.0, %v689
      %v691 = vpop.f32.mrf.mxu0
      %692 = vmatprep.mubr.f32.mxu0 0.0
      %693 = vmatmul.mubr.f32.gmra.mxu0 %v529
      %v694 = vpop.f32.mrf.mxu0
      %v695 = vadd.f32 0.0, %v694
      %v696 = vpop.f32.mrf.mxu0
      %697 = vmatprep.mubr.f32.mxu0 0.0
      %698 = vmatmul.mubr.f32.gmra.mxu0 %v531
      %v699 = vpop.f32.mrf.mxu0
      %v700 = vadd.f32 0.0, %v699
      %v701 = vpop.f32.mrf.mxu0
      %702 = vmatprep.mubr.f32.mxu0 0.0
      %703 = vmatmul.mubr.f32.gmra.mxu0 %v532
      %v704 = vpop.f32.mrf.mxu0
      %v705 = vadd.f32 0.0, %v704
      %v706 = vpop.f32.mrf.mxu0
      %707 = vmatprep.mubr.f32.mxu0 0.0
      %708 = vmatmul.mubr.f32.gmra.mxu0 %v534
      %v709 = vpop.f32.mrf.mxu0
      %v710 = vadd.f32 0.0, %v709
      %v711 = vpop.f32.mrf.mxu0
      %712 = vmatprep.mubr.f32.mxu0 0.0
      %713 = vmatmul.mubr.f32.gmra.mxu0 %v535
      %v714 = vpop.f32.mrf.mxu0
      %v715 = vadd.f32 0.0, %v714
      %v716 = vpop.f32.mrf.mxu0
      %717 = vdwg.mxu0
      %718 = vmatprep.subr.mxu0 0.0
      %719 = vmatpush1.msra.mxu0 %v555
      %720 = vmatprep.subr.mxu0 0.0
      %721 = vmatpush1.msra.mxu0 %v554
      %722 = vmatprep.subr.mxu0 0.0
      %723 = vmatpush1.msra.mxu0 %v553
      %724 = vmatprep.subr.mxu0 0.0
      %725 = vmatpush1.msra.mxu0 %v552
      %726 = vmatprep.subr.mxu0 0.0
      %727 = vmatpush1.msra.mxu0 %v551
      %728 = vmatprep.subr.mxu0 0.0
      %729 = vmatpush1.msra.mxu0 %v550
      %730 = vmatprep.subr.mxu0 0.0
      %731 = vmatpush1.msra.mxu0 %v549
      %732 = vmatprep.subr.mxu0 0.0
      %733 = vmatpush1.msra.mxu0 %v548
      %734 = vmatprep.subr.mxu0 0.0
      %735 = vmatpush1.msra.mxu0 %v547
      %736 = vmatprep.subr.mxu0 0.0
      %737 = vmatpush1.msra.mxu0 %v546
      %738 = vmatprep.subr.mxu0 0.0
      %739 = vmatpush1.msra.mxu0 %v545
      %740 = vmatprep.subr.mxu0 0.0
      %741 = vmatpush1.msra.mxu0 %v544
      %742 = vmatprep.subr.mxu0 0.0
      %743 = vmatpush1.msra.mxu0 %v543
      %744 = vmatprep.subr.mxu0 0.0
      %745 = vmatpush1.msra.mxu0 %v542
      %746 = vmatprep.subr.mxu0 0.0
      %747 = vmatpush1.msra.mxu0 %v541
      %748 = vmatprep.subr.mxu0 0.0
      %749 = vmatpush1.msra.mxu0 %v540
      %750 = vmatprep.subr.mxu0 0.0
      %751 = vmatpush2.msra.mxu0 0.0
      %752 = vmatprep.subr.mxu0 0.0
      %753 = vmatpush2.msra.mxu0 0.0
      %754 = vmatprep.subr.mxu0 0.0
      %755 = vmatpush2.msra.mxu0 0.0
      %756 = vmatprep.subr.mxu0 0.0
      %757 = vmatpush2.msra.mxu0 0.0
      %758 = vmatprep.subr.mxu0 0.0
      %759 = vmatpush2.msra.mxu0 0.0
      %760 = vmatprep.subr.mxu0 0.0
      %761 = vmatpush2.msra.mxu0 0.0
      %762 = vmatprep.subr.mxu0 0.0
      %763 = vmatpush2.msra.mxu0 0.0
      %764 = vmatprep.subr.mxu0 0.0
      %765 = vmatpush2.msra.mxu0 0.0
      %766 = vmatprep.subr.mxu0 0.0
      %767 = vmatpush2.msra.mxu0 0.0
      %768 = vmatprep.subr.mxu0 0.0
      %769 = vmatpush2.msra.mxu0 0.0
      %770 = vmatprep.subr.mxu0 0.0
      %771 = vmatpush2.msra.mxu0 0.0
      %772 = vmatprep.subr.mxu0 0.0
      %773 = vmatpush2.msra.mxu0 0.0
      %774 = vmatprep.subr.mxu0 0.0
      %775 = vmatpush2.msra.mxu0 0.0
      %776 = vmatprep.subr.mxu0 0.0
      %777 = vmatpush2.msra.mxu0 0.0
      %778 = vmatprep.subr.mxu0 0.0
      %779 = vmatpush2.msra.mxu0 0.0
      %780 = vmatprep.subr.mxu0 0.0
      %781 = vmatpush2.msra.mxu0 0.0
      %782 = vmatprep.mubr.f32.mxu0 0.0
      %783 = vmatmul.mubr.f32.gmra.mxu0 %v510
      %v784 = vpop.f32.mrf.mxu0
      %v785 = vadd.f32 %v640, %v784
      %v786 = vpop.f32.mrf.mxu0
      %787 = vmatprep.mubr.f32.mxu0 0.0
      %788 = vmatmul.mubr.f32.gmra.mxu0 %v511
      %v789 = vpop.f32.mrf.mxu0
      %v790 = vadd.f32 %v645, %v789
      %v791 = vpop.f32.mrf.mxu0
      %792 = vmatprep.mubr.f32.mxu0 0.0
      %793 = vmatmul.mubr.f32.gmra.mxu0 %v513
      %v794 = vpop.f32.mrf.mxu0
      %v795 = vadd.f32 %v650, %v794
      %v796 = vpop.f32.mrf.mxu0
      %797 = vmatprep.mubr.f32.mxu0 0.0
      %798 = vmatmul.mubr.f32.gmra.mxu0 %v514
      %v799 = vpop.f32.mrf.mxu0
      %v800 = vadd.f32 %v655, %v799
      %v801 = vpop.f32.mrf.mxu0
      %802 = vmatprep.mubr.f32.mxu0 0.0
      %803 = vmatmul.mubr.f32.gmra.mxu0 %v516
      %v804 = vpop.f32.mrf.mxu0
      %v805 = vadd.f32 %v660, %v804
      %v806 = vpop.f32.mrf.mxu0
      %807 = vmatprep.mubr.f32.mxu0 0.0
      %808 = vmatmul.mubr.f32.gmra.mxu0 %v517
      %v809 = vpop.f32.mrf.mxu0
      %v810 = vadd.f32 %v665, %v809
      %v811 = vpop.f32.mrf.mxu0
      %812 = vmatprep.mubr.f32.mxu0 0.0
      %813 = vmatmul.mubr.f32.gmra.mxu0 %v519
      %v814 = vpop.f32.mrf.mxu0
      %v815 = vadd.f32 %v670, %v814
      %v816 = vpop.f32.mrf.mxu0
      %817 = vmatprep.mubr.f32.mxu0 0.0
      %818 = vmatmul.mubr.f32.gmra.mxu0 %v520
      %v819 = vpop.f32.mrf.mxu0
      %v820 = vadd.f32 %v675, %v819
      %v821 = vpop.f32.mrf.mxu0
      %822 = vmatprep.mubr.f32.mxu0 0.0
      %823 = vmatmul.mubr.f32.gmra.mxu0 %v522
      %v824 = vpop.f32.mrf.mxu0
      %v825 = vadd.f32 %v680, %v824
      %v826 = vpop.f32.mrf.mxu0
      %827 = vmatprep.mubr.f32.mxu0 0.0
      %828 = vmatmul.mubr.f32.gmra.mxu0 %v523
      %v829 = vpop.f32.mrf.mxu0
      %v830 = vadd.f32 %v685, %v829
      %v831 = vpop.f32.mrf.mxu0
      %832 = vmatprep.mubr.f32.mxu0 0.0
      %833 = vmatmul.mubr.f32.gmra.mxu0 %v525
      %v834 = vpop.f32.mrf.mxu0
      %v835 = vadd.f32 %v690, %v834
      %v836 = vpop.f32.mrf.mxu0
      %837 = vmatprep.mubr.f32.mxu0 0.0
      %838 = vmatmul.mubr.f32.gmra.mxu0 %v526
      %v839 = vpop.f32.mrf.mxu0
      %v840 = vadd.f32 %v695, %v839
      %v841 = vpop.f32.mrf.mxu0
      %842 = vmatprep.mubr.f32.mxu0 0.0
      %843 = vmatmul.mubr.f32.gmra.mxu0 %v528
      %v844 = vpop.f32.mrf.mxu0
      %v845 = vadd.f32 %v700, %v844
      %v846 = vpop.f32.mrf.mxu0
      %847 = vmatprep.mubr.f32.mxu0 0.0
      %848 = vmatmul.mubr.f32.gmra.mxu0 %v529
      %v849 = vpop.f32.mrf.mxu0
      %v850 = vadd.f32 %v705, %v849
      %v851 = vpop.f32.mrf.mxu0
      %852 = vmatprep.mubr.f32.mxu0 0.0
      %853 = vmatmul.mubr.f32.gmra.mxu0 %v531
      %v854 = vpop.f32.mrf.mxu0
      %v855 = vadd.f32 %v710, %v854
      %v856 = vpop.f32.mrf.mxu0
      %857 = vmatprep.mubr.f32.mxu0 0.0
      %858 = vmatmul.mubr.f32.gmra.mxu0 %v532
      %v859 = vpop.f32.mrf.mxu0
      %v860 = vadd.f32 %v715, %v859
      %v861 = vpop.f32.mrf.mxu0
      %862 = vdwg.mxu0
      %s863 = scalar_lea.vmem %s3, 768
      %v864 = vld [vmem:[%s863] sm:$0xff]
      %v865 = vld [vmem:[%s863 + $0x8] sm:$0xff]
      %v866 = vld [vmem:[%s863 + $0x10] sm:$0xff]
      %v867 = vld [vmem:[%s863 + $0x18] sm:$0xff]
      %v868 = vld [vmem:[%s863 + $0x20] sm:$0xff]
      %v869 = vld [vmem:[%s863 + $0x28] sm:$0xff]
      %v870 = vld [vmem:[%s863 + $0x30] sm:$0xff]
      %v871 = vld [vmem:[%s863 + $0x38] sm:$0xff]
      %v872 = vld [vmem:[%s863 + $0x40] sm:$0xff]
      %v873 = vld [vmem:[%s863 + $0x48] sm:$0xff]
      %v874 = vld [vmem:[%s863 + $0x50] sm:$0xff]
      %v875 = vld [vmem:[%s863 + $0x58] sm:$0xff]
      %v876 = vld [vmem:[%s863 + $0x60] sm:$0xff]
      %v877 = vld [vmem:[%s863 + $0x68] sm:$0xff]
      %v878 = vld [vmem:[%s863 + $0x70] sm:$0xff]
      %v879 = vld [vmem:[%s863 + $0x78] sm:$0xff]
      %880 = vmatprep.subr.mxu0 0.0
      %881 = vmatpush1.msra.mxu0 %v879
      %882 = vmatprep.subr.mxu0 0.0
      %883 = vmatpush1.msra.mxu0 %v878
      %884 = vmatprep.subr.mxu0 0.0
      %885 = vmatpush1.msra.mxu0 %v877
      %886 = vmatprep.subr.mxu0 0.0
      %887 = vmatpush1.msra.mxu0 %v876
      %888 = vmatprep.subr.mxu0 0.0
      %889 = vmatpush1.msra.mxu0 %v875
      %890 = vmatprep.subr.mxu0 0.0
      %891 = vmatpush1.msra.mxu0 %v874
      %892 = vmatprep.subr.mxu0 0.0
      %893 = vmatpush1.msra.mxu0 %v873
      %894 = vmatprep.subr.mxu0 0.0
      %895 = vmatpush1.msra.mxu0 %v872
      %896 = vmatprep.subr.mxu0 0.0
      %897 = vmatpush1.msra.mxu0 %v871
      %898 = vmatprep.subr.mxu0 0.0
      %899 = vmatpush1.msra.mxu0 %v870
      %900 = vmatprep.subr.mxu0 0.0
      %901 = vmatpush1.msra.mxu0 %v869
      %902 = vmatprep.subr.mxu0 0.0
      %903 = vmatpush1.msra.mxu0 %v868
      %904 = vmatprep.subr.mxu0 0.0
      %905 = vmatpush1.msra.mxu0 %v867
      %906 = vmatprep.subr.mxu0 0.0
      %907 = vmatpush1.msra.mxu0 %v866
      %908 = vmatprep.subr.mxu0 0.0
      %909 = vmatpush1.msra.mxu0 %v865
      %910 = vmatprep.subr.mxu0 0.0
      %911 = vmatpush1.msra.mxu0 %v864
      %912 = vmatprep.subr.mxu0 0.0
      %913 = vmatpush2.msra.mxu0 0.0
      %914 = vmatprep.subr.mxu0 0.0
      %915 = vmatpush2.msra.mxu0 0.0
      %916 = vmatprep.subr.mxu0 0.0
      %917 = vmatpush2.msra.mxu0 0.0
      %918 = vmatprep.subr.mxu0 0.0
      %919 = vmatpush2.msra.mxu0 0.0
      %920 = vmatprep.subr.mxu0 0.0
      %921 = vmatpush2.msra.mxu0 0.0
      %922 = vmatprep.subr.mxu0 0.0
      %923 = vmatpush2.msra.mxu0 0.0
      %924 = vmatprep.subr.mxu0 0.0
      %925 = vmatpush2.msra.mxu0 0.0
      %926 = vmatprep.subr.mxu0 0.0
      %927 = vmatpush2.msra.mxu0 0.0
      %928 = vmatprep.subr.mxu0 0.0
      %929 = vmatpush2.msra.mxu0 0.0
      %930 = vmatprep.subr.mxu0 0.0
      %931 = vmatpush2.msra.mxu0 0.0
      %932 = vmatprep.subr.mxu0 0.0
      %933 = vmatpush2.msra.mxu0 0.0
      %934 = vmatprep.subr.mxu0 0.0
      %935 = vmatpush2.msra.mxu0 0.0
      %936 = vmatprep.subr.mxu0 0.0
      %937 = vmatpush2.msra.mxu0 0.0
      %938 = vmatprep.subr.mxu0 0.0
      %939 = vmatpush2.msra.mxu0 0.0
      %940 = vmatprep.subr.mxu0 0.0
      %941 = vmatpush2.msra.mxu0 0.0
      %942 = vmatprep.subr.mxu0 0.0
      %943 = vmatpush2.msra.mxu0 0.0
      %944 = vmatprep.mubr.f32.mxu0 0.0
      %945 = vmatmul.mubr.f32.gmra.mxu0 %v516
      %v946 = vpop.f32.mrf.mxu0
      %v947 = vadd.f32 0.0, %v946
      %v948 = vpop.f32.mrf.mxu0
      %949 = vmatprep.mubr.f32.mxu0 0.0
      %950 = vmatmul.mubr.f32.gmra.mxu0 %v517
      %v951 = vpop.f32.mrf.mxu0
      %v952 = vadd.f32 0.0, %v951
      %v953 = vpop.f32.mrf.mxu0
      %954 = vmatprep.mubr.f32.mxu0 0.0
      %955 = vmatmul.mubr.f32.gmra.mxu0 %v519
      %v956 = vpop.f32.mrf.mxu0
      %v957 = vadd.f32 0.0, %v956
      %v958 = vpop.f32.mrf.mxu0
      %959 = vmatprep.mubr.f32.mxu0 0.0
      %960 = vmatmul.mubr.f32.gmra.mxu0 %v520
      %v961 = vpop.f32.mrf.mxu0
      %v962 = vadd.f32 0.0, %v961
      %v963 = vpop.f32.mrf.mxu0
      %964 = vmatprep.mubr.f32.mxu0 0.0
      %965 = vmatmul.mubr.f32.gmra.mxu0 %v522
      %v966 = vpop.f32.mrf.mxu0
      %v967 = vadd.f32 0.0, %v966
      %v968 = vpop.f32.mrf.mxu0
      %969 = vmatprep.mubr.f32.mxu0 0.0
      %970 = vmatmul.mubr.f32.gmra.mxu0 %v523
      %v971 = vpop.f32.mrf.mxu0
      %v972 = vadd.f32 0.0, %v971
      %v973 = vpop.f32.mrf.mxu0
      %974 = vmatprep.mubr.f32.mxu0 0.0
      %975 = vmatmul.mubr.f32.gmra.mxu0 %v525
      %v976 = vpop.f32.mrf.mxu0
      %v977 = vadd.f32 0.0, %v976
      %v978 = vpop.f32.mrf.mxu0
      %979 = vmatprep.mubr.f32.mxu0 0.0
      %980 = vmatmul.mubr.f32.gmra.mxu0 %v526
      %v981 = vpop.f32.mrf.mxu0
      %v982 = vadd.f32 0.0, %v981
      %v983 = vpop.f32.mrf.mxu0
      %984 = vmatprep.mubr.f32.mxu0 0.0
      %985 = vmatmul.mubr.f32.gmra.mxu0 %v528
      %v986 = vpop.f32.mrf.mxu0
      %v987 = vadd.f32 0.0, %v986
      %v988 = vpop.f32.mrf.mxu0
      %989 = vmatprep.mubr.f32.mxu0 0.0
      %990 = vmatmul.mubr.f32.gmra.mxu0 %v529
      %v991 = vpop.f32.mrf.mxu0
      %v992 = vadd.f32 0.0, %v991
      %v993 = vpop.f32.mrf.mxu0
      %994 = vmatprep.mubr.f32.mxu0 0.0
      %995 = vmatmul.mubr.f32.gmra.mxu0 %v531
      %v996 = vpop.f32.mrf.mxu0
      %v997 = vadd.f32 0.0, %v996
      %v998 = vpop.f32.mrf.mxu0
      %999 = vmatprep.mubr.f32.mxu0 0.0
      %1000 = vmatmul.mubr.f32.gmra.mxu0 %v532
      %v1001 = vpop.f32.mrf.mxu0
      %v1002 = vadd.f32 0.0, %v1001
      %v1003 = vpop.f32.mrf.mxu0
      %1004 = vmatprep.mubr.f32.mxu0 0.0
      %1005 = vmatmul.mubr.f32.gmra.mxu0 %v534
      %v1006 = vpop.f32.mrf.mxu0
      %v1007 = vadd.f32 0.0, %v1006
      %v1008 = vpop.f32.mrf.mxu0
      %1009 = vmatprep.mubr.f32.mxu0 0.0
      %1010 = vmatmul.mubr.f32.gmra.mxu0 %v535
      %v1011 = vpop.f32.mrf.mxu0
      %v1012 = vadd.f32 0.0, %v1011
      %v1013 = vpop.f32.mrf.mxu0
      %1014 = vmatprep.mubr.f32.mxu0 0.0
      %1015 = vmatmul.mubr.f32.gmra.mxu0 %v537
      %v1016 = vpop.f32.mrf.mxu0
      %v1017 = vadd.f32 0.0, %v1016
      %v1018 = vpop.f32.mrf.mxu0
      %1019 = vmatprep.mubr.f32.mxu0 0.0
      %1020 = vmatmul.mubr.f32.gmra.mxu0 %v538
      %v1021 = vpop.f32.mrf.mxu0
      %v1022 = vadd.f32 0.0, %v1021
      %v1023 = vpop.f32.mrf.mxu0
      %1024 = vdwg.mxu0
      %v1025 = vadd.f32 %v785, %v947
      %v1026 = vadd.f32 %v790, %v952
      %v1027 = vadd.f32 %v795, %v957
      %v1028 = vadd.f32 %v800, %v962
      %v1029 = vadd.f32 %v805, %v967
      %v1030 = vadd.f32 %v810, %v972
      %v1031 = vadd.f32 %v815, %v977
      %v1032 = vadd.f32 %v820, %v982
      %v1033 = vadd.f32 %v825, %v987
      %v1034 = vadd.f32 %v830, %v992
      %v1035 = vadd.f32 %v835, %v997
      %v1036 = vadd.f32 %v840, %v1002
      %v1037 = vadd.f32 %v845, %v1007
      %v1038 = vadd.f32 %v850, %v1012
      %v1039 = vadd.f32 %v855, %v1017
      %v1040 = vadd.f32 %v860, %v1022
      %vm1065 = vcmask 1046528
      %v1066 = vrot.slane %v510, 1
      %v1067 = vrot.slane %v511, 1
      %v1068 = vsel %vm1065, %v1066, %v1067
      %v1069 = vrot.slane %v512, 1
      %v1070 = vsel %vm1065, %v1067, %v1069
      %v1071 = vrot.slane %v513, 1
      %v1072 = vrot.slane %v514, 1
      %v1073 = vsel %vm1065, %v1071, %v1072
      %v1074 = vrot.slane %v515, 1
      %v1075 = vsel %vm1065, %v1072, %v1074
      %v1076 = vrot.slane %v516, 1
      %v1077 = vrot.slane %v517, 1
      %v1078 = vsel %vm1065, %v1076, %v1077
      %v1079 = vrot.slane %v518, 1
      %v1080 = vsel %vm1065, %v1077, %v1079
      %v1081 = vrot.slane %v519, 1
      %v1082 = vrot.slane %v520, 1
      %v1083 = vsel %vm1065, %v1081, %v1082
      %v1084 = vrot.slane %v521, 1
      %v1085 = vsel %vm1065, %v1082, %v1084
      %v1086 = vrot.slane %v522, 1
      %v1087 = vrot.slane %v523, 1
      %v1088 = vsel %vm1065, %v1086, %v1087
      %v1089 = vrot.slane %v524, 1
      %v1090 = vsel %vm1065, %v1087, %v1089
      %v1091 = vrot.slane %v525, 1
      %v1092 = vrot.slane %v526, 1
      %v1093 = vsel %vm1065, %v1091, %v1092
      %v1094 = vrot.slane %v527, 1
      %v1095 = vsel %vm1065, %v1092, %v1094
      %v1096 = vrot.slane %v528, 1
      %v1097 = vrot.slane %v529, 1
      %v1098 = vsel %vm1065, %v1096, %v1097
      %v1099 = vrot.slane %v530, 1
      %v1100 = vsel %vm1065, %v1097, %v1099
      %v1101 = vrot.slane %v531, 1
      %v1102 = vrot.slane %v532, 1
      %v1103 = vsel %vm1065, %v1101, %v1102
      %v1104 = vrot.slane %v533, 1
      %v1105 = vsel %vm1065, %v1102, %v1104
      %s1122 = scalar_lea.vmem %s3, 128
      %v1123 = vld [vmem:[%s1122] sm:$0xff]
      %v1124 = vld [vmem:[%s1122 + $0x8] sm:$0xff]
      %v1125 = vld [vmem:[%s1122 + $0x10] sm:$0xff]
      %v1126 = vld [vmem:[%s1122 + $0x18] sm:$0xff]
      %v1127 = vld [vmem:[%s1122 + $0x20] sm:$0xff]
      %v1128 = vld [vmem:[%s1122 + $0x28] sm:$0xff]
      %v1129 = vld [vmem:[%s1122 + $0x30] sm:$0xff]
      %v1130 = vld [vmem:[%s1122 + $0x38] sm:$0xff]
      %v1131 = vld [vmem:[%s1122 + $0x40] sm:$0xff]
      %v1132 = vld [vmem:[%s1122 + $0x48] sm:$0xff]
      %v1133 = vld [vmem:[%s1122 + $0x50] sm:$0xff]
      %v1134 = vld [vmem:[%s1122 + $0x58] sm:$0xff]
      %v1135 = vld [vmem:[%s1122 + $0x60] sm:$0xff]
      %v1136 = vld [vmem:[%s1122 + $0x68] sm:$0xff]
      %v1137 = vld [vmem:[%s1122 + $0x70] sm:$0xff]
      %v1138 = vld [vmem:[%s1122 + $0x78] sm:$0xff]
      %1139 = vmatprep.subr.mxu0 0.0
      %1140 = vmatpush1.msra.mxu0 %v1138
      %1141 = vmatprep.subr.mxu0 0.0
      %1142 = vmatpush1.msra.mxu0 %v1137
      %1143 = vmatprep.subr.mxu0 0.0
      %1144 = vmatpush1.msra.mxu0 %v1136
      %1145 = vmatprep.subr.mxu0 0.0
      %1146 = vmatpush1.msra.mxu0 %v1135
      %1147 = vmatprep.subr.mxu0 0.0
      %1148 = vmatpush1.msra.mxu0 %v1134
      %1149 = vmatprep.subr.mxu0 0.0
      %1150 = vmatpush1.msra.mxu0 %v1133
      %1151 = vmatprep.subr.mxu0 0.0
      %1152 = vmatpush1.msra.mxu0 %v1132
      %1153 = vmatprep.subr.mxu0 0.0
      %1154 = vmatpush1.msra.mxu0 %v1131
      %1155 = vmatprep.subr.mxu0 0.0
      %1156 = vmatpush1.msra.mxu0 %v1130
      %1157 = vmatprep.subr.mxu0 0.0
      %1158 = vmatpush1.msra.mxu0 %v1129
      %1159 = vmatprep.subr.mxu0 0.0
      %1160 = vmatpush1.msra.mxu0 %v1128
      %1161 = vmatprep.subr.mxu0 0.0
      %1162 = vmatpush1.msra.mxu0 %v1127
      %1163 = vmatprep.subr.mxu0 0.0
      %1164 = vmatpush1.msra.mxu0 %v1126
      %1165 = vmatprep.subr.mxu0 0.0
      %1166 = vmatpush1.msra.mxu0 %v1125
      %1167 = vmatprep.subr.mxu0 0.0
      %1168 = vmatpush1.msra.mxu0 %v1124
      %1169 = vmatprep.subr.mxu0 0.0
      %1170 = vmatpush1.msra.mxu0 %v1123
      %1171 = vmatprep.subr.mxu0 0.0
      %1172 = vmatpush2.msra.mxu0 0.0
      %1173 = vmatprep.subr.mxu0 0.0
      %1174 = vmatpush2.msra.mxu0 0.0
      %1175 = vmatprep.subr.mxu0 0.0
      %1176 = vmatpush2.msra.mxu0 0.0
      %1177 = vmatprep.subr.mxu0 0.0
      %1178 = vmatpush2.msra.mxu0 0.0
      %1179 = vmatprep.subr.mxu0 0.0
      %1180 = vmatpush2.msra.mxu0 0.0
      %1181 = vmatprep.subr.mxu0 0.0
      %1182 = vmatpush2.msra.mxu0 0.0
      %1183 = vmatprep.subr.mxu0 0.0
      %1184 = vmatpush2.msra.mxu0 0.0
      %1185 = vmatprep.subr.mxu0 0.0
      %1186 = vmatpush2.msra.mxu0 0.0
      %1187 = vmatprep.subr.mxu0 0.0
      %1188 = vmatpush2.msra.mxu0 0.0
      %1189 = vmatprep.subr.mxu0 0.0
      %1190 = vmatpush2.msra.mxu0 0.0
      %1191 = vmatprep.subr.mxu0 0.0
      %1192 = vmatpush2.msra.mxu0 0.0
      %1193 = vmatprep.subr.mxu0 0.0
      %1194 = vmatpush2.msra.mxu0 0.0
      %1195 = vmatprep.subr.mxu0 0.0
      %1196 = vmatpush2.msra.mxu0 0.0
      %1197 = vmatprep.subr.mxu0 0.0
      %1198 = vmatpush2.msra.mxu0 0.0
      %1199 = vmatprep.subr.mxu0 0.0
      %1200 = vmatpush2.msra.mxu0 0.0
      %1201 = vmatprep.subr.mxu0 0.0
      %1202 = vmatpush2.msra.mxu0 0.0
      %1203 = vmatprep.mubr.f32.mxu0 0.0
      %1204 = vmatmul.mubr.f32.gmra.mxu0 %v1068
      %v1205 = vpop.f32.mrf.mxu0
      %v1206 = vadd.f32 0.0, %v1205
      %v1207 = vpop.f32.mrf.mxu0
      %1208 = vmatprep.mubr.f32.mxu0 0.0
      %1209 = vmatmul.mubr.f32.gmra.mxu0 %v1070
      %v1210 = vpop.f32.mrf.mxu0
      %v1211 = vadd.f32 0.0, %v1210
      %v1212 = vpop.f32.mrf.mxu0
      %1213 = vmatprep.mubr.f32.mxu0 0.0
      %1214 = vmatmul.mubr.f32.gmra.mxu0 %v1073
      %v1215 = vpop.f32.mrf.mxu0
      %v1216 = vadd.f32 0.0, %v1215
      %v1217 = vpop.f32.mrf.mxu0
      %1218 = vmatprep.mubr.f32.mxu0 0.0
      %1219 = vmatmul.mubr.f32.gmra.mxu0 %v1075
      %v1220 = vpop.f32.mrf.mxu0
      %v1221 = vadd.f32 0.0, %v1220
      %v1222 = vpop.f32.mrf.mxu0
      %1223 = vmatprep.mubr.f32.mxu0 0.0
      %1224 = vmatmul.mubr.f32.gmra.mxu0 %v1078
      %v1225 = vpop.f32.mrf.mxu0
      %v1226 = vadd.f32 0.0, %v1225
      %v1227 = vpop.f32.mrf.mxu0
      %1228 = vmatprep.mubr.f32.mxu0 0.0
      %1229 = vmatmul.mubr.f32.gmra.mxu0 %v1080
      %v1230 = vpop.f32.mrf.mxu0
      %v1231 = vadd.f32 0.0, %v1230
      %v1232 = vpop.f32.mrf.mxu0
      %1233 = vmatprep.mubr.f32.mxu0 0.0
      %1234 = vmatmul.mubr.f32.gmra.mxu0 %v1083
      %v1235 = vpop.f32.mrf.mxu0
      %v1236 = vadd.f32 0.0, %v1235
      %v1237 = vpop.f32.mrf.mxu0
      %1238 = vmatprep.mubr.f32.mxu0 0.0
      %1239 = vmatmul.mubr.f32.gmra.mxu0 %v1085
      %v1240 = vpop.f32.mrf.mxu0
      %v1241 = vadd.f32 0.0, %v1240
      %v1242 = vpop.f32.mrf.mxu0
      %1243 = vmatprep.mubr.f32.mxu0 0.0
      %1244 = vmatmul.mubr.f32.gmra.mxu0 %v1088
      %v1245 = vpop.f32.mrf.mxu0
      %v1246 = vadd.f32 0.0, %v1245
      %v1247 = vpop.f32.mrf.mxu0
      %1248 = vmatprep.mubr.f32.mxu0 0.0
      %1249 = vmatmul.mubr.f32.gmra.mxu0 %v1090
      %v1250 = vpop.f32.mrf.mxu0
      %v1251 = vadd.f32 0.0, %v1250
      %v1252 = vpop.f32.mrf.mxu0
      %1253 = vmatprep.mubr.f32.mxu0 0.0
      %1254 = vmatmul.mubr.f32.gmra.mxu0 %v1093
      %v1255 = vpop.f32.mrf.mxu0
      %v1256 = vadd.f32 0.0, %v1255
      %v1257 = vpop.f32.mrf.mxu0
      %1258 = vmatprep.mubr.f32.mxu0 0.0
      %1259 = vmatmul.mubr.f32.gmra.mxu0 %v1095
      %v1260 = vpop.f32.mrf.mxu0
      %v1261 = vadd.f32 0.0, %v1260
      %v1262 = vpop.f32.mrf.mxu0
      %1263 = vmatprep.mubr.f32.mxu0 0.0
      %1264 = vmatmul.mubr.f32.gmra.mxu0 %v1098
      %v1265 = vpop.f32.mrf.mxu0
      %v1266 = vadd.f32 0.0, %v1265
      %v1267 = vpop.f32.mrf.mxu0
      %1268 = vmatprep.mubr.f32.mxu0 0.0
      %1269 = vmatmul.mubr.f32.gmra.mxu0 %v1100
      %v1270 = vpop.f32.mrf.mxu0
      %v1271 = vadd.f32 0.0, %v1270
      %v1272 = vpop.f32.mrf.mxu0
      %1273 = vmatprep.mubr.f32.mxu0 0.0
      %1274 = vmatmul.mubr.f32.gmra.mxu0 %v1103
      %v1275 = vpop.f32.mrf.mxu0
      %v1276 = vadd.f32 0.0, %v1275
      %v1277 = vpop.f32.mrf.mxu0
      %1278 = vmatprep.mubr.f32.mxu0 0.0
      %1279 = vmatmul.mubr.f32.gmra.mxu0 %v1105
      %v1280 = vpop.f32.mrf.mxu0
      %v1281 = vadd.f32 0.0, %v1280
      %v1282 = vpop.f32.mrf.mxu0
      %1283 = vdwg.mxu0
      %v1284 = vadd.f32 %v1025, %v1206
      %v1285 = vadd.f32 %v1026, %v1211
      %v1286 = vadd.f32 %v1027, %v1216
      %v1287 = vadd.f32 %v1028, %v1221
      %v1288 = vadd.f32 %v1029, %v1226
      %v1289 = vadd.f32 %v1030, %v1231
      %v1290 = vadd.f32 %v1031, %v1236
      %v1291 = vadd.f32 %v1032, %v1241
      %v1292 = vadd.f32 %v1033, %v1246
      %v1293 = vadd.f32 %v1034, %v1251
      %v1294 = vadd.f32 %v1035, %v1256
      %v1295 = vadd.f32 %v1036, %v1261
      %v1296 = vadd.f32 %v1037, %v1266
      %v1297 = vadd.f32 %v1038, %v1271
      %v1298 = vadd.f32 %v1039, %v1276
      %v1299 = vadd.f32 %v1040, %v1281
      %v1303 = vrot.slane %v534, 1
      %v1304 = vrot.slane %v535, 1
      %v1305 = vsel %vm1065, %v1303, %v1304
      %v1306 = vrot.slane %v536, 1
      %v1307 = vsel %vm1065, %v1304, %v1306
      %s1310 = scalar_lea.vmem %s3, 512
      %v1311 = vld [vmem:[%s1310] sm:$0xff]
      %v1312 = vld [vmem:[%s1310 + $0x8] sm:$0xff]
      %v1313 = vld [vmem:[%s1310 + $0x10] sm:$0xff]
      %v1314 = vld [vmem:[%s1310 + $0x18] sm:$0xff]
      %v1315 = vld [vmem:[%s1310 + $0x20] sm:$0xff]
      %v1316 = vld [vmem:[%s1310 + $0x28] sm:$0xff]
      %v1317 = vld [vmem:[%s1310 + $0x30] sm:$0xff]
      %v1318 = vld [vmem:[%s1310 + $0x38] sm:$0xff]
      %v1319 = vld [vmem:[%s1310 + $0x40] sm:$0xff]
      %v1320 = vld [vmem:[%s1310 + $0x48] sm:$0xff]
      %v1321 = vld [vmem:[%s1310 + $0x50] sm:$0xff]
      %v1322 = vld [vmem:[%s1310 + $0x58] sm:$0xff]
      %v1323 = vld [vmem:[%s1310 + $0x60] sm:$0xff]
      %v1324 = vld [vmem:[%s1310 + $0x68] sm:$0xff]
      %v1325 = vld [vmem:[%s1310 + $0x70] sm:$0xff]
      %v1326 = vld [vmem:[%s1310 + $0x78] sm:$0xff]
      %1327 = vmatprep.subr.mxu0 0.0
      %1328 = vmatpush1.msra.mxu0 %v1326
      %1329 = vmatprep.subr.mxu0 0.0
      %1330 = vmatpush1.msra.mxu0 %v1325
      %1331 = vmatprep.subr.mxu0 0.0
      %1332 = vmatpush1.msra.mxu0 %v1324
      %1333 = vmatprep.subr.mxu0 0.0
      %1334 = vmatpush1.msra.mxu0 %v1323
      %1335 = vmatprep.subr.mxu0 0.0
      %1336 = vmatpush1.msra.mxu0 %v1322
      %1337 = vmatprep.subr.mxu0 0.0
      %1338 = vmatpush1.msra.mxu0 %v1321
      %1339 = vmatprep.subr.mxu0 0.0
      %1340 = vmatpush1.msra.mxu0 %v1320
      %1341 = vmatprep.subr.mxu0 0.0
      %1342 = vmatpush1.msra.mxu0 %v1319
      %1343 = vmatprep.subr.mxu0 0.0
      %1344 = vmatpush1.msra.mxu0 %v1318
      %1345 = vmatprep.subr.mxu0 0.0
      %1346 = vmatpush1.msra.mxu0 %v1317
      %1347 = vmatprep.subr.mxu0 0.0
      %1348 = vmatpush1.msra.mxu0 %v1316
      %1349 = vmatprep.subr.mxu0 0.0
      %1350 = vmatpush1.msra.mxu0 %v1315
      %1351 = vmatprep.subr.mxu0 0.0
      %1352 = vmatpush1.msra.mxu0 %v1314
      %1353 = vmatprep.subr.mxu0 0.0
      %1354 = vmatpush1.msra.mxu0 %v1313
      %1355 = vmatprep.subr.mxu0 0.0
      %1356 = vmatpush1.msra.mxu0 %v1312
      %1357 = vmatprep.subr.mxu0 0.0
      %1358 = vmatpush1.msra.mxu0 %v1311
      %1359 = vmatprep.subr.mxu0 0.0
      %1360 = vmatpush2.msra.mxu0 0.0
      %1361 = vmatprep.subr.mxu0 0.0
      %1362 = vmatpush2.msra.mxu0 0.0
      %1363 = vmatprep.subr.mxu0 0.0
      %1364 = vmatpush2.msra.mxu0 0.0
      %1365 = vmatprep.subr.mxu0 0.0
      %1366 = vmatpush2.msra.mxu0 0.0
      %1367 = vmatprep.subr.mxu0 0.0
      %1368 = vmatpush2.msra.mxu0 0.0
      %1369 = vmatprep.subr.mxu0 0.0
      %1370 = vmatpush2.msra.mxu0 0.0
      %1371 = vmatprep.subr.mxu0 0.0
      %1372 = vmatpush2.msra.mxu0 0.0
      %1373 = vmatprep.subr.mxu0 0.0
      %1374 = vmatpush2.msra.mxu0 0.0
      %1375 = vmatprep.subr.mxu0 0.0
      %1376 = vmatpush2.msra.mxu0 0.0
      %1377 = vmatprep.subr.mxu0 0.0
      %1378 = vmatpush2.msra.mxu0 0.0
      %1379 = vmatprep.subr.mxu0 0.0
      %1380 = vmatpush2.msra.mxu0 0.0
      %1381 = vmatprep.subr.mxu0 0.0
      %1382 = vmatpush2.msra.mxu0 0.0
      %1383 = vmatprep.subr.mxu0 0.0
      %1384 = vmatpush2.msra.mxu0 0.0
      %1385 = vmatprep.subr.mxu0 0.0
      %1386 = vmatpush2.msra.mxu0 0.0
      %1387 = vmatprep.subr.mxu0 0.0
      %1388 = vmatpush2.msra.mxu0 0.0
      %1389 = vmatprep.subr.mxu0 0.0
      %1390 = vmatpush2.msra.mxu0 0.0
      %1391 = vmatprep.mubr.f32.mxu0 0.0
      %1392 = vmatmul.mubr.f32.gmra.mxu0 %v1073
      %v1393 = vpop.f32.mrf.mxu0
      %v1394 = vadd.f32 0.0, %v1393
      %v1395 = vpop.f32.mrf.mxu0
      %1396 = vmatprep.mubr.f32.mxu0 0.0
      %1397 = vmatmul.mubr.f32.gmra.mxu0 %v1075
      %v1398 = vpop.f32.mrf.mxu0
      %v1399 = vadd.f32 0.0, %v1398
      %v1400 = vpop.f32.mrf.mxu0
      %1401 = vmatprep.mubr.f32.mxu0 0.0
      %1402 = vmatmul.mubr.f32.gmra.mxu0 %v1078
      %v1403 = vpop.f32.mrf.mxu0
      %v1404 = vadd.f32 0.0, %v1403
      %v1405 = vpop.f32.mrf.mxu0
      %1406 = vmatprep.mubr.f32.mxu0 0.0
      %1407 = vmatmul.mubr.f32.gmra.mxu0 %v1080
      %v1408 = vpop.f32.mrf.mxu0
      %v1409 = vadd.f32 0.0, %v1408
      %v1410 = vpop.f32.mrf.mxu0
      %1411 = vmatprep.mubr.f32.mxu0 0.0
      %1412 = vmatmul.mubr.f32.gmra.mxu0 %v1083
      %v1413 = vpop.f32.mrf.mxu0
      %v1414 = vadd.f32 0.0, %v1413
      %v1415 = vpop.f32.mrf.mxu0
      %1416 = vmatprep.mubr.f32.mxu0 0.0
      %1417 = vmatmul.mubr.f32.gmra.mxu0 %v1085
      %v1418 = vpop.f32.mrf.mxu0
      %v1419 = vadd.f32 0.0, %v1418
      %v1420 = vpop.f32.mrf.mxu0
      %1421 = vmatprep.mubr.f32.mxu0 0.0
      %1422 = vmatmul.mubr.f32.gmra.mxu0 %v1088
      %v1423 = vpop.f32.mrf.mxu0
      %v1424 = vadd.f32 0.0, %v1423
      %v1425 = vpop.f32.mrf.mxu0
      %1426 = vmatprep.mubr.f32.mxu0 0.0
      %1427 = vmatmul.mubr.f32.gmra.mxu0 %v1090
      %v1428 = vpop.f32.mrf.mxu0
      %v1429 = vadd.f32 0.0, %v1428
      %v1430 = vpop.f32.mrf.mxu0
      %1431 = vmatprep.mubr.f32.mxu0 0.0
      %1432 = vmatmul.mubr.f32.gmra.mxu0 %v1093
      %v1433 = vpop.f32.mrf.mxu0
      %v1434 = vadd.f32 0.0, %v1433
      %v1435 = vpop.f32.mrf.mxu0
      %1436 = vmatprep.mubr.f32.mxu0 0.0
      %1437 = vmatmul.mubr.f32.gmra.mxu0 %v1095
      %v1438 = vpop.f32.mrf.mxu0
      %v1439 = vadd.f32 0.0, %v1438
      %v1440 = vpop.f32.mrf.mxu0
      %1441 = vmatprep.mubr.f32.mxu0 0.0
      %1442 = vmatmul.mubr.f32.gmra.mxu0 %v1098
      %v1443 = vpop.f32.mrf.mxu0
      %v1444 = vadd.f32 0.0, %v1443
      %v1445 = vpop.f32.mrf.mxu0
      %1446 = vmatprep.mubr.f32.mxu0 0.0
      %1447 = vmatmul.mubr.f32.gmra.mxu0 %v1100
      %v1448 = vpop.f32.mrf.mxu0
      %v1449 = vadd.f32 0.0, %v1448
      %v1450 = vpop.f32.mrf.mxu0
      %1451 = vmatprep.mubr.f32.mxu0 0.0
      %1452 = vmatmul.mubr.f32.gmra.mxu0 %v1103
      %v1453 = vpop.f32.mrf.mxu0
      %v1454 = vadd.f32 0.0, %v1453
      %v1455 = vpop.f32.mrf.mxu0
      %1456 = vmatprep.mubr.f32.mxu0 0.0
      %1457 = vmatmul.mubr.f32.gmra.mxu0 %v1105
      %v1458 = vpop.f32.mrf.mxu0
      %v1459 = vadd.f32 0.0, %v1458
      %v1460 = vpop.f32.mrf.mxu0
      %1461 = vmatprep.mubr.f32.mxu0 0.0
      %1462 = vmatmul.mubr.f32.gmra.mxu0 %v1305
      %v1463 = vpop.f32.mrf.mxu0
      %v1464 = vadd.f32 0.0, %v1463
      %v1465 = vpop.f32.mrf.mxu0
      %1466 = vmatprep.mubr.f32.mxu0 0.0
      %1467 = vmatmul.mubr.f32.gmra.mxu0 %v1307
      %v1468 = vpop.f32.mrf.mxu0
      %v1469 = vadd.f32 0.0, %v1468
      %v1470 = vpop.f32.mrf.mxu0
      %1471 = vdwg.mxu0
      %v1472 = vadd.f32 %v1284, %v1394
      %v1473 = vadd.f32 %v1285, %v1399
      %v1474 = vadd.f32 %v1286, %v1404
      %v1475 = vadd.f32 %v1287, %v1409
      %v1476 = vadd.f32 %v1288, %v1414
      %v1477 = vadd.f32 %v1289, %v1419
      %v1478 = vadd.f32 %v1290, %v1424
      %v1479 = vadd.f32 %v1291, %v1429
      %v1480 = vadd.f32 %v1292, %v1434
      %v1481 = vadd.f32 %v1293, %v1439
      %v1482 = vadd.f32 %v1294, %v1444
      %v1483 = vadd.f32 %v1295, %v1449
      %v1484 = vadd.f32 %v1296, %v1454
      %v1485 = vadd.f32 %v1297, %v1459
      %v1486 = vadd.f32 %v1298, %v1464
      %v1487 = vadd.f32 %v1299, %v1469
      %v1491 = vrot.slane %v537, 1
      %v1492 = vrot.slane %v538, 1
      %v1493 = vsel %vm1065, %v1491, %v1492
      %v1494 = vrot.slane %v539, 1
      %v1495 = vsel %vm1065, %v1492, %v1494
      %s1498 = scalar_lea.vmem %s3, 896
      %v1499 = vld [vmem:[%s1498] sm:$0xff]
      %v1500 = vld [vmem:[%s1498 + $0x8] sm:$0xff]
      %v1501 = vld [vmem:[%s1498 + $0x10] sm:$0xff]
      %v1502 = vld [vmem:[%s1498 + $0x18] sm:$0xff]
      %v1503 = vld [vmem:[%s1498 + $0x20] sm:$0xff]
      %v1504 = vld [vmem:[%s1498 + $0x28] sm:$0xff]
      %v1505 = vld [vmem:[%s1498 + $0x30] sm:$0xff]
      %v1506 = vld [vmem:[%s1498 + $0x38] sm:$0xff]
      %v1507 = vld [vmem:[%s1498 + $0x40] sm:$0xff]
      %v1508 = vld [vmem:[%s1498 + $0x48] sm:$0xff]
      %v1509 = vld [vmem:[%s1498 + $0x50] sm:$0xff]
      %v1510 = vld [vmem:[%s1498 + $0x58] sm:$0xff]
      %v1511 = vld [vmem:[%s1498 + $0x60] sm:$0xff]
      %v1512 = vld [vmem:[%s1498 + $0x68] sm:$0xff]
      %v1513 = vld [vmem:[%s1498 + $0x70] sm:$0xff]
      %v1514 = vld [vmem:[%s1498 + $0x78] sm:$0xff]
      %1515 = vmatprep.subr.mxu0 0.0
      %1516 = vmatpush1.msra.mxu0 %v1514
      %1517 = vmatprep.subr.mxu0 0.0
      %1518 = vmatpush1.msra.mxu0 %v1513
      %1519 = vmatprep.subr.mxu0 0.0
      %1520 = vmatpush1.msra.mxu0 %v1512
      %1521 = vmatprep.subr.mxu0 0.0
      %1522 = vmatpush1.msra.mxu0 %v1511
      %1523 = vmatprep.subr.mxu0 0.0
      %1524 = vmatpush1.msra.mxu0 %v1510
      %1525 = vmatprep.subr.mxu0 0.0
      %1526 = vmatpush1.msra.mxu0 %v1509
      %1527 = vmatprep.subr.mxu0 0.0
      %1528 = vmatpush1.msra.mxu0 %v1508
      %1529 = vmatprep.subr.mxu0 0.0
      %1530 = vmatpush1.msra.mxu0 %v1507
      %1531 = vmatprep.subr.mxu0 0.0
      %1532 = vmatpush1.msra.mxu0 %v1506
      %1533 = vmatprep.subr.mxu0 0.0
      %1534 = vmatpush1.msra.mxu0 %v1505
      %1535 = vmatprep.subr.mxu0 0.0
      %1536 = vmatpush1.msra.mxu0 %v1504
      %1537 = vmatprep.subr.mxu0 0.0
      %1538 = vmatpush1.msra.mxu0 %v1503
      %1539 = vmatprep.subr.mxu0 0.0
      %1540 = vmatpush1.msra.mxu0 %v1502
      %1541 = vmatprep.subr.mxu0 0.0
      %1542 = vmatpush1.msra.mxu0 %v1501
      %1543 = vmatprep.subr.mxu0 0.0
      %1544 = vmatpush1.msra.mxu0 %v1500
      %1545 = vmatprep.subr.mxu0 0.0
      %1546 = vmatpush1.msra.mxu0 %v1499
      %1547 = vmatprep.subr.mxu0 0.0
      %1548 = vmatpush2.msra.mxu0 0.0
      %1549 = vmatprep.subr.mxu0 0.0
      %1550 = vmatpush2.msra.mxu0 0.0
      %1551 = vmatprep.subr.mxu0 0.0
      %1552 = vmatpush2.msra.mxu0 0.0
      %1553 = vmatprep.subr.mxu0 0.0
      %1554 = vmatpush2.msra.mxu0 0.0
      %1555 = vmatprep.subr.mxu0 0.0
      %1556 = vmatpush2.msra.mxu0 0.0
      %1557 = vmatprep.subr.mxu0 0.0
      %1558 = vmatpush2.msra.mxu0 0.0
      %1559 = vmatprep.subr.mxu0 0.0
      %1560 = vmatpush2.msra.mxu0 0.0
      %1561 = vmatprep.subr.mxu0 0.0
      %1562 = vmatpush2.msra.mxu0 0.0
      %1563 = vmatprep.subr.mxu0 0.0
      %1564 = vmatpush2.msra.mxu0 0.0
      %1565 = vmatprep.subr.mxu0 0.0
      %1566 = vmatpush2.msra.mxu0 0.0
      %1567 = vmatprep.subr.mxu0 0.0
      %1568 = vmatpush2.msra.mxu0 0.0
      %1569 = vmatprep.subr.mxu0 0.0
      %1570 = vmatpush2.msra.mxu0 0.0
      %1571 = vmatprep.subr.mxu0 0.0
      %1572 = vmatpush2.msra.mxu0 0.0
      %1573 = vmatprep.subr.mxu0 0.0
      %1574 = vmatpush2.msra.mxu0 0.0
      %1575 = vmatprep.subr.mxu0 0.0
      %1576 = vmatpush2.msra.mxu0 0.0
      %1577 = vmatprep.subr.mxu0 0.0
      %1578 = vmatpush2.msra.mxu0 0.0
      %1579 = vmatprep.mubr.f32.mxu0 0.0
      %1580 = vmatmul.mubr.f32.gmra.mxu0 %v1078
      %v1581 = vpop.f32.mrf.mxu0
      %v1582 = vadd.f32 0.0, %v1581
      %v1583 = vpop.f32.mrf.mxu0
      %1584 = vmatprep.mubr.f32.mxu0 0.0
      %1585 = vmatmul.mubr.f32.gmra.mxu0 %v1080
      %v1586 = vpop.f32.mrf.mxu0
      %v1587 = vadd.f32 0.0, %v1586
      %v1588 = vpop.f32.mrf.mxu0
      %1589 = vmatprep.mubr.f32.mxu0 0.0
      %1590 = vmatmul.mubr.f32.gmra.mxu0 %v1083
      %v1591 = vpop.f32.mrf.mxu0
      %v1592 = vadd.f32 0.0, %v1591
      %v1593 = vpop.f32.mrf.mxu0
      %1594 = vmatprep.mubr.f32.mxu0 0.0
      %1595 = vmatmul.mubr.f32.gmra.mxu0 %v1085
      %v1596 = vpop.f32.mrf.mxu0
      %v1597 = vadd.f32 0.0, %v1596
      %v1598 = vpop.f32.mrf.mxu0
      %1599 = vmatprep.mubr.f32.mxu0 0.0
      %1600 = vmatmul.mubr.f32.gmra.mxu0 %v1088
      %v1601 = vpop.f32.mrf.mxu0
      %v1602 = vadd.f32 0.0, %v1601
      %v1603 = vpop.f32.mrf.mxu0
      %1604 = vmatprep.mubr.f32.mxu0 0.0
      %1605 = vmatmul.mubr.f32.gmra.mxu0 %v1090
      %v1606 = vpop.f32.mrf.mxu0
      %v1607 = vadd.f32 0.0, %v1606
      %v1608 = vpop.f32.mrf.mxu0
      %1609 = vmatprep.mubr.f32.mxu0 0.0
      %1610 = vmatmul.mubr.f32.gmra.mxu0 %v1093
      %v1611 = vpop.f32.mrf.mxu0
      %v1612 = vadd.f32 0.0, %v1611
      %v1613 = vpop.f32.mrf.mxu0
      %1614 = vmatprep.mubr.f32.mxu0 0.0
      %1615 = vmatmul.mubr.f32.gmra.mxu0 %v1095
      %v1616 = vpop.f32.mrf.mxu0
      %v1617 = vadd.f32 0.0, %v1616
      %v1618 = vpop.f32.mrf.mxu0
      %1619 = vmatprep.mubr.f32.mxu0 0.0
      %1620 = vmatmul.mubr.f32.gmra.mxu0 %v1098
      %v1621 = vpop.f32.mrf.mxu0
      %v1622 = vadd.f32 0.0, %v1621
      %v1623 = vpop.f32.mrf.mxu0
      %1624 = vmatprep.mubr.f32.mxu0 0.0
      %1625 = vmatmul.mubr.f32.gmra.mxu0 %v1100
      %v1626 = vpop.f32.mrf.mxu0
      %v1627 = vadd.f32 0.0, %v1626
      %v1628 = vpop.f32.mrf.mxu0
      %1629 = vmatprep.mubr.f32.mxu0 0.0
      %1630 = vmatmul.mubr.f32.gmra.mxu0 %v1103
      %v1631 = vpop.f32.mrf.mxu0
      %v1632 = vadd.f32 0.0, %v1631
      %v1633 = vpop.f32.mrf.mxu0
      %1634 = vmatprep.mubr.f32.mxu0 0.0
      %1635 = vmatmul.mubr.f32.gmra.mxu0 %v1105
      %v1636 = vpop.f32.mrf.mxu0
      %v1637 = vadd.f32 0.0, %v1636
      %v1638 = vpop.f32.mrf.mxu0
      %1639 = vmatprep.mubr.f32.mxu0 0.0
      %1640 = vmatmul.mubr.f32.gmra.mxu0 %v1305
      %v1641 = vpop.f32.mrf.mxu0
      %v1642 = vadd.f32 0.0, %v1641
      %v1643 = vpop.f32.mrf.mxu0
      %1644 = vmatprep.mubr.f32.mxu0 0.0
      %1645 = vmatmul.mubr.f32.gmra.mxu0 %v1307
      %v1646 = vpop.f32.mrf.mxu0
      %v1647 = vadd.f32 0.0, %v1646
      %v1648 = vpop.f32.mrf.mxu0
      %1649 = vmatprep.mubr.f32.mxu0 0.0
      %1650 = vmatmul.mubr.f32.gmra.mxu0 %v1493
      %v1651 = vpop.f32.mrf.mxu0
      %v1652 = vadd.f32 0.0, %v1651
      %v1653 = vpop.f32.mrf.mxu0
      %1654 = vmatprep.mubr.f32.mxu0 0.0
      %1655 = vmatmul.mubr.f32.gmra.mxu0 %v1495
      %v1656 = vpop.f32.mrf.mxu0
      %v1657 = vadd.f32 0.0, %v1656
      %v1658 = vpop.f32.mrf.mxu0
      %1659 = vdwg.mxu0
      %v1660 = vadd.f32 %v1472, %v1582
      %v1661 = vadd.f32 %v1473, %v1587
      %v1662 = vadd.f32 %v1474, %v1592
      %v1663 = vadd.f32 %v1475, %v1597
      %v1664 = vadd.f32 %v1476, %v1602
      %v1665 = vadd.f32 %v1477, %v1607
      %v1666 = vadd.f32 %v1478, %v1612
      %v1667 = vadd.f32 %v1479, %v1617
      %v1668 = vadd.f32 %v1480, %v1622
      %v1669 = vadd.f32 %v1481, %v1627
      %v1670 = vadd.f32 %v1482, %v1632
      %v1671 = vadd.f32 %v1483, %v1637
      %v1672 = vadd.f32 %v1484, %v1642
      %v1673 = vadd.f32 %v1485, %v1647
      %v1674 = vadd.f32 %v1486, %v1652
      %v1675 = vadd.f32 %v1487, %v1657
      %vm1676 = vcmask 1045504
      %v1677 = vrot.slane %v510, 2
      %v1678 = vrot.slane %v511, 2
      %v1679 = vsel %vm1676, %v1677, %v1678
      %v1680 = vrot.slane %v512, 2
      %v1681 = vsel %vm1676, %v1678, %v1680
      %v1682 = vrot.slane %v513, 2
      %v1683 = vrot.slane %v514, 2
      %v1684 = vsel %vm1676, %v1682, %v1683
      %v1685 = vrot.slane %v515, 2
      %v1686 = vsel %vm1676, %v1683, %v1685
      %v1687 = vrot.slane %v516, 2
      %v1688 = vrot.slane %v517, 2
      %v1689 = vsel %vm1676, %v1687, %v1688
      %v1690 = vrot.slane %v518, 2
      %v1691 = vsel %vm1676, %v1688, %v1690
      %v1692 = vrot.slane %v519, 2
      %v1693 = vrot.slane %v520, 2
      %v1694 = vsel %vm1676, %v1692, %v1693
      %v1695 = vrot.slane %v521, 2
      %v1696 = vsel %vm1676, %v1693, %v1695
      %v1697 = vrot.slane %v522, 2
      %v1698 = vrot.slane %v523, 2
      %v1699 = vsel %vm1676, %v1697, %v1698
      %v1700 = vrot.slane %v524, 2
      %v1701 = vsel %vm1676, %v1698, %v1700
      %v1702 = vrot.slane %v525, 2
      %v1703 = vrot.slane %v526, 2
      %v1704 = vsel %vm1676, %v1702, %v1703
      %v1705 = vrot.slane %v527, 2
      %v1706 = vsel %vm1676, %v1703, %v1705
      %v1707 = vrot.slane %v528, 2
      %v1708 = vrot.slane %v529, 2
      %v1709 = vsel %vm1676, %v1707, %v1708
      %v1710 = vrot.slane %v530, 2
      %v1711 = vsel %vm1676, %v1708, %v1710
      %v1712 = vrot.slane %v531, 2
      %v1713 = vrot.slane %v532, 2
      %v1714 = vsel %vm1676, %v1712, %v1713
      %v1715 = vrot.slane %v533, 2
      %v1716 = vsel %vm1676, %v1713, %v1715
      %s1733 = scalar_lea.vmem %s3, 256
      %v1734 = vld [vmem:[%s1733] sm:$0xff]
      %v1735 = vld [vmem:[%s1733 + $0x8] sm:$0xff]
      %v1736 = vld [vmem:[%s1733 + $0x10] sm:$0xff]
      %v1737 = vld [vmem:[%s1733 + $0x18] sm:$0xff]
      %v1738 = vld [vmem:[%s1733 + $0x20] sm:$0xff]
      %v1739 = vld [vmem:[%s1733 + $0x28] sm:$0xff]
      %v1740 = vld [vmem:[%s1733 + $0x30] sm:$0xff]
      %v1741 = vld [vmem:[%s1733 + $0x38] sm:$0xff]
      %v1742 = vld [vmem:[%s1733 + $0x40] sm:$0xff]
      %v1743 = vld [vmem:[%s1733 + $0x48] sm:$0xff]
      %v1744 = vld [vmem:[%s1733 + $0x50] sm:$0xff]
      %v1745 = vld [vmem:[%s1733 + $0x58] sm:$0xff]
      %v1746 = vld [vmem:[%s1733 + $0x60] sm:$0xff]
      %v1747 = vld [vmem:[%s1733 + $0x68] sm:$0xff]
      %v1748 = vld [vmem:[%s1733 + $0x70] sm:$0xff]
      %v1749 = vld [vmem:[%s1733 + $0x78] sm:$0xff]
      %1750 = vmatprep.subr.mxu0 0.0
      %1751 = vmatpush1.msra.mxu0 %v1749
      %1752 = vmatprep.subr.mxu0 0.0
      %1753 = vmatpush1.msra.mxu0 %v1748
      %1754 = vmatprep.subr.mxu0 0.0
      %1755 = vmatpush1.msra.mxu0 %v1747
      %1756 = vmatprep.subr.mxu0 0.0
      %1757 = vmatpush1.msra.mxu0 %v1746
      %1758 = vmatprep.subr.mxu0 0.0
      %1759 = vmatpush1.msra.mxu0 %v1745
      %1760 = vmatprep.subr.mxu0 0.0
      %1761 = vmatpush1.msra.mxu0 %v1744
      %1762 = vmatprep.subr.mxu0 0.0
      %1763 = vmatpush1.msra.mxu0 %v1743
      %1764 = vmatprep.subr.mxu0 0.0
      %1765 = vmatpush1.msra.mxu0 %v1742
      %1766 = vmatprep.subr.mxu0 0.0
      %1767 = vmatpush1.msra.mxu0 %v1741
      %1768 = vmatprep.subr.mxu0 0.0
      %1769 = vmatpush1.msra.mxu0 %v1740
      %1770 = vmatprep.subr.mxu0 0.0
      %1771 = vmatpush1.msra.mxu0 %v1739
      %1772 = vmatprep.subr.mxu0 0.0
      %1773 = vmatpush1.msra.mxu0 %v1738
      %1774 = vmatprep.subr.mxu0 0.0
      %1775 = vmatpush1.msra.mxu0 %v1737
      %1776 = vmatprep.subr.mxu0 0.0
      %1777 = vmatpush1.msra.mxu0 %v1736
      %1778 = vmatprep.subr.mxu0 0.0
      %1779 = vmatpush1.msra.mxu0 %v1735
      %1780 = vmatprep.subr.mxu0 0.0
      %1781 = vmatpush1.msra.mxu0 %v1734
      %1782 = vmatprep.subr.mxu0 0.0
      %1783 = vmatpush2.msra.mxu0 0.0
      %1784 = vmatprep.subr.mxu0 0.0
      %1785 = vmatpush2.msra.mxu0 0.0
      %1786 = vmatprep.subr.mxu0 0.0
      %1787 = vmatpush2.msra.mxu0 0.0
      %1788 = vmatprep.subr.mxu0 0.0
      %1789 = vmatpush2.msra.mxu0 0.0
      %1790 = vmatprep.subr.mxu0 0.0
      %1791 = vmatpush2.msra.mxu0 0.0
      %1792 = vmatprep.subr.mxu0 0.0
      %1793 = vmatpush2.msra.mxu0 0.0
      %1794 = vmatprep.subr.mxu0 0.0
      %1795 = vmatpush2.msra.mxu0 0.0
      %1796 = vmatprep.subr.mxu0 0.0
      %1797 = vmatpush2.msra.mxu0 0.0
      %1798 = vmatprep.subr.mxu0 0.0
      %1799 = vmatpush2.msra.mxu0 0.0
      %1800 = vmatprep.subr.mxu0 0.0
      %1801 = vmatpush2.msra.mxu0 0.0
      %1802 = vmatprep.subr.mxu0 0.0
      %1803 = vmatpush2.msra.mxu0 0.0
      %1804 = vmatprep.subr.mxu0 0.0
      %1805 = vmatpush2.msra.mxu0 0.0
      %1806 = vmatprep.subr.mxu0 0.0
      %1807 = vmatpush2.msra.mxu0 0.0
      %1808 = vmatprep.subr.mxu0 0.0
      %1809 = vmatpush2.msra.mxu0 0.0
      %1810 = vmatprep.subr.mxu0 0.0
      %1811 = vmatpush2.msra.mxu0 0.0
      %1812 = vmatprep.subr.mxu0 0.0
      %1813 = vmatpush2.msra.mxu0 0.0
      %1814 = vmatprep.mubr.f32.mxu0 0.0
      %1815 = vmatmul.mubr.f32.gmra.mxu0 %v1679
      %v1816 = vpop.f32.mrf.mxu0
      %v1817 = vadd.f32 0.0, %v1816
      %v1818 = vpop.f32.mrf.mxu0
      %1819 = vmatprep.mubr.f32.mxu0 0.0
      %1820 = vmatmul.mubr.f32.gmra.mxu0 %v1681
      %v1821 = vpop.f32.mrf.mxu0
      %v1822 = vadd.f32 0.0, %v1821
      %v1823 = vpop.f32.mrf.mxu0
      %1824 = vmatprep.mubr.f32.mxu0 0.0
      %1825 = vmatmul.mubr.f32.gmra.mxu0 %v1684
      %v1826 = vpop.f32.mrf.mxu0
      %v1827 = vadd.f32 0.0, %v1826
      %v1828 = vpop.f32.mrf.mxu0
      %1829 = vmatprep.mubr.f32.mxu0 0.0
      %1830 = vmatmul.mubr.f32.gmra.mxu0 %v1686
      %v1831 = vpop.f32.mrf.mxu0
      %v1832 = vadd.f32 0.0, %v1831
      %v1833 = vpop.f32.mrf.mxu0
      %1834 = vmatprep.mubr.f32.mxu0 0.0
      %1835 = vmatmul.mubr.f32.gmra.mxu0 %v1689
      %v1836 = vpop.f32.mrf.mxu0
      %v1837 = vadd.f32 0.0, %v1836
      %v1838 = vpop.f32.mrf.mxu0
      %1839 = vmatprep.mubr.f32.mxu0 0.0
      %1840 = vmatmul.mubr.f32.gmra.mxu0 %v1691
      %v1841 = vpop.f32.mrf.mxu0
      %v1842 = vadd.f32 0.0, %v1841
      %v1843 = vpop.f32.mrf.mxu0
      %1844 = vmatprep.mubr.f32.mxu0 0.0
      %1845 = vmatmul.mubr.f32.gmra.mxu0 %v1694
      %v1846 = vpop.f32.mrf.mxu0
      %v1847 = vadd.f32 0.0, %v1846
      %v1848 = vpop.f32.mrf.mxu0
      %1849 = vmatprep.mubr.f32.mxu0 0.0
      %1850 = vmatmul.mubr.f32.gmra.mxu0 %v1696
      %v1851 = vpop.f32.mrf.mxu0
      %v1852 = vadd.f32 0.0, %v1851
      %v1853 = vpop.f32.mrf.mxu0
      %1854 = vmatprep.mubr.f32.mxu0 0.0
      %1855 = vmatmul.mubr.f32.gmra.mxu0 %v1699
      %v1856 = vpop.f32.mrf.mxu0
      %v1857 = vadd.f32 0.0, %v1856
      %v1858 = vpop.f32.mrf.mxu0
      %1859 = vmatprep.mubr.f32.mxu0 0.0
      %1860 = vmatmul.mubr.f32.gmra.mxu0 %v1701
      %v1861 = vpop.f32.mrf.mxu0
      %v1862 = vadd.f32 0.0, %v1861
      %v1863 = vpop.f32.mrf.mxu0
      %1864 = vmatprep.mubr.f32.mxu0 0.0
      %1865 = vmatmul.mubr.f32.gmra.mxu0 %v1704
      %v1866 = vpop.f32.mrf.mxu0
      %v1867 = vadd.f32 0.0, %v1866
      %v1868 = vpop.f32.mrf.mxu0
      %1869 = vmatprep.mubr.f32.mxu0 0.0
      %1870 = vmatmul.mubr.f32.gmra.mxu0 %v1706
      %v1871 = vpop.f32.mrf.mxu0
      %v1872 = vadd.f32 0.0, %v1871
      %v1873 = vpop.f32.mrf.mxu0
      %1874 = vmatprep.mubr.f32.mxu0 0.0
      %1875 = vmatmul.mubr.f32.gmra.mxu0 %v1709
      %v1876 = vpop.f32.mrf.mxu0
      %v1877 = vadd.f32 0.0, %v1876
      %v1878 = vpop.f32.mrf.mxu0
      %1879 = vmatprep.mubr.f32.mxu0 0.0
      %1880 = vmatmul.mubr.f32.gmra.mxu0 %v1711
      %v1881 = vpop.f32.mrf.mxu0
      %v1882 = vadd.f32 0.0, %v1881
      %v1883 = vpop.f32.mrf.mxu0
      %1884 = vmatprep.mubr.f32.mxu0 0.0
      %1885 = vmatmul.mubr.f32.gmra.mxu0 %v1714
      %v1886 = vpop.f32.mrf.mxu0
      %v1887 = vadd.f32 0.0, %v1886
      %v1888 = vpop.f32.mrf.mxu0
      %1889 = vmatprep.mubr.f32.mxu0 0.0
      %1890 = vmatmul.mubr.f32.gmra.mxu0 %v1716
      %v1891 = vpop.f32.mrf.mxu0
      %v1892 = vadd.f32 0.0, %v1891
      %v1893 = vpop.f32.mrf.mxu0
      %1894 = vdwg.mxu0
      %v1895 = vadd.f32 %v1660, %v1817
      %v1896 = vadd.f32 %v1661, %v1822
      %v1897 = vadd.f32 %v1662, %v1827
      %v1898 = vadd.f32 %v1663, %v1832
      %v1899 = vadd.f32 %v1664, %v1837
      %v1900 = vadd.f32 %v1665, %v1842
      %v1901 = vadd.f32 %v1666, %v1847
      %v1902 = vadd.f32 %v1667, %v1852
      %v1903 = vadd.f32 %v1668, %v1857
      %v1904 = vadd.f32 %v1669, %v1862
      %v1905 = vadd.f32 %v1670, %v1867
      %v1906 = vadd.f32 %v1671, %v1872
      %v1907 = vadd.f32 %v1672, %v1877
      %v1908 = vadd.f32 %v1673, %v1882
      %v1909 = vadd.f32 %v1674, %v1887
      %v1910 = vadd.f32 %v1675, %v1892
      %v1911 = vrot.slane %v534, 2
      %v1912 = vrot.slane %v535, 2
      %v1913 = vsel %vm1676, %v1911, %v1912
      %v1914 = vrot.slane %v536, 2
      %v1915 = vsel %vm1676, %v1912, %v1914
      %s1918 = scalar_lea.vmem %s3, 640
      %v1919 = vld [vmem:[%s1918] sm:$0xff]
      %v1920 = vld [vmem:[%s1918 + $0x8] sm:$0xff]
      %v1921 = vld [vmem:[%s1918 + $0x10] sm:$0xff]
      %v1922 = vld [vmem:[%s1918 + $0x18] sm:$0xff]
      %v1923 = vld [vmem:[%s1918 + $0x20] sm:$0xff]
      %v1924 = vld [vmem:[%s1918 + $0x28] sm:$0xff]
      %v1925 = vld [vmem:[%s1918 + $0x30] sm:$0xff]
      %v1926 = vld [vmem:[%s1918 + $0x38] sm:$0xff]
      %v1927 = vld [vmem:[%s1918 + $0x40] sm:$0xff]
      %v1928 = vld [vmem:[%s1918 + $0x48] sm:$0xff]
      %v1929 = vld [vmem:[%s1918 + $0x50] sm:$0xff]
      %v1930 = vld [vmem:[%s1918 + $0x58] sm:$0xff]
      %v1931 = vld [vmem:[%s1918 + $0x60] sm:$0xff]
      %v1932 = vld [vmem:[%s1918 + $0x68] sm:$0xff]
      %v1933 = vld [vmem:[%s1918 + $0x70] sm:$0xff]
      %v1934 = vld [vmem:[%s1918 + $0x78] sm:$0xff]
      %1935 = vmatprep.subr.mxu0 0.0
      %1936 = vmatpush1.msra.mxu0 %v1934
      %1937 = vmatprep.subr.mxu0 0.0
      %1938 = vmatpush1.msra.mxu0 %v1933
      %1939 = vmatprep.subr.mxu0 0.0
      %1940 = vmatpush1.msra.mxu0 %v1932
      %1941 = vmatprep.subr.mxu0 0.0
      %1942 = vmatpush1.msra.mxu0 %v1931
      %1943 = vmatprep.subr.mxu0 0.0
      %1944 = vmatpush1.msra.mxu0 %v1930
      %1945 = vmatprep.subr.mxu0 0.0
      %1946 = vmatpush1.msra.mxu0 %v1929
      %1947 = vmatprep.subr.mxu0 0.0
      %1948 = vmatpush1.msra.mxu0 %v1928
      %1949 = vmatprep.subr.mxu0 0.0
      %1950 = vmatpush1.msra.mxu0 %v1927
      %1951 = vmatprep.subr.mxu0 0.0
      %1952 = vmatpush1.msra.mxu0 %v1926
      %1953 = vmatprep.subr.mxu0 0.0
      %1954 = vmatpush1.msra.mxu0 %v1925
      %1955 = vmatprep.subr.mxu0 0.0
      %1956 = vmatpush1.msra.mxu0 %v1924
      %1957 = vmatprep.subr.mxu0 0.0
      %1958 = vmatpush1.msra.mxu0 %v1923
      %1959 = vmatprep.subr.mxu0 0.0
      %1960 = vmatpush1.msra.mxu0 %v1922
      %1961 = vmatprep.subr.mxu0 0.0
      %1962 = vmatpush1.msra.mxu0 %v1921
      %1963 = vmatprep.subr.mxu0 0.0
      %1964 = vmatpush1.msra.mxu0 %v1920
      %1965 = vmatprep.subr.mxu0 0.0
      %1966 = vmatpush1.msra.mxu0 %v1919
      %1967 = vmatprep.subr.mxu0 0.0
      %1968 = vmatpush2.msra.mxu0 0.0
      %1969 = vmatprep.subr.mxu0 0.0
      %1970 = vmatpush2.msra.mxu0 0.0
      %1971 = vmatprep.subr.mxu0 0.0
      %1972 = vmatpush2.msra.mxu0 0.0
      %1973 = vmatprep.subr.mxu0 0.0
      %1974 = vmatpush2.msra.mxu0 0.0
      %1975 = vmatprep.subr.mxu0 0.0
      %1976 = vmatpush2.msra.mxu0 0.0
      %1977 = vmatprep.subr.mxu0 0.0
      %1978 = vmatpush2.msra.mxu0 0.0
      %1979 = vmatprep.subr.mxu0 0.0
      %1980 = vmatpush2.msra.mxu0 0.0
      %1981 = vmatprep.subr.mxu0 0.0
      %1982 = vmatpush2.msra.mxu0 0.0
      %1983 = vmatprep.subr.mxu0 0.0
      %1984 = vmatpush2.msra.mxu0 0.0
      %1985 = vmatprep.subr.mxu0 0.0
      %1986 = vmatpush2.msra.mxu0 0.0
      %1987 = vmatprep.subr.mxu0 0.0
      %1988 = vmatpush2.msra.mxu0 0.0
      %1989 = vmatprep.subr.mxu0 0.0
      %1990 = vmatpush2.msra.mxu0 0.0
      %1991 = vmatprep.subr.mxu0 0.0
      %1992 = vmatpush2.msra.mxu0 0.0
      %1993 = vmatprep.subr.mxu0 0.0
      %1994 = vmatpush2.msra.mxu0 0.0
      %1995 = vmatprep.subr.mxu0 0.0
      %1996 = vmatpush2.msra.mxu0 0.0
      %1997 = vmatprep.subr.mxu0 0.0
      %1998 = vmatpush2.msra.mxu0 0.0
      %1999 = vmatprep.mubr.f32.mxu0 0.0
      %2000 = vmatmul.mubr.f32.gmra.mxu0 %v1684
      %v2001 = vpop.f32.mrf.mxu0
      %v2002 = vadd.f32 0.0, %v2001
      %v2003 = vpop.f32.mrf.mxu0
      %2004 = vmatprep.mubr.f32.mxu0 0.0
      %2005 = vmatmul.mubr.f32.gmra.mxu0 %v1686
      %v2006 = vpop.f32.mrf.mxu0
      %v2007 = vadd.f32 0.0, %v2006
      %v2008 = vpop.f32.mrf.mxu0
      %2009 = vmatprep.mubr.f32.mxu0 0.0
      %2010 = vmatmul.mubr.f32.gmra.mxu0 %v1689
      %v2011 = vpop.f32.mrf.mxu0
      %v2012 = vadd.f32 0.0, %v2011
      %v2013 = vpop.f32.mrf.mxu0
      %2014 = vmatprep.mubr.f32.mxu0 0.0
      %2015 = vmatmul.mubr.f32.gmra.mxu0 %v1691
      %v2016 = vpop.f32.mrf.mxu0
      %v2017 = vadd.f32 0.0, %v2016
      %v2018 = vpop.f32.mrf.mxu0
      %2019 = vmatprep.mubr.f32.mxu0 0.0
      %2020 = vmatmul.mubr.f32.gmra.mxu0 %v1694
      %v2021 = vpop.f32.mrf.mxu0
      %v2022 = vadd.f32 0.0, %v2021
      %v2023 = vpop.f32.mrf.mxu0
      %2024 = vmatprep.mubr.f32.mxu0 0.0
      %2025 = vmatmul.mubr.f32.gmra.mxu0 %v1696
      %v2026 = vpop.f32.mrf.mxu0
      %v2027 = vadd.f32 0.0, %v2026
      %v2028 = vpop.f32.mrf.mxu0
      %2029 = vmatprep.mubr.f32.mxu0 0.0
      %2030 = vmatmul.mubr.f32.gmra.mxu0 %v1699
      %v2031 = vpop.f32.mrf.mxu0
      %v2032 = vadd.f32 0.0, %v2031
      %v2033 = vpop.f32.mrf.mxu0
      %2034 = vmatprep.mubr.f32.mxu0 0.0
      %2035 = vmatmul.mubr.f32.gmra.mxu0 %v1701
      %v2036 = vpop.f32.mrf.mxu0
      %v2037 = vadd.f32 0.0, %v2036
      %v2038 = vpop.f32.mrf.mxu0
      %2039 = vmatprep.mubr.f32.mxu0 0.0
      %2040 = vmatmul.mubr.f32.gmra.mxu0 %v1704
      %v2041 = vpop.f32.mrf.mxu0
      %v2042 = vadd.f32 0.0, %v2041
      %v2043 = vpop.f32.mrf.mxu0
      %2044 = vmatprep.mubr.f32.mxu0 0.0
      %2045 = vmatmul.mubr.f32.gmra.mxu0 %v1706
      %v2046 = vpop.f32.mrf.mxu0
      %v2047 = vadd.f32 0.0, %v2046
      %v2048 = vpop.f32.mrf.mxu0
      %2049 = vmatprep.mubr.f32.mxu0 0.0
      %2050 = vmatmul.mubr.f32.gmra.mxu0 %v1709
      %v2051 = vpop.f32.mrf.mxu0
      %v2052 = vadd.f32 0.0, %v2051
      %v2053 = vpop.f32.mrf.mxu0
      %2054 = vmatprep.mubr.f32.mxu0 0.0
      %2055 = vmatmul.mubr.f32.gmra.mxu0 %v1711
      %v2056 = vpop.f32.mrf.mxu0
      %v2057 = vadd.f32 0.0, %v2056
      %v2058 = vpop.f32.mrf.mxu0
      %2059 = vmatprep.mubr.f32.mxu0 0.0
      %2060 = vmatmul.mubr.f32.gmra.mxu0 %v1714
      %v2061 = vpop.f32.mrf.mxu0
      %v2062 = vadd.f32 0.0, %v2061
      %v2063 = vpop.f32.mrf.mxu0
      %2064 = vmatprep.mubr.f32.mxu0 0.0
      %2065 = vmatmul.mubr.f32.gmra.mxu0 %v1716
      %v2066 = vpop.f32.mrf.mxu0
      %v2067 = vadd.f32 0.0, %v2066
      %v2068 = vpop.f32.mrf.mxu0
      %2069 = vmatprep.mubr.f32.mxu0 0.0
      %2070 = vmatmul.mubr.f32.gmra.mxu0 %v1913
      %v2071 = vpop.f32.mrf.mxu0
      %v2072 = vadd.f32 0.0, %v2071
      %v2073 = vpop.f32.mrf.mxu0
      %2074 = vmatprep.mubr.f32.mxu0 0.0
      %2075 = vmatmul.mubr.f32.gmra.mxu0 %v1915
      %v2076 = vpop.f32.mrf.mxu0
      %v2077 = vadd.f32 0.0, %v2076
      %v2078 = vpop.f32.mrf.mxu0
      %2079 = vdwg.mxu0
      %v2080 = vadd.f32 %v1895, %v2002
      %v2081 = vadd.f32 %v1896, %v2007
      %v2082 = vadd.f32 %v1897, %v2012
      %v2083 = vadd.f32 %v1898, %v2017
      %v2084 = vadd.f32 %v1899, %v2022
      %v2085 = vadd.f32 %v1900, %v2027
      %v2086 = vadd.f32 %v1901, %v2032
      %v2087 = vadd.f32 %v1902, %v2037
      %v2088 = vadd.f32 %v1903, %v2042
      %v2089 = vadd.f32 %v1904, %v2047
      %v2090 = vadd.f32 %v1905, %v2052
      %v2091 = vadd.f32 %v1906, %v2057
      %v2092 = vadd.f32 %v1907, %v2062
      %v2093 = vadd.f32 %v1908, %v2067
      %v2094 = vadd.f32 %v1909, %v2072
      %v2095 = vadd.f32 %v1910, %v2077
      %v2096 = vrot.slane %v537, 2
      %v2097 = vrot.slane %v538, 2
      %v2098 = vsel %vm1676, %v2096, %v2097
      %v2099 = vrot.slane %v539, 2
      %v2100 = vsel %vm1676, %v2097, %v2099
      %s2103 = scalar_lea.vmem %s3, 1024
      %v2104 = vld [vmem:[%s2103] sm:$0xff]
      %v2105 = vld [vmem:[%s2103 + $0x8] sm:$0xff]
      %v2106 = vld [vmem:[%s2103 + $0x10] sm:$0xff]
      %v2107 = vld [vmem:[%s2103 + $0x18] sm:$0xff]
      %v2108 = vld [vmem:[%s2103 + $0x20] sm:$0xff]
      %v2109 = vld [vmem:[%s2103 + $0x28] sm:$0xff]
      %v2110 = vld [vmem:[%s2103 + $0x30] sm:$0xff]
      %v2111 = vld [vmem:[%s2103 + $0x38] sm:$0xff]
      %v2112 = vld [vmem:[%s2103 + $0x40] sm:$0xff]
      %v2113 = vld [vmem:[%s2103 + $0x48] sm:$0xff]
      %v2114 = vld [vmem:[%s2103 + $0x50] sm:$0xff]
      %v2115 = vld [vmem:[%s2103 + $0x58] sm:$0xff]
      %v2116 = vld [vmem:[%s2103 + $0x60] sm:$0xff]
      %v2117 = vld [vmem:[%s2103 + $0x68] sm:$0xff]
      %v2118 = vld [vmem:[%s2103 + $0x70] sm:$0xff]
      %v2119 = vld [vmem:[%s2103 + $0x78] sm:$0xff]
      %2120 = vmatprep.subr.mxu0 0.0
      %2121 = vmatpush1.msra.mxu0 %v2119
      %2122 = vmatprep.subr.mxu0 0.0
      %2123 = vmatpush1.msra.mxu0 %v2118
      %2124 = vmatprep.subr.mxu0 0.0
      %2125 = vmatpush1.msra.mxu0 %v2117
      %2126 = vmatprep.subr.mxu0 0.0
      %2127 = vmatpush1.msra.mxu0 %v2116
      %2128 = vmatprep.subr.mxu0 0.0
      %2129 = vmatpush1.msra.mxu0 %v2115
      %2130 = vmatprep.subr.mxu0 0.0
      %2131 = vmatpush1.msra.mxu0 %v2114
      %2132 = vmatprep.subr.mxu0 0.0
      %2133 = vmatpush1.msra.mxu0 %v2113
      %2134 = vmatprep.subr.mxu0 0.0
      %2135 = vmatpush1.msra.mxu0 %v2112
      %2136 = vmatprep.subr.mxu0 0.0
      %2137 = vmatpush1.msra.mxu0 %v2111
      %2138 = vmatprep.subr.mxu0 0.0
      %2139 = vmatpush1.msra.mxu0 %v2110
      %2140 = vmatprep.subr.mxu0 0.0
      %2141 = vmatpush1.msra.mxu0 %v2109
      %2142 = vmatprep.subr.mxu0 0.0
      %2143 = vmatpush1.msra.mxu0 %v2108
      %2144 = vmatprep.subr.mxu0 0.0
      %2145 = vmatpush1.msra.mxu0 %v2107
      %2146 = vmatprep.subr.mxu0 0.0
      %2147 = vmatpush1.msra.mxu0 %v2106
      %2148 = vmatprep.subr.mxu0 0.0
      %2149 = vmatpush1.msra.mxu0 %v2105
      %2150 = vmatprep.subr.mxu0 0.0
      %2151 = vmatpush1.msra.mxu0 %v2104
      %2152 = vmatprep.subr.mxu0 0.0
      %2153 = vmatpush2.msra.mxu0 0.0
      %2154 = vmatprep.subr.mxu0 0.0
      %2155 = vmatpush2.msra.mxu0 0.0
      %2156 = vmatprep.subr.mxu0 0.0
      %2157 = vmatpush2.msra.mxu0 0.0
      %2158 = vmatprep.subr.mxu0 0.0
      %2159 = vmatpush2.msra.mxu0 0.0
      %2160 = vmatprep.subr.mxu0 0.0
      %2161 = vmatpush2.msra.mxu0 0.0
      %2162 = vmatprep.subr.mxu0 0.0
      %2163 = vmatpush2.msra.mxu0 0.0
      %2164 = vmatprep.subr.mxu0 0.0
      %2165 = vmatpush2.msra.mxu0 0.0
      %2166 = vmatprep.subr.mxu0 0.0
      %2167 = vmatpush2.msra.mxu0 0.0
      %2168 = vmatprep.subr.mxu0 0.0
      %2169 = vmatpush2.msra.mxu0 0.0
      %2170 = vmatprep.subr.mxu0 0.0
      %2171 = vmatpush2.msra.mxu0 0.0
      %2172 = vmatprep.subr.mxu0 0.0
      %2173 = vmatpush2.msra.mxu0 0.0
      %2174 = vmatprep.subr.mxu0 0.0
      %2175 = vmatpush2.msra.mxu0 0.0
      %2176 = vmatprep.subr.mxu0 0.0
      %2177 = vmatpush2.msra.mxu0 0.0
      %2178 = vmatprep.subr.mxu0 0.0
      %2179 = vmatpush2.msra.mxu0 0.0
      %2180 = vmatprep.subr.mxu0 0.0
      %2181 = vmatpush2.msra.mxu0 0.0
      %2182 = vmatprep.subr.mxu0 0.0
      %2183 = vmatpush2.msra.mxu0 0.0
      %2184 = vmatprep.mubr.f32.mxu0 0.0
      %2185 = vmatmul.mubr.f32.gmra.mxu0 %v1689
      %v2186 = vpop.f32.mrf.mxu0
      %v2187 = vadd.f32 0.0, %v2186
      %v2188 = vpop.f32.mrf.mxu0
      %2189 = vmatprep.mubr.f32.mxu0 0.0
      %2190 = vmatmul.mubr.f32.gmra.mxu0 %v1691
      %v2191 = vpop.f32.mrf.mxu0
      %v2192 = vadd.f32 0.0, %v2191
      %v2193 = vpop.f32.mrf.mxu0
      %2194 = vmatprep.mubr.f32.mxu0 0.0
      %2195 = vmatmul.mubr.f32.gmra.mxu0 %v1694
      %v2196 = vpop.f32.mrf.mxu0
      %v2197 = vadd.f32 0.0, %v2196
      %v2198 = vpop.f32.mrf.mxu0
      %2199 = vmatprep.mubr.f32.mxu0 0.0
      %2200 = vmatmul.mubr.f32.gmra.mxu0 %v1696
      %v2201 = vpop.f32.mrf.mxu0
      %v2202 = vadd.f32 0.0, %v2201
      %v2203 = vpop.f32.mrf.mxu0
      %2204 = vmatprep.mubr.f32.mxu0 0.0
      %2205 = vmatmul.mubr.f32.gmra.mxu0 %v1699
      %v2206 = vpop.f32.mrf.mxu0
      %v2207 = vadd.f32 0.0, %v2206
      %v2208 = vpop.f32.mrf.mxu0
      %2209 = vmatprep.mubr.f32.mxu0 0.0
      %2210 = vmatmul.mubr.f32.gmra.mxu0 %v1701
      %v2211 = vpop.f32.mrf.mxu0
      %v2212 = vadd.f32 0.0, %v2211
      %v2213 = vpop.f32.mrf.mxu0
      %2214 = vmatprep.mubr.f32.mxu0 0.0
      %2215 = vmatmul.mubr.f32.gmra.mxu0 %v1704
      %v2216 = vpop.f32.mrf.mxu0
      %v2217 = vadd.f32 0.0, %v2216
      %v2218 = vpop.f32.mrf.mxu0
      %2219 = vmatprep.mubr.f32.mxu0 0.0
      %2220 = vmatmul.mubr.f32.gmra.mxu0 %v1706
      %v2221 = vpop.f32.mrf.mxu0
      %v2222 = vadd.f32 0.0, %v2221
      %v2223 = vpop.f32.mrf.mxu0
      %2224 = vmatprep.mubr.f32.mxu0 0.0
      %2225 = vmatmul.mubr.f32.gmra.mxu0 %v1709
      %v2226 = vpop.f32.mrf.mxu0
      %v2227 = vadd.f32 0.0, %v2226
      %v2228 = vpop.f32.mrf.mxu0
      %2229 = vmatprep.mubr.f32.mxu0 0.0
      %2230 = vmatmul.mubr.f32.gmra.mxu0 %v1711
      %v2231 = vpop.f32.mrf.mxu0
      %v2232 = vadd.f32 0.0, %v2231
      %v2233 = vpop.f32.mrf.mxu0
      %2234 = vmatprep.mubr.f32.mxu0 0.0
      %2235 = vmatmul.mubr.f32.gmra.mxu0 %v1714
      %v2236 = vpop.f32.mrf.mxu0
      %v2237 = vadd.f32 0.0, %v2236
      %v2238 = vpop.f32.mrf.mxu0
      %2239 = vmatprep.mubr.f32.mxu0 0.0
      %2240 = vmatmul.mubr.f32.gmra.mxu0 %v1716
      %v2241 = vpop.f32.mrf.mxu0
      %v2242 = vadd.f32 0.0, %v2241
      %v2243 = vpop.f32.mrf.mxu0
      %2244 = vmatprep.mubr.f32.mxu0 0.0
      %2245 = vmatmul.mubr.f32.gmra.mxu0 %v1913
      %v2246 = vpop.f32.mrf.mxu0
      %v2247 = vadd.f32 0.0, %v2246
      %v2248 = vpop.f32.mrf.mxu0
      %2249 = vmatprep.mubr.f32.mxu0 0.0
      %2250 = vmatmul.mubr.f32.gmra.mxu0 %v1915
      %v2251 = vpop.f32.mrf.mxu0
      %v2252 = vadd.f32 0.0, %v2251
      %v2253 = vpop.f32.mrf.mxu0
      %2254 = vmatprep.mubr.f32.mxu0 0.0
      %2255 = vmatmul.mubr.f32.gmra.mxu0 %v2098
      %v2256 = vpop.f32.mrf.mxu0
      %v2257 = vadd.f32 0.0, %v2256
      %v2258 = vpop.f32.mrf.mxu0
      %2259 = vmatprep.mubr.f32.mxu0 0.0
      %2260 = vmatmul.mubr.f32.gmra.mxu0 %v2100
      %v2261 = vpop.f32.mrf.mxu0
      %v2262 = vadd.f32 0.0, %v2261
      %v2263 = vpop.f32.mrf.mxu0
      %2264 = vdwg.mxu0
      %v2265 = vadd.f32 %v2080, %v2187
      %v2266 = vadd.f32 %v2081, %v2192
      %v2267 = vadd.f32 %v2082, %v2197
      %v2268 = vadd.f32 %v2083, %v2202
      %v2269 = vadd.f32 %v2084, %v2207
      %v2270 = vadd.f32 %v2085, %v2212
      %v2271 = vadd.f32 %v2086, %v2217
      %v2272 = vadd.f32 %v2087, %v2222
      %v2273 = vadd.f32 %v2088, %v2227
      %v2274 = vadd.f32 %v2089, %v2232
      %v2275 = vadd.f32 %v2090, %v2237
      %v2276 = vadd.f32 %v2091, %v2242
      %v2277 = vadd.f32 %v2092, %v2247
      %v2278 = vadd.f32 %v2093, %v2252
      %v2279 = vadd.f32 %v2094, %v2257
      %v2280 = vadd.f32 %v2095, %v2262
      %v2281 = vld [vmem:[%s4] sm:$0x1]
      %v2283 = vlaneseq
      %v2284 = vshrl.u32 %v2283, 7
      %v2285 = vsub.s32 0, %v2284
      %v2286 = vrot.slane %v2281, %v2285
      %v2288 = vadd.f32 %v2265, %v2286
      %v2289 = vadd.f32 %v2266, %v2286
      %v2290 = vadd.f32 %v2267, %v2286
      %v2291 = vadd.f32 %v2268, %v2286
      %v2292 = vadd.f32 %v2269, %v2286
      %v2293 = vadd.f32 %v2270, %v2286
      %v2294 = vadd.f32 %v2271, %v2286
      %v2295 = vadd.f32 %v2272, %v2286
      %v2296 = vadd.f32 %v2273, %v2286
      %v2297 = vadd.f32 %v2274, %v2286
      %v2298 = vadd.f32 %v2275, %v2286
      %v2299 = vadd.f32 %v2276, %v2286
      %v2300 = vadd.f32 %v2277, %v2286
      %v2301 = vadd.f32 %v2278, %v2286
      %v2302 = vadd.f32 %v2279, %v2286
      %v2303 = vadd.f32 %v2280, %v2286
      %2304 = vst [vmem:[%s202] sm:$0xff] %v2288
      %2305 = vst [vmem:[%s202 + $0x8] sm:$0xff] %v2289
      %2306 = vst [vmem:[%s202 + $0x10] sm:$0xff] %v2290
      %2307 = vst [vmem:[%s202 + $0x18] sm:$0xff] %v2291
      %2308 = vst [vmem:[%s202 + $0x20] sm:$0xff] %v2292
      %2309 = vst [vmem:[%s202 + $0x28] sm:$0xff] %v2293
      %2310 = vst [vmem:[%s202 + $0x30] sm:$0xff] %v2294
      %2311 = vst [vmem:[%s202 + $0x38] sm:$0xff] %v2295
      %2312 = vst [vmem:[%s202 + $0x40] sm:$0xff] %v2296
      %2313 = vst [vmem:[%s202 + $0x48] sm:$0xff] %v2297
      %2314 = vst [vmem:[%s202 + $0x50] sm:$0xff] %v2298
      %2315 = vst [vmem:[%s202 + $0x58] sm:$0xff] %v2299
      %2316 = vst [vmem:[%s202 + $0x60] sm:$0xff] %v2300
      %2317 = vst [vmem:[%s202 + $0x68] sm:$0xff] %v2301
      %2318 = vst [vmem:[%s202 + $0x70] sm:$0xff] %v2302
      %2319 = vst [vmem:[%s202 + $0x78] sm:$0xff] %v2303
      %s2320 = smul.u32 8, %s21
      %p2321 = scmp.lt.s32.totalorder %s20, 1
      %s2322 = scalar_select %p2321, %s20, 1
      %p2323 = scmp.lt.s32.totalorder %s2320, 15
      %s2324 = scalar_select %p2323, %s2320, 15
      %s2325 = smul.addr %s2324, 2
      %s2326 = smul.addr %s2322, 32
      %s2327 = sadd.s32 %s2325, %s2326
      %s2328 = smul.addr %s2327, 8
      %s2329 = scalar_lea.vmem %s5, %s2328
      // Predicated region
      $region74: #{decoder_block_pallas.5} parent=35 // pred_check
        %p2330 = pneg %p132
      $region75: #{decoder_block_pallas.5} parent=35 // pred_check_branch
        %2332 = sbr.rel (%p2330) target = $region77
      $region76: #{decoder_block_pallas.5} parent=35 // pred_region
        %s2333 = smul.u32 8, %s21
      $region77: #{decoder_block_pallas.5} parent=35 // pred_fallthru
        _
    $region36: #{decoder_block_pallas.5} parent=5 // pred_fallthru
      _
    %p2334 = scmp.le.s32.totalorder 2, %s11
    // Predicated region
    $region78: #{decoder_block_pallas.5} parent=5 // pred_check
      %p2335 = pneg %p2334
    $region79: #{decoder_block_pallas.5} parent=5 // pred_check_branch
      %2337 = sbr.rel (%p2335) target = $region81
    $region80: #{decoder_block_pallas.5} parent=5 // pred_region
      %s2338 = ssub.s32 %s11, 2
      // Predicated region
      $region82: #{decoder_block_pallas.5} parent=80 // pred_check
        %p2339 = pneg %p138
      $region83: #{decoder_block_pallas.5} parent=80 // pred_check_branch
        %2341 = sbr.rel (%p2339) target = $region85
      $region84: #{decoder_block_pallas.5} parent=80 // pred_region
        %s2342 = smul.u32 8, %s23
        %p2343 = scmp.lt.s32.totalorder %s22, 1
        %s2344 = scalar_select %p2343, %s22, 1
        %p2345 = scmp.lt.s32.totalorder %s2342, 15
        %s2346 = scalar_select %p2345, %s2342, 15
        %s2347 = smul.addr %s2346, 2
        %s2348 = smul.addr %s2344, 32
        %s2349 = sadd.s32 %s2347, %s2348
        %s2350 = smul.addr %s2349, 8
        %s2351 = scalar_lea.vmem %s5, %s2350
      $region85: #{decoder_block_pallas.5} parent=80 // pred_fallthru
        _
    $region81: #{decoder_block_pallas.5} parent=5 // pred_fallthru
      _
  $region6: #{decoder_block_pallas.5} parent=0 // loop_footer
    %s15 = sadd.s32 1, %s11
  $region7: #{decoder_block_pallas.5} parent=0 // loop_footer_branch
    %10 = sbr.rel target = $region3
  $region8: #{decoder_block_pallas.5} parent=0 // loop_exit
    _
  %2352 = vsyncmov [#allocation3]
  %s2353 = vpop.sfrf %2352
  %p2354 = scmp.eq.s32.totalorder %s2353, 0
  %p2355 = pneg %p2354
  %2357 = shalt.err (%p2355)

</llo_original>
